<compile_context>
chip_gen: v6e
topology: v6e:2x2x1
jax: 0.10.0
libtpu: 0.0.40
codegen_flags: <defaults>
</compile_context>

<pallas_src>
import jax
import jax.numpy as jnp
import numpy as np
from jax.experimental import pallas as pl
from jax.experimental.pallas import tpu as pltpu


# ---------------------------------------------------------------------------
# Fused bidirectional LSTM layer kernel (time-chunked, hoisted input matmul)
# ---------------------------------------------------------------------------
def _pick_time_chunk(T, target=16):
    """Largest chunk in {target, 8, 4, 2, 1} that divides T."""
    for c in (target, 8, 4, 2, 1):
        if c <= T and T % c == 0:
            return c
    return 1


def _make_bilstm_kernel(num_x, hidden, batch, time_chunk):
    """Fused fwd+bwd LSTM layer kernel.

    The layer input is `num_x` flat (Tc*B, D_k) bf16 pieces whose feature
    concat is the logical input (1 piece for the embedding layer, 2 pieces --
    prev out_f, prev out_b -- for deeper layers).  Each piece is passed twice:
    once fwd-time-ordered and once reverse-time-ordered (for the bwd
    direction).  Big invariant weights arrive as HBM (ANY) refs and are DMA'd
    once into VMEM scratch at the first grid step.
    """
    H, B, Tc = hidden, batch, time_chunk
    G = 4 * H
    TcB = Tc * B

    def kernel(*args):
        n = num_x
        i = 0
        xf = args[i:i + n]; i += n            # fwd-ordered input chunks (TcB, D_k)
        xb = args[i:i + n]; i += n            # reverse-ordered input chunks
        wih_f_hbm = args[i:i + n]; i += n     # (D_k, 4H) bf16, HBM
        whh_f_hbm, b_f = args[i], args[i + 1]; i += 2
        wih_b_hbm = args[i:i + n]; i += n
        whh_b_hbm, b_b = args[i], args[i + 1]; i += 2
        h0f, c0f, h0b, c0b = args[i:i + 4]; i += 4
        outf, outb, hTf, hTb, cTf, cTb = args[i:i + 6]; i += 6
        hf_sc, cf_sc, hb_sc, cb_sc = args[i:i + 4]; i += 4
        gf_sc, gb_sc = args[i:i + 2]; i += 2          # (TcB, 4H) f32 gate buffers
        wih_f_v = args[i:i + n]; i += n               # VMEM weight residency
        whh_f_v = args[i]; i += 1
        wih_b_v = args[i:i + n]; i += n
        whh_b_v = args[i]; i += 1
        sem = args[i]

        t = pl.program_id(0)
        nt = pl.num_programs(0)

        @pl.when(t == 0)
        def _():
            # Single-buffered weight residency: DMA each invariant weight from
            # HBM into VMEM scratch exactly once (no double-buffered BlockSpec).
            srcs = list(wih_f_hbm) + [whh_f_hbm] + list(wih_b_hbm) + [whh_b_hbm]
            dsts = list(wih_f_v) + [whh_f_v] + list(wih_b_v) + [whh_b_v]
            copies = [pltpu.make_async_copy(s, d, sem.at[k])
                      for k, (s, d) in enumerate(zip(srcs, dsts))]
            for cp in copies:
                cp.start()
            hf_sc[...] = h0f[...]
            cf_sc[...] = c0f[...]
            hb_sc[...] = h0b[...]
            cb_sc[...] = c0b[...]
            for cp in copies:
                cp.wait()

        # ---- Hoisted input projection: one big MXU matmul per direction per
        # chunk (M = Tc*B instead of B), f32 accumulation, bias added once.
        gf = jnp.dot(xf[0][...].astype(jnp.bfloat16), wih_f_v[0][...],
                     preferred_element_type=jnp.float32)
        gb = jnp.dot(xb[0][...].astype(jnp.bfloat16), wih_b_v[0][...],
                     preferred_element_type=jnp.float32)
        for k in range(1, n):
            gf = gf + jnp.dot(xf[k][...].astype(jnp.bfloat16), wih_f_v[k][...],
                              preferred_element_type=jnp.float32)
            gb = gb + jnp.dot(xb[k][...].astype(jnp.bfloat16), wih_b_v[k][...],
                              preferred_element_type=jnp.float32)
        gf_sc[...] = gf + b_f[...]     # single bias broadcast per chunk
        gb_sc[...] = gb + b_b[...]

        h_f, c_f = hf_sc[...], cf_sc[...]
        h_b, c_b = hb_sc[...], cb_sc[...]

        def cell(g_in, h, c, whh_ref):
            # Only the small recurrent matmul remains on the serial chain;
            # W_hh is read at the dot site (fed from VMEM, not hoisted values).
            gates = g_in + jnp.dot(h.astype(jnp.bfloat16), whh_ref[...],
                                   preferred_element_type=jnp.float32)
            i_g = jax.nn.sigmoid(gates[:, 0 * H:1 * H])
            f_g = jax.nn.sigmoid(gates[:, 1 * H:2 * H])
            g_g = jnp.tanh(gates[:, 2 * H:3 * H])
            o_g = jax.nn.sigmoid(gates[:, 3 * H:4 * H])
            c_new = f_g * c + i_g * g_g
            h_new = o_g * jnp.tanh(c_new)
            return h_new, c_new

        # Statically unrolled inner time loop over the chunk: all VMEM accesses
        # use static indices, straight-line code for the scheduler.
        for s in range(Tc):
            h_f, c_f = cell(gf_sc[pl.ds(s * B, B), :], h_f, c_f, whh_f_v)
            outf[s] = h_f.astype(jnp.bfloat16)
            sb = Tc - 1 - s                    # bwd walks its chunk back-to-front
            h_b, c_b = cell(gb_sc[pl.ds(sb * B, B), :], h_b, c_b, whh_b_v)
            outb[sb] = h_b.astype(jnp.bfloat16)   # written in natural time order

        hf_sc[...] = h_f
        cf_sc[...] = c_f
        hb_sc[...] = h_b
        cb_sc[...] = c_b

        # Both directions finish on the last grid step (bwd ends at time 0).
        @pl.when(t == nt - 1)
        def _():
            hTf[...] = h_f
            hTb[...] = h_b
            cTf[...] = c_f
            cTb[...] = c_b

    return kernel


def bilstm_layer(xs2d, wih_f_parts, whh_f, b_f, wih_b_parts, whh_b, b_b,
                 h0f, c0f, h0b, c0b, *, T, time_chunk=16):
    """One fused bidirectional LSTM layer.

    xs2d: list of flat row-major (T*Bp, D_k) bf16 arrays (row = t*Bp + b) whose
    feature concat is the layer input.  Returns out_f, out_b (T, Bp, H) bf16
    and f32 final states hT_f, hT_b, cT_f, cT_b.
    """
    Bp, H = h0f.shape
    n = len(xs2d)
    Tc = _pick_time_chunk(T, time_chunk)
    NT = T // Tc
    TcB = Tc * Bp
    dims = [x.shape[-1] for x in xs2d]

    fwd_x_spec = lambda d: pl.BlockSpec((TcB, d), lambda t: (t, 0))
    bwd_x_spec = lambda d: pl.BlockSpec((TcB, d), lambda t: (NT - 1 - t, 0))
    const2 = lambda shape: pl.BlockSpec(tuple(shape), lambda t: (0, 0))
    any_spec = pl.BlockSpec(memory_space=pl.ANY)   # raw HBM ref, manual DMA

    in_specs = ([fwd_x_spec(d) for d in dims]
                + [bwd_x_spec(d) for d in dims]
                + [any_spec] * n + [any_spec, const2(b_f.shape)]
                + [any_spec] * n + [any_spec, const2(b_b.shape)]
                + [const2((Bp, H))] * 4)

    out_shapes = (
        jax.ShapeDtypeStruct((T, Bp, H), jnp.bfloat16),   # out_f (bf16 activations)
        jax.ShapeDtypeStruct((T, Bp, H), jnp.bfloat16),   # out_b (natural time order)
        jax.ShapeDtypeStruct((Bp, H), jnp.float32),       # h_T fwd
        jax.ShapeDtypeStruct((Bp, H), jnp.float32),       # h_T bwd
        jax.ShapeDtypeStruct((Bp, H), jnp.float32),       # c_T fwd
        jax.ShapeDtypeStruct((Bp, H), jnp.float32),       # c_T bwd
    )
    out_specs = (
        pl.BlockSpec((Tc, Bp, H), lambda t: (t, 0, 0)),
        pl.BlockSpec((Tc, Bp, H), lambda t: (NT - 1 - t, 0, 0)),
        pl.BlockSpec((Bp, H), lambda t: (0, 0)),
        pl.BlockSpec((Bp, H), lambda t: (0, 0)),
        pl.BlockSpec((Bp, H), lambda t: (0, 0)),
        pl.BlockSpec((Bp, H), lambda t: (0, 0)),
    )

    scratch = ([pltpu.VMEM((Bp, H), jnp.float32)] * 4               # h/c state
               + [pltpu.VMEM((TcB, 4 * H), jnp.float32)] * 2        # gate buffers
               + [pltpu.VMEM(tuple(w.shape), jnp.bfloat16) for w in wih_f_parts]
               + [pltpu.VMEM(tuple(whh_f.shape), jnp.bfloat16)]
               + [pltpu.VMEM(tuple(w.shape), jnp.bfloat16) for w in wih_b_parts]
               + [pltpu.VMEM(tuple(whh_b.shape), jnp.bfloat16)]
               + [pltpu.SemaphoreType.DMA((2 * n + 2,))])

    kernel = _make_bilstm_kernel(n, H, Bp, Tc)
    return pl.pallas_call(
        kernel,
        out_shape=out_shapes,
        grid_spec=pltpu.PrefetchScalarGridSpec(
            num_scalar_prefetch=0,
            grid=(NT,),
            in_specs=in_specs,
            out_specs=out_specs,
            scratch_shapes=scratch,
        ),
        compiler_params=pltpu.CompilerParams(
            dimension_semantics=("arbitrary",),          # sequential recurrence
            # Size per generation at real model sizes; 64 MiB fits v5e/v6e/v7x.
            vmem_limit_bytes=64 * 1024 * 1024),
    )(*xs2d, *xs2d,
      *wih_f_parts, whh_f, b_f,
      *wih_b_parts, whh_b, b_b,
      h0f, c0f, h0b, c0b)


# ---------------------------------------------------------------------------
# Output projection kernel: single fused (N, 2H) @ (2H, V) dot per tile
# ---------------------------------------------------------------------------
def _linear_kernel(r_ref, w_ref, b_ref, o_ref):
    o_ref[...] = jnp.dot(r_ref[...], w_ref[...],
                         preferred_element_type=jnp.float32) + b_ref[...]


def linear_proj(rows, w_t, b2d, *, tile_n=128, tile_v=2048):
    """rows (N, 2H) bf16 @ w_t (2H, V) bf16 + b2d (1, V) -> (N, V) f32."""
    N, H2 = rows.shape
    V = w_t.shape[-1]
    n_pad = (-N) % 8                          # pad gathered rows to a sublane multiple
    if n_pad:
        rows = jnp.pad(rows, ((0, n_pad), (0, 0)))
    Np = N + n_pad
    tn = tile_n if (Np % tile_n == 0) else Np
    # NOTE: production vocab sizes should satisfy V % 128 == 0 for lane-dense
    # (unmasked) stores; otherwise we fall back to a full-V block.
    tv = tile_v if (V % tile_v == 0) else V
    grid = (Np // tn, V // tv)

    out = pl.pallas_call(
        _linear_kernel,
        out_shape=jax.ShapeDtypeStruct((Np, V), jnp.float32),
        grid_spec=pltpu.PrefetchScalarGridSpec(
            num_scalar_prefetch=0,
            grid=grid,
            in_specs=[
                pl.BlockSpec((tn, H2), lambda i, j: (i, 0)),
                pl.BlockSpec((H2, tv), lambda i, j: (0, j)),
                pl.BlockSpec((1, tv), lambda i, j: (0, j)),
            ],
            out_specs=pl.BlockSpec((tn, tv), lambda i, j: (i, j)),
        ),
        compiler_params=pltpu.CompilerParams(
            dimension_semantics=("parallel", "parallel"),
            vmem_limit_bytes=64 * 1024 * 1024),
    )(rows, w_t, b2d)
    return out[:N]


# ---------------------------------------------------------------------------
# Model: parameter setup + forward (glue in plain JAX, hot path in Pallas)
# ---------------------------------------------------------------------------
def init_params(key, vocab_size, embed_size, hidden_size, num_layers):
    k = 1.0 / np.sqrt(hidden_size)
    params = {}
    key, sub = jax.random.split(key)
    params["embed"] = jax.random.normal(sub, (vocab_size, embed_size), jnp.float32)

    lstm = []
    for l in range(num_layers):
        in_size = embed_size if l == 0 else 2 * hidden_size
        layer = {}
        for direction in ("fwd", "bwd"):
            key, k1, k2, k3, k4 = jax.random.split(key, 5)
            w_ih = jax.random.uniform(k1, (4 * hidden_size, in_size),
                                      jnp.float32, -k, k)
            w_hh = jax.random.uniform(k2, (4 * hidden_size, hidden_size),
                                      jnp.float32, -k, k)
            b_ih = jax.random.uniform(k3, (4 * hidden_size,), jnp.float32, -k, k)
            b_hh = jax.random.uniform(k4, (4 * hidden_size,), jnp.float32, -k, k)
            wih_t = w_ih.T.astype(jnp.bfloat16)            # (IN, 4H)
            if l == 0:
                parts = [wih_t]                            # single (E, 4H) piece
            else:
                parts = [wih_t[:hidden_size],              # rows seen by prev out_f
                         wih_t[hidden_size:]]              # rows seen by prev out_b
            layer[direction] = {
                "wih_t_parts": parts,                      # bf16
                "whh_t": w_hh.T.astype(jnp.bfloat16),      # (H, 4H) bf16
                "b": (b_ih + b_hh)[None, :],               # (1, 4H) f32
            }
        lstm.append(layer)
    params["lstm"] = lstm

    key, k1, k2 = jax.random.split(key, 3)
    w_lin = jax.random.uniform(k1, (vocab_size, 2 * hidden_size),
                               jnp.float32, -k, k)
    b_lin = jax.random.uniform(k2, (vocab_size,), jnp.float32, -k, k)
    params["linear_w_t"] = w_lin.T.astype(jnp.bfloat16)    # (2H, V) bf16
    params["linear_b"] = b_lin[None, :]                    # (1, V) f32
    return params


def rnnlm_bilstm_forward(params, x_ids, h, epoch, out_inds):
    """Mirror of RNNLM_bilstm.forward. `h` is the (h0, c0) tuple; `epoch` unused."""
    del epoch
    h0, c0 = h
    B, T = x_ids.shape
    H = h0.shape[-1]
    num_layers = len(params["lstm"])
    Bp = ((max(B, 8) + 7) // 8) * 8            # sublane-dense batch tiles

    # TODO(synk): embedding lookup is an irregular gather; kept as an XLA take()
    # rather than an in-kernel DMA gather.
    emb = jnp.take(params["embed"], x_ids, axis=0)                 # (B, T, E)
    x_tm = jnp.transpose(emb, (1, 0, 2)).astype(jnp.bfloat16)      # (T, B, E) bf16
    pad_b = Bp - B
    if pad_b:
        x_tm = jnp.pad(x_tm, ((0, 0), (0, pad_b), (0, 0)))
        h0 = jnp.pad(h0, ((0, 0), (0, pad_b), (0, 0)))
        c0 = jnp.pad(c0, ((0, 0), (0, pad_b), (0, 0)))

    xs = [x_tm.reshape(T * Bp, -1)]            # flat row-major (t, b) input pieces
    h_out, c_out = [], []
    out_f3 = out_b3 = None
    for l in range(num_layers):
        fwd = params["lstm"][l]["fwd"]
        bwd = params["lstm"][l]["bwd"]
        out_f3, out_b3, hTf, hTb, cTf, cTb = bilstm_layer(
            xs,
            fwd["wih_t_parts"], fwd["whh_t"], fwd["b"],
            bwd["wih_t_parts"], bwd["whh_t"], bwd["b"],
            h0[2 * l], c0[2 * l], h0[2 * l + 1], c0[2 * l + 1],
            T=T)
        h_out += [hTf[:B], hTb[:B]]
        c_out += [cTf[:B], cTb[:B]]
        # next layer input: bf16 pieces, no concat / no reversal, free reshapes
        xs = [out_f3.reshape(T * Bp, H), out_b3.reshape(T * Bp, H)]

    # TODO(synk): out_inds row gather stays in XLA (irregular indices, tiny N).
    inds = jnp.asarray(out_inds, dtype=jnp.int32)
    t_idx = inds % T                # PyTorch out.reshape(B*T, 2H) row i -> (b=i//T, t=i%T)
    b_idx = inds // T
    rows_f = out_f3[t_idx, b_idx]   # (N, H) bf16
    rows_b = out_b3[t_idx, b_idx]   # (N, H) bf16
    rows = jnp.concatenate([rows_f, rows_b], axis=-1)   # (N, 2H) bf16, tiny N
    logits = linear_proj(rows, params["linear_w_t"], params["linear_b"])
    return logits, (jnp.stack(h_out), jnp.stack(c_out))


# ---------------------------------------------------------------------------
# Pure-JAX reference (for correctness check) -- uses the same stored weights
# (upcast to f32), so the differences vs. the kernel are bf16 rounding of the
# MXU inputs / stored activations.
# ---------------------------------------------------------------------------
def _ref_lstm_dir(x_tm, wih_t, whh_t, b, h0, c0):
    def step(carry, x_t):
        hh, cc = carry
        gates = x_t @ wih_t + hh @ whh_t + b
        i, f, g, o = jnp.split(gates, 4, axis=-1)
        i, f, o = jax.nn.sigmoid(i), jax.nn.sigmoid(f), jax.nn.sigmoid(o)
        g = jnp.tanh(g)
        cc = f * cc + i * g
        hh = o * jnp.tanh(cc)
        return (hh, cc), hh
    (hT, cT), outs = jax.lax.scan(step, (h0, c0), x_tm)
    return outs, hT, cT


def ref_forward(params, x_ids, h, epoch, out_inds):
    del epoch
    h0, c0 = h
    B, T = x_ids.shape
    H = h0.shape[-1]
    layer_in = jnp.transpose(jnp.take(params["embed"], x_ids, axis=0), (1, 0, 2))
    h_out, c_out = [], []
    for l in range(len(params["lstm"])):
        def full_w(dirp):
            wih_t = jnp.concatenate([p.astype(jnp.float32)
                                     for p in dirp["wih_t_parts"]], axis=0)
            return wih_t, dirp["whh_t"].astype(jnp.float32), dirp["b"]
        fwd, bwd = params["lstm"][l]["fwd"], params["lstm"][l]["bwd"]
        wf, uf, bf = full_w(fwd)
        wb, ub, bb = full_w(bwd)
        of, hf, cf = _ref_lstm_dir(layer_in, wf, uf, bf, h0[2 * l], c0[2 * l])
        ob, hb, cb = _ref_lstm_dir(layer_in[::-1], wb, ub, bb,
                                   h0[2 * l + 1], c0[2 * l + 1])
        layer_in = jnp.concatenate([of, ob[::-1]], axis=-1)
        h_out += [hf, hb]
        c_out += [cf, cb]
    out_bt = jnp.transpose(layer_in, (1, 0, 2)).reshape(B * T, 2 * H)
    rows = out_bt[jnp.asarray(out_inds, dtype=jnp.int32)]
    w_t = params["linear_w_t"].astype(jnp.float32)
    logits = rows @ w_t + params["linear_b"]
    return logits, (jnp.stack(h_out), jnp.stack(c_out))


# ---------------------------------------------------------------------------
if __name__ == "__main__":
    VOCAB, EMBED, HIDDEN, LAYERS = 64, 16, 32, 2
    B, T = 2, 8

    key = jax.random.PRNGKey(0)
    key, kp, kx, kh, kc = jax.random.split(key, 5)

    params = init_params(kp, VOCAB, EMBED, HIDDEN, LAYERS)
    x_ids = jax.random.randint(kx, (B, T), 0, VOCAB, dtype=jnp.int32)
    h0 = jax.random.normal(kh, (2 * LAYERS, B, HIDDEN), jnp.float32)
    c0 = jax.random.normal(kc, (2 * LAYERS, B, HIDDEN), jnp.float32)
    out_inds = [0, 3, 5, 10, 15]          # indices into the B*T flattened outputs
    epoch = 0                             # unused by forward (parity with PyTorch)

    logits, (hT, cT) = rnnlm_bilstm_forward(params, x_ids, (h0, c0), epoch, out_inds)
    jax.block_until_ready((logits, hT, cT))

    ref_logits, (ref_h, ref_c) = ref_forward(params, x_ids, (h0, c0), epoch, out_inds)
    # bf16 MXU inputs / bf16 stored activations -> loosened tolerances vs f32 ref.
    np.testing.assert_allclose(np.asarray(logits), np.asarray(ref_logits),
                               rtol=2e-2, atol=2e-2)
    np.testing.assert_allclose(np.asarray(hT), np.asarray(ref_h),
                               rtol=2e-2, atol=2e-2)
    np.testing.assert_allclose(np.asarray(cT), np.asarray(ref_c),
                               rtol=2e-2, atol=2e-2)

    assert logits.shape == (len(out_inds), VOCAB)
    assert hT.shape == (2 * LAYERS, B, HIDDEN) and cT.shape == (2 * LAYERS, B, HIDDEN)
    print("KERNEL_OK")
</pallas_src>

<mosaic_0001>
module attributes {stable_mosaic.version = 11 : i64} {
  func.func @kernel(%arg0: i32, %arg1: memref<64x16xbf16, #tpu.memory_space<vmem>>, %arg2: memref<64x16xbf16, #tpu.memory_space<vmem>>, %arg3: memref<16x128xbf16, #tpu.memory_space<any>>, %arg4: memref<32x128xbf16, #tpu.memory_space<any>>, %arg5: memref<1x128xf32, #tpu.memory_space<vmem>>, %arg6: memref<16x128xbf16, #tpu.memory_space<any>>, %arg7: memref<32x128xbf16, #tpu.memory_space<any>>, %arg8: memref<1x128xf32, #tpu.memory_space<vmem>>, %arg9: memref<8x32xf32, #tpu.memory_space<vmem>>, %arg10: memref<8x32xf32, #tpu.memory_space<vmem>>, %arg11: memref<8x32xf32, #tpu.memory_space<vmem>>, %arg12: memref<8x32xf32, #tpu.memory_space<vmem>>, %arg13: memref<8x8x32xbf16, #tpu.memory_space<vmem>>, %arg14: memref<8x8x32xbf16, #tpu.memory_space<vmem>>, %arg15: memref<8x32xf32, #tpu.memory_space<vmem>>, %arg16: memref<8x32xf32, #tpu.memory_space<vmem>>, %arg17: memref<8x32xf32, #tpu.memory_space<vmem>>, %arg18: memref<8x32xf32, #tpu.memory_space<vmem>>, %arg19: memref<8x32xf32, #tpu.memory_space<vmem>>, %arg20: memref<8x32xf32, #tpu.memory_space<vmem>>, %arg21: memref<8x32xf32, #tpu.memory_space<vmem>>, %arg22: memref<8x32xf32, #tpu.memory_space<vmem>>, %arg23: memref<64x128xf32, #tpu.memory_space<vmem>>, %arg24: memref<64x128xf32, #tpu.memory_space<vmem>>, %arg25: memref<16x128xbf16, #tpu.memory_space<vmem>>, %arg26: memref<32x128xbf16, #tpu.memory_space<vmem>>, %arg27: memref<16x128xbf16, #tpu.memory_space<vmem>>, %arg28: memref<32x128xbf16, #tpu.memory_space<vmem>>, %arg29: memref<4x!tpu.dma_semaphore, #tpu.memory_space<semaphore_mem>>) attributes {dimension_semantics = [#tpu.dimension_semantics<arbitrary>], iteration_bounds = array<i64: 1>, scalar_prefetch = 0 : i64, scratch_operands = 11 : i64, tpu.core_type = #tpu.core_type<tc>, window_params = [{transform_indices = @transform_0, window_bounds = array<i64: 64, 16>}, {transform_indices = @transform_1, window_bounds = array<i64: 64, 16>}, {}, {}, {pipeline_mode = #tpu.pipeline_mode<synchronous>, transform_indices = @transform_4, window_bounds = array<i64: 1, 128>}, {}, {}, {pipeline_mode = #tpu.pipeline_mode<synchronous>, transform_indices = @transform_7, window_bounds = array<i64: 1, 128>}, {pipeline_mode = #tpu.pipeline_mode<synchronous>, transform_indices = @transform_8, window_bounds = array<i64: 8, 32>}, {pipeline_mode = #tpu.pipeline_mode<synchronous>, transform_indices = @transform_9, window_bounds = array<i64: 8, 32>}, {pipeline_mode = #tpu.pipeline_mode<synchronous>, transform_indices = @transform_10, window_bounds = array<i64: 8, 32>}, {pipeline_mode = #tpu.pipeline_mode<synchronous>, transform_indices = @transform_11, window_bounds = array<i64: 8, 32>}, {transform_indices = @transform_12, window_bounds = array<i64: 8, 8, 32>}, {transform_indices = @transform_13, window_bounds = array<i64: 8, 8, 32>}, {pipeline_mode = #tpu.pipeline_mode<synchronous>, transform_indices = @transform_14, window_bounds = array<i64: 8, 32>}, {pipeline_mode = #tpu.pipeline_mode<synchronous>, transform_indices = @transform_15, window_bounds = array<i64: 8, 32>}, {pipeline_mode = #tpu.pipeline_mode<synchronous>, transform_indices = @transform_16, window_bounds = array<i64: 8, 32>}, {pipeline_mode = #tpu.pipeline_mode<synchronous>, transform_indices = @transform_17, window_bounds = array<i64: 8, 32>}]} {
    %c0_i32 = arith.constant 0 : i32
    %0 = arith.cmpi eq, %arg0, %c0_i32 : i32
    %1 = arith.extui %0 : i1 to i32
    %c0_i32_0 = arith.constant 0 : i32
    %2 = arith.cmpi ne, %1, %c0_i32_0 : i32
    scf.if %2 {
      %c0_i32_197 = arith.constant 0 : i32
      %572 = tpu.memref_slice %arg29[%c0_i32_197] : memref<4x!tpu.dma_semaphore, #tpu.memory_space<semaphore_mem>> -> memref<1x!tpu.dma_semaphore, #tpu.memory_space<semaphore_mem>>
      %573 = tpu.memref_squeeze %572 : memref<1x!tpu.dma_semaphore, #tpu.memory_space<semaphore_mem>> -> memref<!tpu.dma_semaphore, #tpu.memory_space<semaphore_mem>>
      tpu.enqueue_dma source(%arg3 : memref<16x128xbf16, #tpu.memory_space<any>>) target(%arg25 : memref<16x128xbf16, #tpu.memory_space<vmem>>) target_semaphore(%573 : memref<!tpu.dma_semaphore, #tpu.memory_space<semaphore_mem>>)
      %c1_i32 = arith.constant 1 : i32
      %574 = tpu.memref_slice %arg29[%c1_i32] : memref<4x!tpu.dma_semaphore, #tpu.memory_space<semaphore_mem>> -> memref<1x!tpu.dma_semaphore, #tpu.memory_space<semaphore_mem>>
      %575 = tpu.memref_squeeze %574 : memref<1x!tpu.dma_semaphore, #tpu.memory_space<semaphore_mem>> -> memref<!tpu.dma_semaphore, #tpu.memory_space<semaphore_mem>>
      tpu.enqueue_dma source(%arg4 : memref<32x128xbf16, #tpu.memory_space<any>>) target(%arg26 : memref<32x128xbf16, #tpu.memory_space<vmem>>) target_semaphore(%575 : memref<!tpu.dma_semaphore, #tpu.memory_space<semaphore_mem>>)
      %c2_i32 = arith.constant 2 : i32
      %576 = tpu.memref_slice %arg29[%c2_i32] : memref<4x!tpu.dma_semaphore, #tpu.memory_space<semaphore_mem>> -> memref<1x!tpu.dma_semaphore, #tpu.memory_space<semaphore_mem>>
      %577 = tpu.memref_squeeze %576 : memref<1x!tpu.dma_semaphore, #tpu.memory_space<semaphore_mem>> -> memref<!tpu.dma_semaphore, #tpu.memory_space<semaphore_mem>>
      tpu.enqueue_dma source(%arg6 : memref<16x128xbf16, #tpu.memory_space<any>>) target(%arg27 : memref<16x128xbf16, #tpu.memory_space<vmem>>) target_semaphore(%577 : memref<!tpu.dma_semaphore, #tpu.memory_space<semaphore_mem>>)
      %c3_i32 = arith.constant 3 : i32
      %578 = tpu.memref_slice %arg29[%c3_i32] : memref<4x!tpu.dma_semaphore, #tpu.memory_space<semaphore_mem>> -> memref<1x!tpu.dma_semaphore, #tpu.memory_space<semaphore_mem>>
      %579 = tpu.memref_squeeze %578 : memref<1x!tpu.dma_semaphore, #tpu.memory_space<semaphore_mem>> -> memref<!tpu.dma_semaphore, #tpu.memory_space<semaphore_mem>>
      tpu.enqueue_dma source(%arg7 : memref<32x128xbf16, #tpu.memory_space<any>>) target(%arg28 : memref<32x128xbf16, #tpu.memory_space<vmem>>) target_semaphore(%579 : memref<!tpu.dma_semaphore, #tpu.memory_space<semaphore_mem>>)
      %c0_198 = arith.constant 0 : index
      %c0_199 = arith.constant 0 : index
      %580 = vector.load %arg9[%c0_198, %c0_199] : memref<8x32xf32, #tpu.memory_space<vmem>>, vector<8x32xf32>
      %c0_200 = arith.constant 0 : index
      %c0_201 = arith.constant 0 : index
      %581 = vector.load %arg19[%c0_200, %c0_201] : memref<8x32xf32, #tpu.memory_space<vmem>>, vector<8x32xf32>
      tpu.vector_store %arg19[%c0_200, %c0_201], %580 {strides = array<i32>} : memref<8x32xf32, #tpu.memory_space<vmem>>, vector<8x32xf32>,
      %c0_202 = arith.constant 0 : index
      %c0_203 = arith.constant 0 : index
      %582 = vector.load %arg10[%c0_202, %c0_203] : memref<8x32xf32, #tpu.memory_space<vmem>>, vector<8x32xf32>
      %c0_204 = arith.constant 0 : index
      %c0_205 = arith.constant 0 : index
      %583 = vector.load %arg20[%c0_204, %c0_205] : memref<8x32xf32, #tpu.memory_space<vmem>>, vector<8x32xf32>
      tpu.vector_store %arg20[%c0_204, %c0_205], %582 {strides = array<i32>} : memref<8x32xf32, #tpu.memory_space<vmem>>, vector<8x32xf32>,
      %c0_206 = arith.constant 0 : index
      %c0_207 = arith.constant 0 : index
      %584 = vector.load %arg11[%c0_206, %c0_207] : memref<8x32xf32, #tpu.memory_space<vmem>>, vector<8x32xf32>
      %c0_208 = arith.constant 0 : index
      %c0_209 = arith.constant 0 : index
      %585 = vector.load %arg21[%c0_208, %c0_209] : memref<8x32xf32, #tpu.memory_space<vmem>>, vector<8x32xf32>
      tpu.vector_store %arg21[%c0_208, %c0_209], %584 {strides = array<i32>} : memref<8x32xf32, #tpu.memory_space<vmem>>, vector<8x32xf32>,
      %c0_210 = arith.constant 0 : index
      %c0_211 = arith.constant 0 : index
      %586 = vector.load %arg12[%c0_210, %c0_211] : memref<8x32xf32, #tpu.memory_space<vmem>>, vector<8x32xf32>
      %c0_212 = arith.constant 0 : index
      %c0_213 = arith.constant 0 : index
      %587 = vector.load %arg22[%c0_212, %c0_213] : memref<8x32xf32, #tpu.memory_space<vmem>>, vector<8x32xf32>
      tpu.vector_store %arg22[%c0_212, %c0_213], %586 {strides = array<i32>} : memref<8x32xf32, #tpu.memory_space<vmem>>, vector<8x32xf32>,
      %c0_i32_214 = arith.constant 0 : i32
      %588 = tpu.memref_slice %arg29[%c0_i32_214] : memref<4x!tpu.dma_semaphore, #tpu.memory_space<semaphore_mem>> -> memref<1x!tpu.dma_semaphore, #tpu.memory_space<semaphore_mem>>
      %589 = tpu.memref_squeeze %588 : memref<1x!tpu.dma_semaphore, #tpu.memory_space<semaphore_mem>> -> memref<!tpu.dma_semaphore, #tpu.memory_space<semaphore_mem>>
      tpu.wait_dma2 semaphore(%589 : memref<!tpu.dma_semaphore, #tpu.memory_space<semaphore_mem>>) src(%arg3 : memref<16x128xbf16, #tpu.memory_space<any>>) dst(%arg25 : memref<16x128xbf16, #tpu.memory_space<vmem>>)
      %c1_i32_215 = arith.constant 1 : i32
      %590 = tpu.memref_slice %arg29[%c1_i32_215] : memref<4x!tpu.dma_semaphore, #tpu.memory_space<semaphore_mem>> -> memref<1x!tpu.dma_semaphore, #tpu.memory_space<semaphore_mem>>
      %591 = tpu.memref_squeeze %590 : memref<1x!tpu.dma_semaphore, #tpu.memory_space<semaphore_mem>> -> memref<!tpu.dma_semaphore, #tpu.memory_space<semaphore_mem>>
      tpu.wait_dma2 semaphore(%591 : memref<!tpu.dma_semaphore, #tpu.memory_space<semaphore_mem>>) src(%arg4 : memref<32x128xbf16, #tpu.memory_space<any>>) dst(%arg26 : memref<32x128xbf16, #tpu.memory_space<vmem>>)
      %c2_i32_216 = arith.constant 2 : i32
      %592 = tpu.memref_slice %arg29[%c2_i32_216] : memref<4x!tpu.dma_semaphore, #tpu.memory_space<semaphore_mem>> -> memref<1x!tpu.dma_semaphore, #tpu.memory_space<semaphore_mem>>
      %593 = tpu.memref_squeeze %592 : memref<1x!tpu.dma_semaphore, #tpu.memory_space<semaphore_mem>> -> memref<!tpu.dma_semaphore, #tpu.memory_space<semaphore_mem>>
      tpu.wait_dma2 semaphore(%593 : memref<!tpu.dma_semaphore, #tpu.memory_space<semaphore_mem>>) src(%arg6 : memref<16x128xbf16, #tpu.memory_space<any>>) dst(%arg27 : memref<16x128xbf16, #tpu.memory_space<vmem>>)
      %c3_i32_217 = arith.constant 3 : i32
      %594 = tpu.memref_slice %arg29[%c3_i32_217] : memref<4x!tpu.dma_semaphore, #tpu.memory_space<semaphore_mem>> -> memref<1x!tpu.dma_semaphore, #tpu.memory_space<semaphore_mem>>
      %595 = tpu.memref_squeeze %594 : memref<1x!tpu.dma_semaphore, #tpu.memory_space<semaphore_mem>> -> memref<!tpu.dma_semaphore, #tpu.memory_space<semaphore_mem>>
      tpu.wait_dma2 semaphore(%595 : memref<!tpu.dma_semaphore, #tpu.memory_space<semaphore_mem>>) src(%arg7 : memref<32x128xbf16, #tpu.memory_space<any>>) dst(%arg28 : memref<32x128xbf16, #tpu.memory_space<vmem>>)
    } else {
    }
    %c0 = arith.constant 0 : index
    %c0_1 = arith.constant 0 : index
    %3 = vector.load %arg1[%c0, %c0_1] : memref<64x16xbf16, #tpu.memory_space<vmem>>, vector<64x16xbf16>
    %c0_2 = arith.constant 0 : index
    %c0_3 = arith.constant 0 : index
    %4 = vector.load %arg25[%c0_2, %c0_3] : memref<16x128xbf16, #tpu.memory_space<vmem>>, vector<16x128xbf16>
    %cst = arith.constant dense<0.000000e+00> : vector<64x128xf32>
    %5 = tpu.matmul %3, %4, %cst {dimension_numbers = #tpu.dot_dimension_numbers<[1], [0], [0], [1], [0, 0, 1, 1], [], []>} : vector<64x16xbf16>, vector<16x128xbf16>, vector<64x128xf32> -> vector<64x128xf32>
    %c0_4 = arith.constant 0 : index
    %c0_5 = arith.constant 0 : index
    %6 = vector.load %arg2[%c0_4, %c0_5] : memref<64x16xbf16, #tpu.memory_space<vmem>>, vector<64x16xbf16>
    %c0_6 = arith.constant 0 : index
    %c0_7 = arith.constant 0 : index
    %7 = vector.load %arg27[%c0_6, %c0_7] : memref<16x128xbf16, #tpu.memory_space<vmem>>, vector<16x128xbf16>
    %cst_8 = arith.constant dense<0.000000e+00> : vector<64x128xf32>
    %8 = tpu.matmul %6, %7, %cst_8 {dimension_numbers = #tpu.dot_dimension_numbers<[1], [0], [0], [1], [0, 0, 1, 1], [], []>} : vector<64x16xbf16>, vector<16x128xbf16>, vector<64x128xf32> -> vector<64x128xf32>
    %c0_9 = arith.constant 0 : index
    %c0_10 = arith.constant 0 : index
    %9 = vector.load %arg5[%c0_9, %c0_10] : memref<1x128xf32, #tpu.memory_space<vmem>>, vector<1x128xf32>
    %10 = vector.broadcast %9 : vector<1x128xf32> to vector<64x128xf32>
    %11 = arith.addf %5, %10 : vector<64x128xf32>
    %c0_11 = arith.constant 0 : index
    %c0_12 = arith.constant 0 : index
    %12 = vector.load %arg23[%c0_11, %c0_12] : memref<64x128xf32, #tpu.memory_space<vmem>>, vector<64x128xf32>
    tpu.vector_store %arg23[%c0_11, %c0_12], %11 {strides = array<i32>} : memref<64x128xf32, #tpu.memory_space<vmem>>, vector<64x128xf32>,
    %c0_13 = arith.constant 0 : index
    %c0_14 = arith.constant 0 : index
    %13 = vector.load %arg8[%c0_13, %c0_14] : memref<1x128xf32, #tpu.memory_space<vmem>>, vector<1x128xf32>
    %14 = vector.broadcast %13 : vector<1x128xf32> to vector<64x128xf32>
    %15 = arith.addf %8, %14 : vector<64x128xf32>
    %c0_15 = arith.constant 0 : index
    %c0_16 = arith.constant 0 : index
    %16 = vector.load %arg24[%c0_15, %c0_16] : memref<64x128xf32, #tpu.memory_space<vmem>>, vector<64x128xf32>
    tpu.vector_store %arg24[%c0_15, %c0_16], %15 {strides = array<i32>} : memref<64x128xf32, #tpu.memory_space<vmem>>, vector<64x128xf32>,
    %c0_17 = arith.constant 0 : index
    %c0_18 = arith.constant 0 : index
    %17 = vector.load %arg19[%c0_17, %c0_18] : memref<8x32xf32, #tpu.memory_space<vmem>>, vector<8x32xf32>
    %c0_19 = arith.constant 0 : index
    %c0_20 = arith.constant 0 : index
    %18 = vector.load %arg20[%c0_19, %c0_20] : memref<8x32xf32, #tpu.memory_space<vmem>>, vector<8x32xf32>
    %c0_21 = arith.constant 0 : index
    %c0_22 = arith.constant 0 : index
    %19 = vector.load %arg21[%c0_21, %c0_22] : memref<8x32xf32, #tpu.memory_space<vmem>>, vector<8x32xf32>
    %c0_23 = arith.constant 0 : index
    %c0_24 = arith.constant 0 : index
    %20 = vector.load %arg22[%c0_23, %c0_24] : memref<8x32xf32, #tpu.memory_space<vmem>>, vector<8x32xf32>
    %c0_25 = arith.constant 0 : index
    %c0_26 = arith.constant 0 : index
    %21 = vector.load %arg23[%c0_25, %c0_26] : memref<64x128xf32, #tpu.memory_space<vmem>>, vector<8x128xf32>
    %22 = arith.truncf %17 : vector<8x32xf32> to vector<8x32xbf16>
    %c0_27 = arith.constant 0 : index
    %c0_28 = arith.constant 0 : index
    %23 = vector.load %arg26[%c0_27, %c0_28] : memref<32x128xbf16, #tpu.memory_space<vmem>>, vector<32x128xbf16>
    %cst_29 = arith.constant dense<0.000000e+00> : vector<8x128xf32>
    %24 = tpu.matmul %22, %23, %cst_29 {dimension_numbers = #tpu.dot_dimension_numbers<[1], [0], [0], [1], [0, 0, 1, 1], [], []>} : vector<8x32xbf16>, vector<32x128xbf16>, vector<8x128xf32> -> vector<8x128xf32>
    %25 = arith.addf %21, %24 : vector<8x128xf32>
    %26 = vector.extract_strided_slice %25 {offsets = [0, 0], sizes = [8, 32], strides = [1, 1]} : vector<8x128xf32> to vector<8x32xf32>
    %27 = arith.negf %26 : vector<8x32xf32>
    %28 = math.exp %27 : vector<8x32xf32>
    %cst_30 = arith.constant 1.000000e+00 : f32
    %29 = vector.broadcast %cst_30 : f32 to vector<8x32xf32>
    %30 = arith.addf %29, %28 : vector<8x32xf32>
    %31 = arith.divf %29, %30 : vector<8x32xf32>
    %32 = vector.extract_strided_slice %25 {offsets = [0, 32], sizes = [8, 32], strides = [1, 1]} : vector<8x128xf32> to vector<8x32xf32>
    %33 = arith.negf %32 : vector<8x32xf32>
    %34 = math.exp %33 : vector<8x32xf32>
    %cst_31 = arith.constant 1.000000e+00 : f32
    %35 = vector.broadcast %cst_31 : f32 to vector<8x32xf32>
    %36 = arith.addf %35, %34 : vector<8x32xf32>
    %37 = arith.divf %35, %36 : vector<8x32xf32>
    %38 = vector.extract_strided_slice %25 {offsets = [0, 64], sizes = [8, 32], strides = [1, 1]} : vector<8x128xf32> to vector<8x32xf32>
    %39 = math.tanh %38 : vector<8x32xf32>
    %40 = vector.extract_strided_slice %25 {offsets = [0, 96], sizes = [8, 32], strides = [1, 1]} : vector<8x128xf32> to vector<8x32xf32>
    %41 = arith.negf %40 : vector<8x32xf32>
    %42 = math.exp %41 : vector<8x32xf32>
    %cst_32 = arith.constant 1.000000e+00 : f32
    %43 = vector.broadcast %cst_32 : f32 to vector<8x32xf32>
    %44 = arith.addf %43, %42 : vector<8x32xf32>
    %45 = arith.divf %43, %44 : vector<8x32xf32>
    %46 = arith.mulf %37, %18 : vector<8x32xf32>
    %47 = arith.mulf %31, %39 : vector<8x32xf32>
    %48 = arith.addf %46, %47 : vector<8x32xf32>
    %49 = math.tanh %48 : vector<8x32xf32>
    %50 = arith.mulf %45, %49 : vector<8x32xf32>
    %51 = arith.truncf %50 : vector<8x32xf32> to vector<8x32xbf16>
    %c0_33 = arith.constant 0 : index
    %c0_34 = arith.constant 0 : index
    %c0_35 = arith.constant 0 : index
    %52 = vector.load %arg13[%c0_33, %c0_34, %c0_35] : memref<8x8x32xbf16, #tpu.memory_space<vmem>>, vector<1x8x32xbf16>
    %53 = vector.shape_cast %52 : vector<1x8x32xbf16> to vector<8x32xbf16>
    %54 = vector.shape_cast %51 : vector<8x32xbf16> to vector<1x8x32xbf16>
    tpu.vector_store %arg13[%c0_33, %c0_34, %c0_35], %54 {strides = array<i32>} : memref<8x8x32xbf16, #tpu.memory_space<vmem>>, vector<1x8x32xbf16>,
    %c56 = arith.constant 56 : index
    %c0_36 = arith.constant 0 : index
    %55 = vector.load %arg24[%c56, %c0_36] : memref<64x128xf32, #tpu.memory_space<vmem>>, vector<8x128xf32>
    %56 = arith.truncf %19 : vector<8x32xf32> to vector<8x32xbf16>
    %c0_37 = arith.constant 0 : index
    %c0_38 = arith.constant 0 : index
    %57 = vector.load %arg28[%c0_37, %c0_38] : memref<32x128xbf16, #tpu.memory_space<vmem>>, vector<32x128xbf16>
    %cst_39 = arith.constant dense<0.000000e+00> : vector<8x128xf32>
    %58 = tpu.matmul %56, %57, %cst_39 {dimension_numbers = #tpu.dot_dimension_numbers<[1], [0], [0], [1], [0, 0, 1, 1], [], []>} : vector<8x32xbf16>, vector<32x128xbf16>, vector<8x128xf32> -> vector<8x128xf32>
    %59 = arith.addf %55, %58 : vector<8x128xf32>
    %60 = vector.extract_strided_slice %59 {offsets = [0, 0], sizes = [8, 32], strides = [1, 1]} : vector<8x128xf32> to vector<8x32xf32>
    %61 = arith.negf %60 : vector<8x32xf32>
    %62 = math.exp %61 : vector<8x32xf32>
    %cst_40 = arith.constant 1.000000e+00 : f32
    %63 = vector.broadcast %cst_40 : f32 to vector<8x32xf32>
    %64 = arith.addf %63, %62 : vector<8x32xf32>
    %65 = arith.divf %63, %64 : vector<8x32xf32>
    %66 = vector.extract_strided_slice %59 {offsets = [0, 32], sizes = [8, 32], strides = [1, 1]} : vector<8x128xf32> to vector<8x32xf32>
    %67 = arith.negf %66 : vector<8x32xf32>
    %68 = math.exp %67 : vector<8x32xf32>
    %cst_41 = arith.constant 1.000000e+00 : f32
    %69 = vector.broadcast %cst_41 : f32 to vector<8x32xf32>
    %70 = arith.addf %69, %68 : vector<8x32xf32>
    %71 = arith.divf %69, %70 : vector<8x32xf32>
    %72 = vector.extract_strided_slice %59 {offsets = [0, 64], sizes = [8, 32], strides = [1, 1]} : vector<8x128xf32> to vector<8x32xf32>
    %73 = math.tanh %72 : vector<8x32xf32>
    %74 = vector.extract_strided_slice %59 {offsets = [0, 96], sizes = [8, 32], strides = [1, 1]} : vector<8x128xf32> to vector<8x32xf32>
    %75 = arith.negf %74 : vector<8x32xf32>
    %76 = math.exp %75 : vector<8x32xf32>
    %cst_42 = arith.constant 1.000000e+00 : f32
    %77 = vector.broadcast %cst_42 : f32 to vector<8x32xf32>
    %78 = arith.addf %77, %76 : vector<8x32xf32>
    %79 = arith.divf %77, %78 : vector<8x32xf32>
    %80 = arith.mulf %71, %20 : vector<8x32xf32>
    %81 = arith.mulf %65, %73 : vector<8x32xf32>
    %82 = arith.addf %80, %81 : vector<8x32xf32>
    %83 = math.tanh %82 : vector<8x32xf32>
    %84 = arith.mulf %79, %83 : vector<8x32xf32>
    %85 = arith.truncf %84 : vector<8x32xf32> to vector<8x32xbf16>
    %c7 = arith.constant 7 : index
    %c0_43 = arith.constant 0 : index
    %c0_44 = arith.constant 0 : index
    %86 = vector.load %arg14[%c7, %c0_43, %c0_44] : memref<8x8x32xbf16, #tpu.memory_space<vmem>>, vector<1x8x32xbf16>
    %87 = vector.shape_cast %86 : vector<1x8x32xbf16> to vector<8x32xbf16>
    %88 = vector.shape_cast %85 : vector<8x32xbf16> to vector<1x8x32xbf16>
    tpu.vector_store %arg14[%c7, %c0_43, %c0_44], %88 {strides = array<i32>} : memref<8x8x32xbf16, #tpu.memory_space<vmem>>, vector<1x8x32xbf16>,
    %c8 = arith.constant 8 : index
    %c0_45 = arith.constant 0 : index
    %89 = vector.load %arg23[%c8, %c0_45] : memref<64x128xf32, #tpu.memory_space<vmem>>, vector<8x128xf32>
    %90 = arith.truncf %50 : vector<8x32xf32> to vector<8x32xbf16>
    %c0_46 = arith.constant 0 : index
    %c0_47 = arith.constant 0 : index
    %91 = vector.load %arg26[%c0_46, %c0_47] : memref<32x128xbf16, #tpu.memory_space<vmem>>, vector<32x128xbf16>
    %cst_48 = arith.constant dense<0.000000e+00> : vector<8x128xf32>
    %92 = tpu.matmul %90, %91, %cst_48 {dimension_numbers = #tpu.dot_dimension_numbers<[1], [0], [0], [1], [0, 0, 1, 1], [], []>} : vector<8x32xbf16>, vector<32x128xbf16>, vector<8x128xf32> -> vector<8x128xf32>
    %93 = arith.addf %89, %92 : vector<8x128xf32>
    %94 = vector.extract_strided_slice %93 {offsets = [0, 0], sizes = [8, 32], strides = [1, 1]} : vector<8x128xf32> to vector<8x32xf32>
    %95 = arith.negf %94 : vector<8x32xf32>
    %96 = math.exp %95 : vector<8x32xf32>
    %cst_49 = arith.constant 1.000000e+00 : f32
    %97 = vector.broadcast %cst_49 : f32 to vector<8x32xf32>
    %98 = arith.addf %97, %96 : vector<8x32xf32>
    %99 = arith.divf %97, %98 : vector<8x32xf32>
    %100 = vector.extract_strided_slice %93 {offsets = [0, 32], sizes = [8, 32], strides = [1, 1]} : vector<8x128xf32> to vector<8x32xf32>
    %101 = arith.negf %100 : vector<8x32xf32>
    %102 = math.exp %101 : vector<8x32xf32>
    %cst_50 = arith.constant 1.000000e+00 : f32
    %103 = vector.broadcast %cst_50 : f32 to vector<8x32xf32>
    %104 = arith.addf %103, %102 : vector<8x32xf32>
    %105 = arith.divf %103, %104 : vector<8x32xf32>
    %106 = vector.extract_strided_slice %93 {offsets = [0, 64], sizes = [8, 32], strides = [1, 1]} : vector<8x128xf32> to vector<8x32xf32>
    %107 = math.tanh %106 : vector<8x32xf32>
    %108 = vector.extract_strided_slice %93 {offsets = [0, 96], sizes = [8, 32], strides = [1, 1]} : vector<8x128xf32> to vector<8x32xf32>
    %109 = arith.negf %108 : vector<8x32xf32>
    %110 = math.exp %109 : vector<8x32xf32>
    %cst_51 = arith.constant 1.000000e+00 : f32
    %111 = vector.broadcast %cst_51 : f32 to vector<8x32xf32>
    %112 = arith.addf %111, %110 : vector<8x32xf32>
    %113 = arith.divf %111, %112 : vector<8x32xf32>
    %114 = arith.mulf %105, %48 : vector<8x32xf32>
    %115 = arith.mulf %99, %107 : vector<8x32xf32>
    %116 = arith.addf %114, %115 : vector<8x32xf32>
    %117 = math.tanh %116 : vector<8x32xf32>
    %118 = arith.mulf %113, %117 : vector<8x32xf32>
    %119 = arith.truncf %118 : vector<8x32xf32> to vector<8x32xbf16>
    %c1 = arith.constant 1 : index
    %c0_52 = arith.constant 0 : index
    %c0_53 = arith.constant 0 : index
    %120 = vector.load %arg13[%c1, %c0_52, %c0_53] : memref<8x8x32xbf16, #tpu.memory_space<vmem>>, vector<1x8x32xbf16>
    %121 = vector.shape_cast %120 : vector<1x8x32xbf16> to vector<8x32xbf16>
    %122 = vector.shape_cast %119 : vector<8x32xbf16> to vector<1x8x32xbf16>
    tpu.vector_store %arg13[%c1, %c0_52, %c0_53], %122 {strides = array<i32>} : memref<8x8x32xbf16, #tpu.memory_space<vmem>>, vector<1x8x32xbf16>,
    %c48 = arith.constant 48 : index
    %c0_54 = arith.constant 0 : index
    %123 = vector.load %arg24[%c48, %c0_54] : memref<64x128xf32, #tpu.memory_space<vmem>>, vector<8x128xf32>
    %124 = arith.truncf %84 : vector<8x32xf32> to vector<8x32xbf16>
    %c0_55 = arith.constant 0 : index
    %c0_56 = arith.constant 0 : index
    %125 = vector.load %arg28[%c0_55, %c0_56] : memref<32x128xbf16, #tpu.memory_space<vmem>>, vector<32x128xbf16>
    %cst_57 = arith.constant dense<0.000000e+00> : vector<8x128xf32>
    %126 = tpu.matmul %124, %125, %cst_57 {dimension_numbers = #tpu.dot_dimension_numbers<[1], [0], [0], [1], [0, 0, 1, 1], [], []>} : vector<8x32xbf16>, vector<32x128xbf16>, vector<8x128xf32> -> vector<8x128xf32>
    %127 = arith.addf %123, %126 : vector<8x128xf32>
    %128 = vector.extract_strided_slice %127 {offsets = [0, 0], sizes = [8, 32], strides = [1, 1]} : vector<8x128xf32> to vector<8x32xf32>
    %129 = arith.negf %128 : vector<8x32xf32>
    %130 = math.exp %129 : vector<8x32xf32>
    %cst_58 = arith.constant 1.000000e+00 : f32
    %131 = vector.broadcast %cst_58 : f32 to vector<8x32xf32>
    %132 = arith.addf %131, %130 : vector<8x32xf32>
    %133 = arith.divf %131, %132 : vector<8x32xf32>
    %134 = vector.extract_strided_slice %127 {offsets = [0, 32], sizes = [8, 32], strides = [1, 1]} : vector<8x128xf32> to vector<8x32xf32>
    %135 = arith.negf %134 : vector<8x32xf32>
    %136 = math.exp %135 : vector<8x32xf32>
    %cst_59 = arith.constant 1.000000e+00 : f32
    %137 = vector.broadcast %cst_59 : f32 to vector<8x32xf32>
    %138 = arith.addf %137, %136 : vector<8x32xf32>
    %139 = arith.divf %137, %138 : vector<8x32xf32>
    %140 = vector.extract_strided_slice %127 {offsets = [0, 64], sizes = [8, 32], strides = [1, 1]} : vector<8x128xf32> to vector<8x32xf32>
    %141 = math.tanh %140 : vector<8x32xf32>
    %142 = vector.extract_strided_slice %127 {offsets = [0, 96], sizes = [8, 32], strides = [1, 1]} : vector<8x128xf32> to vector<8x32xf32>
    %143 = arith.negf %142 : vector<8x32xf32>
    %144 = math.exp %143 : vector<8x32xf32>
    %cst_60 = arith.constant 1.000000e+00 : f32
    %145 = vector.broadcast %cst_60 : f32 to vector<8x32xf32>
    %146 = arith.addf %145, %144 : vector<8x32xf32>
    %147 = arith.divf %145, %146 : vector<8x32xf32>
    %148 = arith.mulf %139, %82 : vector<8x32xf32>
    %149 = arith.mulf %133, %141 : vector<8x32xf32>
    %150 = arith.addf %148, %149 : vector<8x32xf32>
    %151 = math.tanh %150 : vector<8x32xf32>
    %152 = arith.mulf %147, %151 : vector<8x32xf32>
    %153 = arith.truncf %152 : vector<8x32xf32> to vector<8x32xbf16>
    %c6 = arith.constant 6 : index
    %c0_61 = arith.constant 0 : index
    %c0_62 = arith.constant 0 : index
    %154 = vector.load %arg14[%c6, %c0_61, %c0_62] : memref<8x8x32xbf16, #tpu.memory_space<vmem>>, vector<1x8x32xbf16>
    %155 = vector.shape_cast %154 : vector<1x8x32xbf16> to vector<8x32xbf16>
    %156 = vector.shape_cast %153 : vector<8x32xbf16> to vector<1x8x32xbf16>
    tpu.vector_store %arg14[%c6, %c0_61, %c0_62], %156 {strides = array<i32>} : memref<8x8x32xbf16, #tpu.memory_space<vmem>>, vector<1x8x32xbf16>,
    %c16 = arith.constant 16 : index
    %c0_63 = arith.constant 0 : index
    %157 = vector.load %arg23[%c16, %c0_63] : memref<64x128xf32, #tpu.memory_space<vmem>>, vector<8x128xf32>
    %158 = arith.truncf %118 : vector<8x32xf32> to vector<8x32xbf16>
    %c0_64 = arith.constant 0 : index
    %c0_65 = arith.constant 0 : index
    %159 = vector.load %arg26[%c0_64, %c0_65] : memref<32x128xbf16, #tpu.memory_space<vmem>>, vector<32x128xbf16>
    %cst_66 = arith.constant dense<0.000000e+00> : vector<8x128xf32>
    %160 = tpu.matmul %158, %159, %cst_66 {dimension_numbers = #tpu.dot_dimension_numbers<[1], [0], [0], [1], [0, 0, 1, 1], [], []>} : vector<8x32xbf16>, vector<32x128xbf16>, vector<8x128xf32> -> vector<8x128xf32>
    %161 = arith.addf %157, %160 : vector<8x128xf32>
    %162 = vector.extract_strided_slice %161 {offsets = [0, 0], sizes = [8, 32], strides = [1, 1]} : vector<8x128xf32> to vector<8x32xf32>
    %163 = arith.negf %162 : vector<8x32xf32>
    %164 = math.exp %163 : vector<8x32xf32>
    %cst_67 = arith.constant 1.000000e+00 : f32
    %165 = vector.broadcast %cst_67 : f32 to vector<8x32xf32>
    %166 = arith.addf %165, %164 : vector<8x32xf32>
    %167 = arith.divf %165, %166 : vector<8x32xf32>
    %168 = vector.extract_strided_slice %161 {offsets = [0, 32], sizes = [8, 32], strides = [1, 1]} : vector<8x128xf32> to vector<8x32xf32>
    %169 = arith.negf %168 : vector<8x32xf32>
    %170 = math.exp %169 : vector<8x32xf32>
    %cst_68 = arith.constant 1.000000e+00 : f32
    %171 = vector.broadcast %cst_68 : f32 to vector<8x32xf32>
    %172 = arith.addf %171, %170 : vector<8x32xf32>
    %173 = arith.divf %171, %172 : vector<8x32xf32>
    %174 = vector.extract_strided_slice %161 {offsets = [0, 64], sizes = [8, 32], strides = [1, 1]} : vector<8x128xf32> to vector<8x32xf32>
    %175 = math.tanh %174 : vector<8x32xf32>
    %176 = vector.extract_strided_slice %161 {offsets = [0, 96], sizes = [8, 32], strides = [1, 1]} : vector<8x128xf32> to vector<8x32xf32>
    %177 = arith.negf %176 : vector<8x32xf32>
    %178 = math.exp %177 : vector<8x32xf32>
    %cst_69 = arith.constant 1.000000e+00 : f32
    %179 = vector.broadcast %cst_69 : f32 to vector<8x32xf32>
    %180 = arith.addf %179, %178 : vector<8x32xf32>
    %181 = arith.divf %179, %180 : vector<8x32xf32>
    %182 = arith.mulf %173, %116 : vector<8x32xf32>
    %183 = arith.mulf %167, %175 : vector<8x32xf32>
    %184 = arith.addf %182, %183 : vector<8x32xf32>
    %185 = math.tanh %184 : vector<8x32xf32>
    %186 = arith.mulf %181, %185 : vector<8x32xf32>
    %187 = arith.truncf %186 : vector<8x32xf32> to vector<8x32xbf16>
    %c2 = arith.constant 2 : index
    %c0_70 = arith.constant 0 : index
    %c0_71 = arith.constant 0 : index
    %188 = vector.load %arg13[%c2, %c0_70, %c0_71] : memref<8x8x32xbf16, #tpu.memory_space<vmem>>, vector<1x8x32xbf16>
    %189 = vector.shape_cast %188 : vector<1x8x32xbf16> to vector<8x32xbf16>
    %190 = vector.shape_cast %187 : vector<8x32xbf16> to vector<1x8x32xbf16>
    tpu.vector_store %arg13[%c2, %c0_70, %c0_71], %190 {strides = array<i32>} : memref<8x8x32xbf16, #tpu.memory_space<vmem>>, vector<1x8x32xbf16>,
    %c40 = arith.constant 40 : index
    %c0_72 = arith.constant 0 : index
    %191 = vector.load %arg24[%c40, %c0_72] : memref<64x128xf32, #tpu.memory_space<vmem>>, vector<8x128xf32>
    %192 = arith.truncf %152 : vector<8x32xf32> to vector<8x32xbf16>
    %c0_73 = arith.constant 0 : index
    %c0_74 = arith.constant 0 : index
    %193 = vector.load %arg28[%c0_73, %c0_74] : memref<32x128xbf16, #tpu.memory_space<vmem>>, vector<32x128xbf16>
    %cst_75 = arith.constant dense<0.000000e+00> : vector<8x128xf32>
    %194 = tpu.matmul %192, %193, %cst_75 {dimension_numbers = #tpu.dot_dimension_numbers<[1], [0], [0], [1], [0, 0, 1, 1], [], []>} : vector<8x32xbf16>, vector<32x128xbf16>, vector<8x128xf32> -> vector<8x128xf32>
    %195 = arith.addf %191, %194 : vector<8x128xf32>
    %196 = vector.extract_strided_slice %195 {offsets = [0, 0], sizes = [8, 32], strides = [1, 1]} : vector<8x128xf32> to vector<8x32xf32>
    %197 = arith.negf %196 : vector<8x32xf32>
    %198 = math.exp %197 : vector<8x32xf32>
    %cst_76 = arith.constant 1.000000e+00 : f32
    %199 = vector.broadcast %cst_76 : f32 to vector<8x32xf32>
    %200 = arith.addf %199, %198 : vector<8x32xf32>
    %201 = arith.divf %199, %200 : vector<8x32xf32>
    %202 = vector.extract_strided_slice %195 {offsets = [0, 32], sizes = [8, 32], strides = [1, 1]} : vector<8x128xf32> to vector<8x32xf32>
    %203 = arith.negf %202 : vector<8x32xf32>
    %204 = math.exp %203 : vector<8x32xf32>
    %cst_77 = arith.constant 1.000000e+00 : f32
    %205 = vector.broadcast %cst_77 : f32 to vector<8x32xf32>
    %206 = arith.addf %205, %204 : vector<8x32xf32>
    %207 = arith.divf %205, %206 : vector<8x32xf32>
    %208 = vector.extract_strided_slice %195 {offsets = [0, 64], sizes = [8, 32], strides = [1, 1]} : vector<8x128xf32> to vector<8x32xf32>
    %209 = math.tanh %208 : vector<8x32xf32>
    %210 = vector.extract_strided_slice %195 {offsets = [0, 96], sizes = [8, 32], strides = [1, 1]} : vector<8x128xf32> to vector<8x32xf32>
    %211 = arith.negf %210 : vector<8x32xf32>
    %212 = math.exp %211 : vector<8x32xf32>
    %cst_78 = arith.constant 1.000000e+00 : f32
    %213 = vector.broadcast %cst_78 : f32 to vector<8x32xf32>
    %214 = arith.addf %213, %212 : vector<8x32xf32>
    %215 = arith.divf %213, %214 : vector<8x32xf32>
    %216 = arith.mulf %207, %150 : vector<8x32xf32>
    %217 = arith.mulf %201, %209 : vector<8x32xf32>
    %218 = arith.addf %216, %217 : vector<8x32xf32>
    %219 = math.tanh %218 : vector<8x32xf32>
    %220 = arith.mulf %215, %219 : vector<8x32xf32>
    %221 = arith.truncf %220 : vector<8x32xf32> to vector<8x32xbf16>
    %c5 = arith.constant 5 : index
    %c0_79 = arith.constant 0 : index
    %c0_80 = arith.constant 0 : index
    %222 = vector.load %arg14[%c5, %c0_79, %c0_80] : memref<8x8x32xbf16, #tpu.memory_space<vmem>>, vector<1x8x32xbf16>
    %223 = vector.shape_cast %222 : vector<1x8x32xbf16> to vector<8x32xbf16>
    %224 = vector.shape_cast %221 : vector<8x32xbf16> to vector<1x8x32xbf16>
    tpu.vector_store %arg14[%c5, %c0_79, %c0_80], %224 {strides = array<i32>} : memref<8x8x32xbf16, #tpu.memory_space<vmem>>, vector<1x8x32xbf16>,
    %c24 = arith.constant 24 : index
    %c0_81 = arith.constant 0 : index
    %225 = vector.load %arg23[%c24, %c0_81] : memref<64x128xf32, #tpu.memory_space<vmem>>, vector<8x128xf32>
    %226 = arith.truncf %186 : vector<8x32xf32> to vector<8x32xbf16>
    %c0_82 = arith.constant 0 : index
    %c0_83 = arith.constant 0 : index
    %227 = vector.load %arg26[%c0_82, %c0_83] : memref<32x128xbf16, #tpu.memory_space<vmem>>, vector<32x128xbf16>
    %cst_84 = arith.constant dense<0.000000e+00> : vector<8x128xf32>
    %228 = tpu.matmul %226, %227, %cst_84 {dimension_numbers = #tpu.dot_dimension_numbers<[1], [0], [0], [1], [0, 0, 1, 1], [], []>} : vector<8x32xbf16>, vector<32x128xbf16>, vector<8x128xf32> -> vector<8x128xf32>
    %229 = arith.addf %225, %228 : vector<8x128xf32>
    %230 = vector.extract_strided_slice %229 {offsets = [0, 0], sizes = [8, 32], strides = [1, 1]} : vector<8x128xf32> to vector<8x32xf32>
    %231 = arith.negf %230 : vector<8x32xf32>
    %232 = math.exp %231 : vector<8x32xf32>
    %cst_85 = arith.constant 1.000000e+00 : f32
    %233 = vector.broadcast %cst_85 : f32 to vector<8x32xf32>
    %234 = arith.addf %233, %232 : vector<8x32xf32>
    %235 = arith.divf %233, %234 : vector<8x32xf32>
    %236 = vector.extract_strided_slice %229 {offsets = [0, 32], sizes = [8, 32], strides = [1, 1]} : vector<8x128xf32> to vector<8x32xf32>
    %237 = arith.negf %236 : vector<8x32xf32>
    %238 = math.exp %237 : vector<8x32xf32>
    %cst_86 = arith.constant 1.000000e+00 : f32
    %239 = vector.broadcast %cst_86 : f32 to vector<8x32xf32>
    %240 = arith.addf %239, %238 : vector<8x32xf32>
    %241 = arith.divf %239, %240 : vector<8x32xf32>
    %242 = vector.extract_strided_slice %229 {offsets = [0, 64], sizes = [8, 32], strides = [1, 1]} : vector<8x128xf32> to vector<8x32xf32>
    %243 = math.tanh %242 : vector<8x32xf32>
    %244 = vector.extract_strided_slice %229 {offsets = [0, 96], sizes = [8, 32], strides = [1, 1]} : vector<8x128xf32> to vector<8x32xf32>
    %245 = arith.negf %244 : vector<8x32xf32>
    %246 = math.exp %245 : vector<8x32xf32>
    %cst_87 = arith.constant 1.000000e+00 : f32
    %247 = vector.broadcast %cst_87 : f32 to vector<8x32xf32>
    %248 = arith.addf %247, %246 : vector<8x32xf32>
    %249 = arith.divf %247, %248 : vector<8x32xf32>
    %250 = arith.mulf %241, %184 : vector<8x32xf32>
    %251 = arith.mulf %235, %243 : vector<8x32xf32>
    %252 = arith.addf %250, %251 : vector<8x32xf32>
    %253 = math.tanh %252 : vector<8x32xf32>
    %254 = arith.mulf %249, %253 : vector<8x32xf32>
    %255 = arith.truncf %254 : vector<8x32xf32> to vector<8x32xbf16>
    %c3 = arith.constant 3 : index
    %c0_88 = arith.constant 0 : index
    %c0_89 = arith.constant 0 : index
    %256 = vector.load %arg13[%c3, %c0_88, %c0_89] : memref<8x8x32xbf16, #tpu.memory_space<vmem>>, vector<1x8x32xbf16>
    %257 = vector.shape_cast %256 : vector<1x8x32xbf16> to vector<8x32xbf16>
    %258 = vector.shape_cast %255 : vector<8x32xbf16> to vector<1x8x32xbf16>
    tpu.vector_store %arg13[%c3, %c0_88, %c0_89], %258 {strides = array<i32>} : memref<8x8x32xbf16, #tpu.memory_space<vmem>>, vector<1x8x32xbf16>,
    %c32 = arith.constant 32 : index
    %c0_90 = arith.constant 0 : index
    %259 = vector.load %arg24[%c32, %c0_90] : memref<64x128xf32, #tpu.memory_space<vmem>>, vector<8x128xf32>
    %260 = arith.truncf %220 : vector<8x32xf32> to vector<8x32xbf16>
    %c0_91 = arith.constant 0 : index
    %c0_92 = arith.constant 0 : index
    %261 = vector.load %arg28[%c0_91, %c0_92] : memref<32x128xbf16, #tpu.memory_space<vmem>>, vector<32x128xbf16>
    %cst_93 = arith.constant dense<0.000000e+00> : vector<8x128xf32>
    %262 = tpu.matmul %260, %261, %cst_93 {dimension_numbers = #tpu.dot_dimension_numbers<[1], [0], [0], [1], [0, 0, 1, 1], [], []>} : vector<8x32xbf16>, vector<32x128xbf16>, vector<8x128xf32> -> vector<8x128xf32>
    %263 = arith.addf %259, %262 : vector<8x128xf32>
    %264 = vector.extract_strided_slice %263 {offsets = [0, 0], sizes = [8, 32], strides = [1, 1]} : vector<8x128xf32> to vector<8x32xf32>
    %265 = arith.negf %264 : vector<8x32xf32>
    %266 = math.exp %265 : vector<8x32xf32>
    %cst_94 = arith.constant 1.000000e+00 : f32
    %267 = vector.broadcast %cst_94 : f32 to vector<8x32xf32>
    %268 = arith.addf %267, %266 : vector<8x32xf32>
    %269 = arith.divf %267, %268 : vector<8x32xf32>
    %270 = vector.extract_strided_slice %263 {offsets = [0, 32], sizes = [8, 32], strides = [1, 1]} : vector<8x128xf32> to vector<8x32xf32>
    %271 = arith.negf %270 : vector<8x32xf32>
    %272 = math.exp %271 : vector<8x32xf32>
    %cst_95 = arith.constant 1.000000e+00 : f32
    %273 = vector.broadcast %cst_95 : f32 to vector<8x32xf32>
    %274 = arith.addf %273, %272 : vector<8x32xf32>
    %275 = arith.divf %273, %274 : vector<8x32xf32>
    %276 = vector.extract_strided_slice %263 {offsets = [0, 64], sizes = [8, 32], strides = [1, 1]} : vector<8x128xf32> to vector<8x32xf32>
    %277 = math.tanh %276 : vector<8x32xf32>
    %278 = vector.extract_strided_slice %263 {offsets = [0, 96], sizes = [8, 32], strides = [1, 1]} : vector<8x128xf32> to vector<8x32xf32>
    %279 = arith.negf %278 : vector<8x32xf32>
    %280 = math.exp %279 : vector<8x32xf32>
    %cst_96 = arith.constant 1.000000e+00 : f32
    %281 = vector.broadcast %cst_96 : f32 to vector<8x32xf32>
    %282 = arith.addf %281, %280 : vector<8x32xf32>
    %283 = arith.divf %281, %282 : vector<8x32xf32>
    %284 = arith.mulf %275, %218 : vector<8x32xf32>
    %285 = arith.mulf %269, %277 : vector<8x32xf32>
    %286 = arith.addf %284, %285 : vector<8x32xf32>
    %287 = math.tanh %286 : vector<8x32xf32>
    %288 = arith.mulf %283, %287 : vector<8x32xf32>
    %289 = arith.truncf %288 : vector<8x32xf32> to vector<8x32xbf16>
    %c4 = arith.constant 4 : index
    %c0_97 = arith.constant 0 : index
    %c0_98 = arith.constant 0 : index
    %290 = vector.load %arg14[%c4, %c0_97, %c0_98] : memref<8x8x32xbf16, #tpu.memory_space<vmem>>, vector<1x8x32xbf16>
    %291 = vector.shape_cast %290 : vector<1x8x32xbf16> to vector<8x32xbf16>
    %292 = vector.shape_cast %289 : vector<8x32xbf16> to vector<1x8x32xbf16>
    tpu.vector_store %arg14[%c4, %c0_97, %c0_98], %292 {strides = array<i32>} : memref<8x8x32xbf16, #tpu.memory_space<vmem>>, vector<1x8x32xbf16>,
    %c32_99 = arith.constant 32 : index
    %c0_100 = arith.constant 0 : index
    %293 = vector.load %arg23[%c32_99, %c0_100] : memref<64x128xf32, #tpu.memory_space<vmem>>, vector<8x128xf32>
    %294 = arith.truncf %254 : vector<8x32xf32> to vector<8x32xbf16>
    %c0_101 = arith.constant 0 : index
    %c0_102 = arith.constant 0 : index
    %295 = vector.load %arg26[%c0_101, %c0_102] : memref<32x128xbf16, #tpu.memory_space<vmem>>, vector<32x128xbf16>
    %cst_103 = arith.constant dense<0.000000e+00> : vector<8x128xf32>
    %296 = tpu.matmul %294, %295, %cst_103 {dimension_numbers = #tpu.dot_dimension_numbers<[1], [0], [0], [1], [0, 0, 1, 1], [], []>} : vector<8x32xbf16>, vector<32x128xbf16>, vector<8x128xf32> -> vector<8x128xf32>
    %297 = arith.addf %293, %296 : vector<8x128xf32>
    %298 = vector.extract_strided_slice %297 {offsets = [0, 0], sizes = [8, 32], strides = [1, 1]} : vector<8x128xf32> to vector<8x32xf32>
    %299 = arith.negf %298 : vector<8x32xf32>
    %300 = math.exp %299 : vector<8x32xf32>
    %cst_104 = arith.constant 1.000000e+00 : f32
    %301 = vector.broadcast %cst_104 : f32 to vector<8x32xf32>
    %302 = arith.addf %301, %300 : vector<8x32xf32>
    %303 = arith.divf %301, %302 : vector<8x32xf32>
    %304 = vector.extract_strided_slice %297 {offsets = [0, 32], sizes = [8, 32], strides = [1, 1]} : vector<8x128xf32> to vector<8x32xf32>
    %305 = arith.negf %304 : vector<8x32xf32>
    %306 = math.exp %305 : vector<8x32xf32>
    %cst_105 = arith.constant 1.000000e+00 : f32
    %307 = vector.broadcast %cst_105 : f32 to vector<8x32xf32>
    %308 = arith.addf %307, %306 : vector<8x32xf32>
    %309 = arith.divf %307, %308 : vector<8x32xf32>
    %310 = vector.extract_strided_slice %297 {offsets = [0, 64], sizes = [8, 32], strides = [1, 1]} : vector<8x128xf32> to vector<8x32xf32>
    %311 = math.tanh %310 : vector<8x32xf32>
    %312 = vector.extract_strided_slice %297 {offsets = [0, 96], sizes = [8, 32], strides = [1, 1]} : vector<8x128xf32> to vector<8x32xf32>
    %313 = arith.negf %312 : vector<8x32xf32>
    %314 = math.exp %313 : vector<8x32xf32>
    %cst_106 = arith.constant 1.000000e+00 : f32
    %315 = vector.broadcast %cst_106 : f32 to vector<8x32xf32>
    %316 = arith.addf %315, %314 : vector<8x32xf32>
    %317 = arith.divf %315, %316 : vector<8x32xf32>
    %318 = arith.mulf %309, %252 : vector<8x32xf32>
    %319 = arith.mulf %303, %311 : vector<8x32xf32>
    %320 = arith.addf %318, %319 : vector<8x32xf32>
    %321 = math.tanh %320 : vector<8x32xf32>
    %322 = arith.mulf %317, %321 : vector<8x32xf32>
    %323 = arith.truncf %322 : vector<8x32xf32> to vector<8x32xbf16>
    %c4_107 = arith.constant 4 : index
    %c0_108 = arith.constant 0 : index
    %c0_109 = arith.constant 0 : index
    %324 = vector.load %arg13[%c4_107, %c0_108, %c0_109] : memref<8x8x32xbf16, #tpu.memory_space<vmem>>, vector<1x8x32xbf16>
    %325 = vector.shape_cast %324 : vector<1x8x32xbf16> to vector<8x32xbf16>
    %326 = vector.shape_cast %323 : vector<8x32xbf16> to vector<1x8x32xbf16>
    tpu.vector_store %arg13[%c4_107, %c0_108, %c0_109], %326 {strides = array<i32>} : memref<8x8x32xbf16, #tpu.memory_space<vmem>>, vector<1x8x32xbf16>,
    %c24_110 = arith.constant 24 : index
    %c0_111 = arith.constant 0 : index
    %327 = vector.load %arg24[%c24_110, %c0_111] : memref<64x128xf32, #tpu.memory_space<vmem>>, vector<8x128xf32>
    %328 = arith.truncf %288 : vector<8x32xf32> to vector<8x32xbf16>
    %c0_112 = arith.constant 0 : index
    %c0_113 = arith.constant 0 : index
    %329 = vector.load %arg28[%c0_112, %c0_113] : memref<32x128xbf16, #tpu.memory_space<vmem>>, vector<32x128xbf16>
    %cst_114 = arith.constant dense<0.000000e+00> : vector<8x128xf32>
    %330 = tpu.matmul %328, %329, %cst_114 {dimension_numbers = #tpu.dot_dimension_numbers<[1], [0], [0], [1], [0, 0, 1, 1], [], []>} : vector<8x32xbf16>, vector<32x128xbf16>, vector<8x128xf32> -> vector<8x128xf32>
    %331 = arith.addf %327, %330 : vector<8x128xf32>
    %332 = vector.extract_strided_slice %331 {offsets = [0, 0], sizes = [8, 32], strides = [1, 1]} : vector<8x128xf32> to vector<8x32xf32>
    %333 = arith.negf %332 : vector<8x32xf32>
    %334 = math.exp %333 : vector<8x32xf32>
    %cst_115 = arith.constant 1.000000e+00 : f32
    %335 = vector.broadcast %cst_115 : f32 to vector<8x32xf32>
    %336 = arith.addf %335, %334 : vector<8x32xf32>
    %337 = arith.divf %335, %336 : vector<8x32xf32>
    %338 = vector.extract_strided_slice %331 {offsets = [0, 32], sizes = [8, 32], strides = [1, 1]} : vector<8x128xf32> to vector<8x32xf32>
    %339 = arith.negf %338 : vector<8x32xf32>
    %340 = math.exp %339 : vector<8x32xf32>
    %cst_116 = arith.constant 1.000000e+00 : f32
    %341 = vector.broadcast %cst_116 : f32 to vector<8x32xf32>
    %342 = arith.addf %341, %340 : vector<8x32xf32>
    %343 = arith.divf %341, %342 : vector<8x32xf32>
    %344 = vector.extract_strided_slice %331 {offsets = [0, 64], sizes = [8, 32], strides = [1, 1]} : vector<8x128xf32> to vector<8x32xf32>
    %345 = math.tanh %344 : vector<8x32xf32>
    %346 = vector.extract_strided_slice %331 {offsets = [0, 96], sizes = [8, 32], strides = [1, 1]} : vector<8x128xf32> to vector<8x32xf32>
    %347 = arith.negf %346 : vector<8x32xf32>
    %348 = math.exp %347 : vector<8x32xf32>
    %cst_117 = arith.constant 1.000000e+00 : f32
    %349 = vector.broadcast %cst_117 : f32 to vector<8x32xf32>
    %350 = arith.addf %349, %348 : vector<8x32xf32>
    %351 = arith.divf %349, %350 : vector<8x32xf32>
    %352 = arith.mulf %343, %286 : vector<8x32xf32>
    %353 = arith.mulf %337, %345 : vector<8x32xf32>
    %354 = arith.addf %352, %353 : vector<8x32xf32>
    %355 = math.tanh %354 : vector<8x32xf32>
    %356 = arith.mulf %351, %355 : vector<8x32xf32>
    %357 = arith.truncf %356 : vector<8x32xf32> to vector<8x32xbf16>
    %c3_118 = arith.constant 3 : index
    %c0_119 = arith.constant 0 : index
    %c0_120 = arith.constant 0 : index
    %358 = vector.load %arg14[%c3_118, %c0_119, %c0_120] : memref<8x8x32xbf16, #tpu.memory_space<vmem>>, vector<1x8x32xbf16>
    %359 = vector.shape_cast %358 : vector<1x8x32xbf16> to vector<8x32xbf16>
    %360 = vector.shape_cast %357 : vector<8x32xbf16> to vector<1x8x32xbf16>
    tpu.vector_store %arg14[%c3_118, %c0_119, %c0_120], %360 {strides = array<i32>} : memref<8x8x32xbf16, #tpu.memory_space<vmem>>, vector<1x8x32xbf16>,
    %c40_121 = arith.constant 40 : index
    %c0_122 = arith.constant 0 : index
    %361 = vector.load %arg23[%c40_121, %c0_122] : memref<64x128xf32, #tpu.memory_space<vmem>>, vector<8x128xf32>
    %362 = arith.truncf %322 : vector<8x32xf32> to vector<8x32xbf16>
    %c0_123 = arith.constant 0 : index
    %c0_124 = arith.constant 0 : index
    %363 = vector.load %arg26[%c0_123, %c0_124] : memref<32x128xbf16, #tpu.memory_space<vmem>>, vector<32x128xbf16>
    %cst_125 = arith.constant dense<0.000000e+00> : vector<8x128xf32>
    %364 = tpu.matmul %362, %363, %cst_125 {dimension_numbers = #tpu.dot_dimension_numbers<[1], [0], [0], [1], [0, 0, 1, 1], [], []>} : vector<8x32xbf16>, vector<32x128xbf16>, vector<8x128xf32> -> vector<8x128xf32>
    %365 = arith.addf %361, %364 : vector<8x128xf32>
    %366 = vector.extract_strided_slice %365 {offsets = [0, 0], sizes = [8, 32], strides = [1, 1]} : vector<8x128xf32> to vector<8x32xf32>
    %367 = arith.negf %366 : vector<8x32xf32>
    %368 = math.exp %367 : vector<8x32xf32>
    %cst_126 = arith.constant 1.000000e+00 : f32
    %369 = vector.broadcast %cst_126 : f32 to vector<8x32xf32>
    %370 = arith.addf %369, %368 : vector<8x32xf32>
    %371 = arith.divf %369, %370 : vector<8x32xf32>
    %372 = vector.extract_strided_slice %365 {offsets = [0, 32], sizes = [8, 32], strides = [1, 1]} : vector<8x128xf32> to vector<8x32xf32>
    %373 = arith.negf %372 : vector<8x32xf32>
    %374 = math.exp %373 : vector<8x32xf32>
    %cst_127 = arith.constant 1.000000e+00 : f32
    %375 = vector.broadcast %cst_127 : f32 to vector<8x32xf32>
    %376 = arith.addf %375, %374 : vector<8x32xf32>
    %377 = arith.divf %375, %376 : vector<8x32xf32>
    %378 = vector.extract_strided_slice %365 {offsets = [0, 64], sizes = [8, 32], strides = [1, 1]} : vector<8x128xf32> to vector<8x32xf32>
    %379 = math.tanh %378 : vector<8x32xf32>
    %380 = vector.extract_strided_slice %365 {offsets = [0, 96], sizes = [8, 32], strides = [1, 1]} : vector<8x128xf32> to vector<8x32xf32>
    %381 = arith.negf %380 : vector<8x32xf32>
    %382 = math.exp %381 : vector<8x32xf32>
    %cst_128 = arith.constant 1.000000e+00 : f32
    %383 = vector.broadcast %cst_128 : f32 to vector<8x32xf32>
    %384 = arith.addf %383, %382 : vector<8x32xf32>
    %385 = arith.divf %383, %384 : vector<8x32xf32>
    %386 = arith.mulf %377, %320 : vector<8x32xf32>
    %387 = arith.mulf %371, %379 : vector<8x32xf32>
    %388 = arith.addf %386, %387 : vector<8x32xf32>
    %389 = math.tanh %388 : vector<8x32xf32>
    %390 = arith.mulf %385, %389 : vector<8x32xf32>
    %391 = arith.truncf %390 : vector<8x32xf32> to vector<8x32xbf16>
    %c5_129 = arith.constant 5 : index
    %c0_130 = arith.constant 0 : index
    %c0_131 = arith.constant 0 : index
    %392 = vector.load %arg13[%c5_129, %c0_130, %c0_131] : memref<8x8x32xbf16, #tpu.memory_space<vmem>>, vector<1x8x32xbf16>
    %393 = vector.shape_cast %392 : vector<1x8x32xbf16> to vector<8x32xbf16>
    %394 = vector.shape_cast %391 : vector<8x32xbf16> to vector<1x8x32xbf16>
    tpu.vector_store %arg13[%c5_129, %c0_130, %c0_131], %394 {strides = array<i32>} : memref<8x8x32xbf16, #tpu.memory_space<vmem>>, vector<1x8x32xbf16>,
    %c16_132 = arith.constant 16 : index
    %c0_133 = arith.constant 0 : index
    %395 = vector.load %arg24[%c16_132, %c0_133] : memref<64x128xf32, #tpu.memory_space<vmem>>, vector<8x128xf32>
    %396 = arith.truncf %356 : vector<8x32xf32> to vector<8x32xbf16>
    %c0_134 = arith.constant 0 : index
    %c0_135 = arith.constant 0 : index
    %397 = vector.load %arg28[%c0_134, %c0_135] : memref<32x128xbf16, #tpu.memory_space<vmem>>, vector<32x128xbf16>
    %cst_136 = arith.constant dense<0.000000e+00> : vector<8x128xf32>
    %398 = tpu.matmul %396, %397, %cst_136 {dimension_numbers = #tpu.dot_dimension_numbers<[1], [0], [0], [1], [0, 0, 1, 1], [], []>} : vector<8x32xbf16>, vector<32x128xbf16>, vector<8x128xf32> -> vector<8x128xf32>
    %399 = arith.addf %395, %398 : vector<8x128xf32>
    %400 = vector.extract_strided_slice %399 {offsets = [0, 0], sizes = [8, 32], strides = [1, 1]} : vector<8x128xf32> to vector<8x32xf32>
    %401 = arith.negf %400 : vector<8x32xf32>
    %402 = math.exp %401 : vector<8x32xf32>
    %cst_137 = arith.constant 1.000000e+00 : f32
    %403 = vector.broadcast %cst_137 : f32 to vector<8x32xf32>
    %404 = arith.addf %403, %402 : vector<8x32xf32>
    %405 = arith.divf %403, %404 : vector<8x32xf32>
    %406 = vector.extract_strided_slice %399 {offsets = [0, 32], sizes = [8, 32], strides = [1, 1]} : vector<8x128xf32> to vector<8x32xf32>
    %407 = arith.negf %406 : vector<8x32xf32>
    %408 = math.exp %407 : vector<8x32xf32>
    %cst_138 = arith.constant 1.000000e+00 : f32
    %409 = vector.broadcast %cst_138 : f32 to vector<8x32xf32>
    %410 = arith.addf %409, %408 : vector<8x32xf32>
    %411 = arith.divf %409, %410 : vector<8x32xf32>
    %412 = vector.extract_strided_slice %399 {offsets = [0, 64], sizes = [8, 32], strides = [1, 1]} : vector<8x128xf32> to vector<8x32xf32>
    %413 = math.tanh %412 : vector<8x32xf32>
    %414 = vector.extract_strided_slice %399 {offsets = [0, 96], sizes = [8, 32], strides = [1, 1]} : vector<8x128xf32> to vector<8x32xf32>
    %415 = arith.negf %414 : vector<8x32xf32>
    %416 = math.exp %415 : vector<8x32xf32>
    %cst_139 = arith.constant 1.000000e+00 : f32
    %417 = vector.broadcast %cst_139 : f32 to vector<8x32xf32>
    %418 = arith.addf %417, %416 : vector<8x32xf32>
    %419 = arith.divf %417, %418 : vector<8x32xf32>
    %420 = arith.mulf %411, %354 : vector<8x32xf32>
    %421 = arith.mulf %405, %413 : vector<8x32xf32>
    %422 = arith.addf %420, %421 : vector<8x32xf32>
    %423 = math.tanh %422 : vector<8x32xf32>
    %424 = arith.mulf %419, %423 : vector<8x32xf32>
    %425 = arith.truncf %424 : vector<8x32xf32> to vector<8x32xbf16>
    %c2_140 = arith.constant 2 : index
    %c0_141 = arith.constant 0 : index
    %c0_142 = arith.constant 0 : index
    %426 = vector.load %arg14[%c2_140, %c0_141, %c0_142] : memref<8x8x32xbf16, #tpu.memory_space<vmem>>, vector<1x8x32xbf16>
    %427 = vector.shape_cast %426 : vector<1x8x32xbf16> to vector<8x32xbf16>
    %428 = vector.shape_cast %425 : vector<8x32xbf16> to vector<1x8x32xbf16>
    tpu.vector_store %arg14[%c2_140, %c0_141, %c0_142], %428 {strides = array<i32>} : memref<8x8x32xbf16, #tpu.memory_space<vmem>>, vector<1x8x32xbf16>,
    %c48_143 = arith.constant 48 : index
    %c0_144 = arith.constant 0 : index
    %429 = vector.load %arg23[%c48_143, %c0_144] : memref<64x128xf32, #tpu.memory_space<vmem>>, vector<8x128xf32>
    %430 = arith.truncf %390 : vector<8x32xf32> to vector<8x32xbf16>
    %c0_145 = arith.constant 0 : index
    %c0_146 = arith.constant 0 : index
    %431 = vector.load %arg26[%c0_145, %c0_146] : memref<32x128xbf16, #tpu.memory_space<vmem>>, vector<32x128xbf16>
    %cst_147 = arith.constant dense<0.000000e+00> : vector<8x128xf32>
    %432 = tpu.matmul %430, %431, %cst_147 {dimension_numbers = #tpu.dot_dimension_numbers<[1], [0], [0], [1], [0, 0, 1, 1], [], []>} : vector<8x32xbf16>, vector<32x128xbf16>, vector<8x128xf32> -> vector<8x128xf32>
    %433 = arith.addf %429, %432 : vector<8x128xf32>
    %434 = vector.extract_strided_slice %433 {offsets = [0, 0], sizes = [8, 32], strides = [1, 1]} : vector<8x128xf32> to vector<8x32xf32>
    %435 = arith.negf %434 : vector<8x32xf32>
    %436 = math.exp %435 : vector<8x32xf32>
    %cst_148 = arith.constant 1.000000e+00 : f32
    %437 = vector.broadcast %cst_148 : f32 to vector<8x32xf32>
    %438 = arith.addf %437, %436 : vector<8x32xf32>
    %439 = arith.divf %437, %438 : vector<8x32xf32>
    %440 = vector.extract_strided_slice %433 {offsets = [0, 32], sizes = [8, 32], strides = [1, 1]} : vector<8x128xf32> to vector<8x32xf32>
    %441 = arith.negf %440 : vector<8x32xf32>
    %442 = math.exp %441 : vector<8x32xf32>
    %cst_149 = arith.constant 1.000000e+00 : f32
    %443 = vector.broadcast %cst_149 : f32 to vector<8x32xf32>
    %444 = arith.addf %443, %442 : vector<8x32xf32>
    %445 = arith.divf %443, %444 : vector<8x32xf32>
    %446 = vector.extract_strided_slice %433 {offsets = [0, 64], sizes = [8, 32], strides = [1, 1]} : vector<8x128xf32> to vector<8x32xf32>
    %447 = math.tanh %446 : vector<8x32xf32>
    %448 = vector.extract_strided_slice %433 {offsets = [0, 96], sizes = [8, 32], strides = [1, 1]} : vector<8x128xf32> to vector<8x32xf32>
    %449 = arith.negf %448 : vector<8x32xf32>
    %450 = math.exp %449 : vector<8x32xf32>
    %cst_150 = arith.constant 1.000000e+00 : f32
    %451 = vector.broadcast %cst_150 : f32 to vector<8x32xf32>
    %452 = arith.addf %451, %450 : vector<8x32xf32>
    %453 = arith.divf %451, %452 : vector<8x32xf32>
    %454 = arith.mulf %445, %388 : vector<8x32xf32>
    %455 = arith.mulf %439, %447 : vector<8x32xf32>
    %456 = arith.addf %454, %455 : vector<8x32xf32>
    %457 = math.tanh %456 : vector<8x32xf32>
    %458 = arith.mulf %453, %457 : vector<8x32xf32>
    %459 = arith.truncf %458 : vector<8x32xf32> to vector<8x32xbf16>
    %c6_151 = arith.constant 6 : index
    %c0_152 = arith.constant 0 : index
    %c0_153 = arith.constant 0 : index
    %460 = vector.load %arg13[%c6_151, %c0_152, %c0_153] : memref<8x8x32xbf16, #tpu.memory_space<vmem>>, vector<1x8x32xbf16>
    %461 = vector.shape_cast %460 : vector<1x8x32xbf16> to vector<8x32xbf16>
    %462 = vector.shape_cast %459 : vector<8x32xbf16> to vector<1x8x32xbf16>
    tpu.vector_store %arg13[%c6_151, %c0_152, %c0_153], %462 {strides = array<i32>} : memref<8x8x32xbf16, #tpu.memory_space<vmem>>, vector<1x8x32xbf16>,
    %c8_154 = arith.constant 8 : index
    %c0_155 = arith.constant 0 : index
    %463 = vector.load %arg24[%c8_154, %c0_155] : memref<64x128xf32, #tpu.memory_space<vmem>>, vector<8x128xf32>
    %464 = arith.truncf %424 : vector<8x32xf32> to vector<8x32xbf16>
    %c0_156 = arith.constant 0 : index
    %c0_157 = arith.constant 0 : index
    %465 = vector.load %arg28[%c0_156, %c0_157] : memref<32x128xbf16, #tpu.memory_space<vmem>>, vector<32x128xbf16>
    %cst_158 = arith.constant dense<0.000000e+00> : vector<8x128xf32>
    %466 = tpu.matmul %464, %465, %cst_158 {dimension_numbers = #tpu.dot_dimension_numbers<[1], [0], [0], [1], [0, 0, 1, 1], [], []>} : vector<8x32xbf16>, vector<32x128xbf16>, vector<8x128xf32> -> vector<8x128xf32>
    %467 = arith.addf %463, %466 : vector<8x128xf32>
    %468 = vector.extract_strided_slice %467 {offsets = [0, 0], sizes = [8, 32], strides = [1, 1]} : vector<8x128xf32> to vector<8x32xf32>
    %469 = arith.negf %468 : vector<8x32xf32>
    %470 = math.exp %469 : vector<8x32xf32>
    %cst_159 = arith.constant 1.000000e+00 : f32
    %471 = vector.broadcast %cst_159 : f32 to vector<8x32xf32>
    %472 = arith.addf %471, %470 : vector<8x32xf32>
    %473 = arith.divf %471, %472 : vector<8x32xf32>
    %474 = vector.extract_strided_slice %467 {offsets = [0, 32], sizes = [8, 32], strides = [1, 1]} : vector<8x128xf32> to vector<8x32xf32>
    %475 = arith.negf %474 : vector<8x32xf32>
    %476 = math.exp %475 : vector<8x32xf32>
    %cst_160 = arith.constant 1.000000e+00 : f32
    %477 = vector.broadcast %cst_160 : f32 to vector<8x32xf32>
    %478 = arith.addf %477, %476 : vector<8x32xf32>
    %479 = arith.divf %477, %478 : vector<8x32xf32>
    %480 = vector.extract_strided_slice %467 {offsets = [0, 64], sizes = [8, 32], strides = [1, 1]} : vector<8x128xf32> to vector<8x32xf32>
    %481 = math.tanh %480 : vector<8x32xf32>
    %482 = vector.extract_strided_slice %467 {offsets = [0, 96], sizes = [8, 32], strides = [1, 1]} : vector<8x128xf32> to vector<8x32xf32>
    %483 = arith.negf %482 : vector<8x32xf32>
    %484 = math.exp %483 : vector<8x32xf32>
    %cst_161 = arith.constant 1.000000e+00 : f32
    %485 = vector.broadcast %cst_161 : f32 to vector<8x32xf32>
    %486 = arith.addf %485, %484 : vector<8x32xf32>
    %487 = arith.divf %485, %486 : vector<8x32xf32>
    %488 = arith.mulf %479, %422 : vector<8x32xf32>
    %489 = arith.mulf %473, %481 : vector<8x32xf32>
    %490 = arith.addf %488, %489 : vector<8x32xf32>
    %491 = math.tanh %490 : vector<8x32xf32>
    %492 = arith.mulf %487, %491 : vector<8x32xf32>
    %493 = arith.truncf %492 : vector<8x32xf32> to vector<8x32xbf16>
    %c1_162 = arith.constant 1 : index
    %c0_163 = arith.constant 0 : index
    %c0_164 = arith.constant 0 : index
    %494 = vector.load %arg14[%c1_162, %c0_163, %c0_164] : memref<8x8x32xbf16, #tpu.memory_space<vmem>>, vector<1x8x32xbf16>
    %495 = vector.shape_cast %494 : vector<1x8x32xbf16> to vector<8x32xbf16>
    %496 = vector.shape_cast %493 : vector<8x32xbf16> to vector<1x8x32xbf16>
    tpu.vector_store %arg14[%c1_162, %c0_163, %c0_164], %496 {strides = array<i32>} : memref<8x8x32xbf16, #tpu.memory_space<vmem>>, vector<1x8x32xbf16>,
    %c56_165 = arith.constant 56 : index
    %c0_166 = arith.constant 0 : index
    %497 = vector.load %arg23[%c56_165, %c0_166] : memref<64x128xf32, #tpu.memory_space<vmem>>, vector<8x128xf32>
    %498 = arith.truncf %458 : vector<8x32xf32> to vector<8x32xbf16>
    %c0_167 = arith.constant 0 : index
    %c0_168 = arith.constant 0 : index
    %499 = vector.load %arg26[%c0_167, %c0_168] : memref<32x128xbf16, #tpu.memory_space<vmem>>, vector<32x128xbf16>
    %cst_169 = arith.constant dense<0.000000e+00> : vector<8x128xf32>
    %500 = tpu.matmul %498, %499, %cst_169 {dimension_numbers = #tpu.dot_dimension_numbers<[1], [0], [0], [1], [0, 0, 1, 1], [], []>} : vector<8x32xbf16>, vector<32x128xbf16>, vector<8x128xf32> -> vector<8x128xf32>
    %501 = arith.addf %497, %500 : vector<8x128xf32>
    %502 = vector.extract_strided_slice %501 {offsets = [0, 0], sizes = [8, 32], strides = [1, 1]} : vector<8x128xf32> to vector<8x32xf32>
    %503 = arith.negf %502 : vector<8x32xf32>
    %504 = math.exp %503 : vector<8x32xf32>
    %cst_170 = arith.constant 1.000000e+00 : f32
    %505 = vector.broadcast %cst_170 : f32 to vector<8x32xf32>
    %506 = arith.addf %505, %504 : vector<8x32xf32>
    %507 = arith.divf %505, %506 : vector<8x32xf32>
    %508 = vector.extract_strided_slice %501 {offsets = [0, 32], sizes = [8, 32], strides = [1, 1]} : vector<8x128xf32> to vector<8x32xf32>
    %509 = arith.negf %508 : vector<8x32xf32>
    %510 = math.exp %509 : vector<8x32xf32>
    %cst_171 = arith.constant 1.000000e+00 : f32
    %511 = vector.broadcast %cst_171 : f32 to vector<8x32xf32>
    %512 = arith.addf %511, %510 : vector<8x32xf32>
    %513 = arith.divf %511, %512 : vector<8x32xf32>
    %514 = vector.extract_strided_slice %501 {offsets = [0, 64], sizes = [8, 32], strides = [1, 1]} : vector<8x128xf32> to vector<8x32xf32>
    %515 = math.tanh %514 : vector<8x32xf32>
    %516 = vector.extract_strided_slice %501 {offsets = [0, 96], sizes = [8, 32], strides = [1, 1]} : vector<8x128xf32> to vector<8x32xf32>
    %517 = arith.negf %516 : vector<8x32xf32>
    %518 = math.exp %517 : vector<8x32xf32>
    %cst_172 = arith.constant 1.000000e+00 : f32
    %519 = vector.broadcast %cst_172 : f32 to vector<8x32xf32>
    %520 = arith.addf %519, %518 : vector<8x32xf32>
    %521 = arith.divf %519, %520 : vector<8x32xf32>
    %522 = arith.mulf %513, %456 : vector<8x32xf32>
    %523 = arith.mulf %507, %515 : vector<8x32xf32>
    %524 = arith.addf %522, %523 : vector<8x32xf32>
    %525 = math.tanh %524 : vector<8x32xf32>
    %526 = arith.mulf %521, %525 : vector<8x32xf32>
    %527 = arith.truncf %526 : vector<8x32xf32> to vector<8x32xbf16>
    %c7_173 = arith.constant 7 : index
    %c0_174 = arith.constant 0 : index
    %c0_175 = arith.constant 0 : index
    %528 = vector.load %arg13[%c7_173, %c0_174, %c0_175] : memref<8x8x32xbf16, #tpu.memory_space<vmem>>, vector<1x8x32xbf16>
    %529 = vector.shape_cast %528 : vector<1x8x32xbf16> to vector<8x32xbf16>
    %530 = vector.shape_cast %527 : vector<8x32xbf16> to vector<1x8x32xbf16>
    tpu.vector_store %arg13[%c7_173, %c0_174, %c0_175], %530 {strides = array<i32>} : memref<8x8x32xbf16, #tpu.memory_space<vmem>>, vector<1x8x32xbf16>,
    %c0_176 = arith.constant 0 : index
    %c0_177 = arith.constant 0 : index
    %531 = vector.load %arg24[%c0_176, %c0_177] : memref<64x128xf32, #tpu.memory_space<vmem>>, vector<8x128xf32>
    %532 = arith.truncf %492 : vector<8x32xf32> to vector<8x32xbf16>
    %c0_178 = arith.constant 0 : index
    %c0_179 = arith.constant 0 : index
    %533 = vector.load %arg28[%c0_178, %c0_179] : memref<32x128xbf16, #tpu.memory_space<vmem>>, vector<32x128xbf16>
    %cst_180 = arith.constant dense<0.000000e+00> : vector<8x128xf32>
    %534 = tpu.matmul %532, %533, %cst_180 {dimension_numbers = #tpu.dot_dimension_numbers<[1], [0], [0], [1], [0, 0, 1, 1], [], []>} : vector<8x32xbf16>, vector<32x128xbf16>, vector<8x128xf32> -> vector<8x128xf32>
    %535 = arith.addf %531, %534 : vector<8x128xf32>
    %536 = vector.extract_strided_slice %535 {offsets = [0, 0], sizes = [8, 32], strides = [1, 1]} : vector<8x128xf32> to vector<8x32xf32>
    %537 = arith.negf %536 : vector<8x32xf32>
    %538 = math.exp %537 : vector<8x32xf32>
    %cst_181 = arith.constant 1.000000e+00 : f32
    %539 = vector.broadcast %cst_181 : f32 to vector<8x32xf32>
    %540 = arith.addf %539, %538 : vector<8x32xf32>
    %541 = arith.divf %539, %540 : vector<8x32xf32>
    %542 = vector.extract_strided_slice %535 {offsets = [0, 32], sizes = [8, 32], strides = [1, 1]} : vector<8x128xf32> to vector<8x32xf32>
    %543 = arith.negf %542 : vector<8x32xf32>
    %544 = math.exp %543 : vector<8x32xf32>
    %cst_182 = arith.constant 1.000000e+00 : f32
    %545 = vector.broadcast %cst_182 : f32 to vector<8x32xf32>
    %546 = arith.addf %545, %544 : vector<8x32xf32>
    %547 = arith.divf %545, %546 : vector<8x32xf32>
    %548 = vector.extract_strided_slice %535 {offsets = [0, 64], sizes = [8, 32], strides = [1, 1]} : vector<8x128xf32> to vector<8x32xf32>
    %549 = math.tanh %548 : vector<8x32xf32>
    %550 = vector.extract_strided_slice %535 {offsets = [0, 96], sizes = [8, 32], strides = [1, 1]} : vector<8x128xf32> to vector<8x32xf32>
    %551 = arith.negf %550 : vector<8x32xf32>
    %552 = math.exp %551 : vector<8x32xf32>
    %cst_183 = arith.constant 1.000000e+00 : f32
    %553 = vector.broadcast %cst_183 : f32 to vector<8x32xf32>
    %554 = arith.addf %553, %552 : vector<8x32xf32>
    %555 = arith.divf %553, %554 : vector<8x32xf32>
    %556 = arith.mulf %547, %490 : vector<8x32xf32>
    %557 = arith.mulf %541, %549 : vector<8x32xf32>
    %558 = arith.addf %556, %557 : vector<8x32xf32>
    %559 = math.tanh %558 : vector<8x32xf32>
    %560 = arith.mulf %555, %559 : vector<8x32xf32>
    %561 = arith.truncf %560 : vector<8x32xf32> to vector<8x32xbf16>
    %c0_184 = arith.constant 0 : index
    %c0_185 = arith.constant 0 : index
    %c0_186 = arith.constant 0 : index
    %562 = vector.load %arg14[%c0_184, %c0_185, %c0_186] : memref<8x8x32xbf16, #tpu.memory_space<vmem>>, vector<1x8x32xbf16>
    %563 = vector.shape_cast %562 : vector<1x8x32xbf16> to vector<8x32xbf16>
    %564 = vector.shape_cast %561 : vector<8x32xbf16> to vector<1x8x32xbf16>
    tpu.vector_store %arg14[%c0_184, %c0_185, %c0_186], %564 {strides = array<i32>} : memref<8x8x32xbf16, #tpu.memory_space<vmem>>, vector<1x8x32xbf16>,
    %c0_187 = arith.constant 0 : index
    %c0_188 = arith.constant 0 : index
    %565 = vector.load %arg19[%c0_187, %c0_188] : memref<8x32xf32, #tpu.memory_space<vmem>>, vector<8x32xf32>
    tpu.vector_store %arg19[%c0_187, %c0_188], %526 {strides = array<i32>} : memref<8x32xf32, #tpu.memory_space<vmem>>, vector<8x32xf32>,
    %c0_189 = arith.constant 0 : index
    %c0_190 = arith.constant 0 : index
    %566 = vector.load %arg20[%c0_189, %c0_190] : memref<8x32xf32, #tpu.memory_space<vmem>>, vector<8x32xf32>
    tpu.vector_store %arg20[%c0_189, %c0_190], %524 {strides = array<i32>} : memref<8x32xf32, #tpu.memory_space<vmem>>, vector<8x32xf32>,
    %c0_191 = arith.constant 0 : index
    %c0_192 = arith.constant 0 : index
    %567 = vector.load %arg21[%c0_191, %c0_192] : memref<8x32xf32, #tpu.memory_space<vmem>>, vector<8x32xf32>
    tpu.vector_store %arg21[%c0_191, %c0_192], %560 {strides = array<i32>} : memref<8x32xf32, #tpu.memory_space<vmem>>, vector<8x32xf32>,
    %c0_193 = arith.constant 0 : index
    %c0_194 = arith.constant 0 : index
    %568 = vector.load %arg22[%c0_193, %c0_194] : memref<8x32xf32, #tpu.memory_space<vmem>>, vector<8x32xf32>
    tpu.vector_store %arg22[%c0_193, %c0_194], %558 {strides = array<i32>} : memref<8x32xf32, #tpu.memory_space<vmem>>, vector<8x32xf32>,
    %c0_i32_195 = arith.constant 0 : i32
    %569 = arith.cmpi eq, %arg0, %c0_i32_195 : i32
    %570 = arith.extui %569 : i1 to i32
    %c0_i32_196 = arith.constant 0 : i32
    %571 = arith.cmpi ne, %570, %c0_i32_196 : i32
    scf.if %571 {
      %c0_197 = arith.constant 0 : index
      %c0_198 = arith.constant 0 : index
      %572 = vector.load %arg15[%c0_197, %c0_198] : memref<8x32xf32, #tpu.memory_space<vmem>>, vector<8x32xf32>
      tpu.vector_store %arg15[%c0_197, %c0_198], %526 {strides = array<i32>} : memref<8x32xf32, #tpu.memory_space<vmem>>, vector<8x32xf32>,
      %c0_199 = arith.constant 0 : index
      %c0_200 = arith.constant 0 : index
      %573 = vector.load %arg16[%c0_199, %c0_200] : memref<8x32xf32, #tpu.memory_space<vmem>>, vector<8x32xf32>
      tpu.vector_store %arg16[%c0_199, %c0_200], %560 {strides = array<i32>} : memref<8x32xf32, #tpu.memory_space<vmem>>, vector<8x32xf32>,
      %c0_201 = arith.constant 0 : index
      %c0_202 = arith.constant 0 : index
      %574 = vector.load %arg17[%c0_201, %c0_202] : memref<8x32xf32, #tpu.memory_space<vmem>>, vector<8x32xf32>
      tpu.vector_store %arg17[%c0_201, %c0_202], %524 {strides = array<i32>} : memref<8x32xf32, #tpu.memory_space<vmem>>, vector<8x32xf32>,
      %c0_203 = arith.constant 0 : index
      %c0_204 = arith.constant 0 : index
      %575 = vector.load %arg18[%c0_203, %c0_204] : memref<8x32xf32, #tpu.memory_space<vmem>>, vector<8x32xf32>
      tpu.vector_store %arg18[%c0_203, %c0_204], %558 {strides = array<i32>} : memref<8x32xf32, #tpu.memory_space<vmem>>, vector<8x32xf32>,
    } else {
    }
    return
  }
  func.func @transform_0(%arg0: i32) -> (i32, i32) {
    %c0_i32 = arith.constant 0 : i32
    %c0_i32_0 = arith.constant 0 : i32
    return %arg0, %c0_i32 : i32, i32
  }
  func.func @transform_1(%arg0: i32) -> (i32, i32) {
    %c0_i32 = arith.constant 0 : i32
    %0 = arith.subi %c0_i32, %arg0 : i32
    %c0_i32_0 = arith.constant 0 : i32
    %c0_i32_1 = arith.constant 0 : i32
    return %0, %c0_i32_0 : i32, i32
  }
  func.func @transform_4(%arg0: i32) -> (i32, i32) {
    %c0_i32 = arith.constant 0 : i32
    %c0_i32_0 = arith.constant 0 : i32
    %c0_i32_1 = arith.constant 0 : i32
    return %c0_i32, %c0_i32_0 : i32, i32
  }
  func.func @transform_7(%arg0: i32) -> (i32, i32) {
    %c0_i32 = arith.constant 0 : i32
    %c0_i32_0 = arith.constant 0 : i32
    %c0_i32_1 = arith.constant 0 : i32
    return %c0_i32, %c0_i32_0 : i32, i32
  }
  func.func @transform_8(%arg0: i32) -> (i32, i32) {
    %c0_i32 = arith.constant 0 : i32
    %c0_i32_0 = arith.constant 0 : i32
    %c0_i32_1 = arith.constant 0 : i32
    return %c0_i32, %c0_i32_0 : i32, i32
  }
  func.func @transform_9(%arg0: i32) -> (i32, i32) {
    %c0_i32 = arith.constant 0 : i32
    %c0_i32_0 = arith.constant 0 : i32
    %c0_i32_1 = arith.constant 0 : i32
    return %c0_i32, %c0_i32_0 : i32, i32
  }
  func.func @transform_10(%arg0: i32) -> (i32, i32) {
    %c0_i32 = arith.constant 0 : i32
    %c0_i32_0 = arith.constant 0 : i32
    %c0_i32_1 = arith.constant 0 : i32
    return %c0_i32, %c0_i32_0 : i32, i32
  }
  func.func @transform_11(%arg0: i32) -> (i32, i32) {
    %c0_i32 = arith.constant 0 : i32
    %c0_i32_0 = arith.constant 0 : i32
    %c0_i32_1 = arith.constant 0 : i32
    return %c0_i32, %c0_i32_0 : i32, i32
  }
  func.func @transform_12(%arg0: i32) -> (i32, i32, i32) {
    %c0_i32 = arith.constant 0 : i32
    %c0_i32_0 = arith.constant 0 : i32
    %c0_i32_1 = arith.constant 0 : i32
    return %arg0, %c0_i32, %c0_i32_0 : i32, i32, i32
  }
  func.func @transform_13(%arg0: i32) -> (i32, i32, i32) {
    %c0_i32 = arith.constant 0 : i32
    %0 = arith.subi %c0_i32, %arg0 : i32
    %c0_i32_0 = arith.constant 0 : i32
    %c0_i32_1 = arith.constant 0 : i32
    %c0_i32_2 = arith.constant 0 : i32
    return %0, %c0_i32_0, %c0_i32_1 : i32, i32, i32
  }
  func.func @transform_14(%arg0: i32) -> (i32, i32) {
    %c0_i32 = arith.constant 0 : i32
    %c0_i32_0 = arith.constant 0 : i32
    %c0_i32_1 = arith.constant 0 : i32
    return %c0_i32, %c0_i32_0 : i32, i32
  }
  func.func @transform_15(%arg0: i32) -> (i32, i32) {
    %c0_i32 = arith.constant 0 : i32
    %c0_i32_0 = arith.constant 0 : i32
    %c0_i32_1 = arith.constant 0 : i32
    return %c0_i32, %c0_i32_0 : i32, i32
  }
  func.func @transform_16(%arg0: i32) -> (i32, i32) {
    %c0_i32 = arith.constant 0 : i32
    %c0_i32_0 = arith.constant 0 : i32
    %c0_i32_1 = arith.constant 0 : i32
    return %c0_i32, %c0_i32_0 : i32, i32
  }
  func.func @transform_17(%arg0: i32) -> (i32, i32) {
    %c0_i32 = arith.constant 0 : i32
    %c0_i32_0 = arith.constant 0 : i32
    %c0_i32_1 = arith.constant 0 : i32
    return %c0_i32, %c0_i32_0 : i32, i32
  }
}

</mosaic_0001>

<llo_original>
// kernel: tpu_custom_call.1
$region0: #{tpu_custom_call.1}
  #allocation0 [shape = 'u32[]', space=smem, size = 0x4, offset = 0x4, fixed_abs, tag = 'smem constant byte address 0x4 - core index']
  #allocation1 [shape = 'u32[144,128]{1,0:T(1,128)}', space=vmem, size = 0x12000, scoped, tag = 'internal scratch']
  #allocation2 [shape = 'f32[8,32]{1,0:T(8,128)}', space=vmem, size = 0x1000, scoped, tag = 'scratch operand']
  #allocation3 [shape = 'f32[8,32]{1,0:T(8,128)}', space=vmem, size = 0x1000, scoped, tag = 'scratch operand']
  #allocation4 [shape = 'f32[8,32]{1,0:T(8,128)}', space=vmem, size = 0x1000, scoped, tag = 'scratch operand']
  #allocation5 [shape = 'f32[8,32]{1,0:T(8,128)}', space=vmem, size = 0x1000, scoped, tag = 'scratch operand']
  #allocation6 [shape = 'f32[64,128]{1,0:T(8,128)}', space=vmem, size = 0x8000, scoped, tag = 'scratch operand']
  #allocation7 [shape = 'f32[64,128]{1,0:T(8,128)}', space=vmem, size = 0x8000, scoped, tag = 'scratch operand']
  #allocation8 [shape = 'bf16[16,128]{1,0:T(8,128)(2,1)}', space=vmem, size = 0x1000, scoped, tag = 'scratch operand']
  #allocation9 [shape = 'bf16[32,128]{1,0:T(8,128)(2,1)}', space=vmem, size = 0x2000, scoped, tag = 'scratch operand']
  #allocation10 [shape = 'bf16[16,128]{1,0:T(8,128)(2,1)}', space=vmem, size = 0x1000, scoped, tag = 'scratch operand']
  #allocation11 [shape = 'bf16[32,128]{1,0:T(8,128)(2,1)}', space=vmem, size = 0x2000, scoped, tag = 'scratch operand']
  #allocation12 [shape = 's32[4]{0}', space=sflag, size = 0x10, scoped, tag = 'scratch operand']
  #allocation23 [shape = 's32[]', space=sflag, size = 0x4, offset = 0, fixed_abs, tag = 'sflag constant byte address 0x0 - dummy sync flag']
  #allocation24 [shape = 's32[]', space=sflag, size = 0x4, offset = 0, fixed_abs, tag = 'sflag constant byte address 0x0 - dummy sync flag']
  #allocation25 [shape = 's32[]', space=sflag, size = 0x4, offset = 0, fixed_abs, tag = 'sflag constant byte address 0x0 - dummy sync flag']
  #allocation26 [shape = 's32[]', space=sflag, size = 0x4, offset = 0, fixed_abs, tag = 'sflag constant byte address 0x0 - dummy sync flag']
  %s0 = inlined_call_operand.vmem [shape: bf16[64,16], index: 0, kind: input, shape index: {}]
  %s1 = inlined_call_operand.vmem [shape: bf16[64,16], index: 1, kind: input, shape index: {}]
  %s2 = inlined_call_operand.vmem [shape: bf16[16,128], index: 2, kind: input, shape index: {}]
  %s3 = inlined_call_operand.vmem [shape: bf16[32,128], index: 3, kind: input, shape index: {}]
  %s4 = inlined_call_operand.vmem [shape: f32[1,128], index: 4, kind: input, shape index: {}]
  %s5 = inlined_call_operand.vmem [shape: bf16[16,128], index: 5, kind: input, shape index: {}]
  %s6 = inlined_call_operand.vmem [shape: bf16[32,128], index: 6, kind: input, shape index: {}]
  %s7 = inlined_call_operand.vmem [shape: f32[1,128], index: 7, kind: input, shape index: {}]
  %s8 = inlined_call_operand.vmem [shape: f32[8,32], index: 8, kind: input, shape index: {}]
  %s9 = inlined_call_operand.vmem [shape: f32[8,32], index: 9, kind: input, shape index: {}]
  %s10 = inlined_call_operand.vmem [shape: f32[8,32], index: 10, kind: input, shape index: {}]
  %s11 = inlined_call_operand.vmem [shape: f32[8,32], index: 11, kind: input, shape index: {}]
  %s12 = inlined_call_operand.hbm [shape: bf16[8,8,32], index: 12, kind: output, shape index: {0}]
  %s13 = inlined_call_operand.hbm [shape: bf16[8,8,32], index: 13, kind: output, shape index: {1}]
  %s14 = inlined_call_operand.hbm [shape: f32[8,32], index: 14, kind: output, shape index: {2}]
  %s15 = inlined_call_operand.hbm [shape: f32[8,32], index: 15, kind: output, shape index: {3}]
  %s16 = inlined_call_operand.hbm [shape: f32[8,32], index: 16, kind: output, shape index: {4}]
  %s17 = inlined_call_operand.hbm [shape: f32[8,32], index: 17, kind: output, shape index: {5}]
  %18 = xla_tuple %s12, %s13, %s14, %s15, %s16, %s17
  %s19 = sld [smem:[#allocation0]]
  $region226: #{tpu_custom_call.1} parent=0
    _
  %s21 = ssub.s32 1, %s19
  %s22 = scalar_select 0, %s21, %s19
  $region1: #{tpu_custom_call.1} parent=0
    #allocation13 [shape = 'u8[16384]{0}', space=vmem, size = 0x4000, scoped, tag = 'output window, operand 0, single buffered']
    #allocation14 [shape = 's32[1]{0}', space=sflag, size = 0x4, scoped, tag = 'scoped memory for tpu_custom_call.1']
    #allocation15 [shape = 'u8[16384]{0}', space=vmem, size = 0x4000, scoped, tag = 'output window, operand 1, single buffered']
    #allocation16 [shape = 's32[1]{0}', space=sflag, size = 0x4, scoped, tag = 'scoped memory for tpu_custom_call.1']
    #allocation17 [shape = 'u8[4096]{0}', space=vmem, size = 0x1000, scoped, tag = 'output window, operand 2, single buffered']
    #allocation18 [shape = 'u8[4096]{0}', space=vmem, size = 0x1000, scoped, tag = 'output window, operand 3, single buffered']
    #allocation19 [shape = 's32[1]{0}', space=sflag, size = 0x4, scoped, tag = 'scoped memory for tpu_custom_call.1']
    #allocation20 [shape = 'u8[4096]{0}', space=vmem, size = 0x1000, scoped, tag = 'output window, operand 4, single buffered']
    #allocation21 [shape = 'u8[4096]{0}', space=vmem, size = 0x1000, scoped, tag = 'output window, operand 5, single buffered']
    #allocation22 [shape = 's32[1]{0}', space=sflag, size = 0x4, scoped, tag = 'scoped memory for tpu_custom_call.1']
    %23 = vsyncpa [#allocation14], 0
    %24 = vsyncpa [#allocation16], 0
    %25 = vsyncpa [#allocation19], 0
    %26 = vsyncpa [#allocation22], 0
    // Predicated region
    $region2: #{tpu_custom_call.1} parent=1 // pred_check
      _
    $region3: #{tpu_custom_call.1} parent=1 // pred_check_branch
      %28 = sbr.rel (0) target = $region5
    $region4: #{tpu_custom_call.1} parent=1 // pred_region
      _
    $region5: #{tpu_custom_call.1} parent=1 // pred_fallthru
      _
    // Predicated region
    $region6: #{tpu_custom_call.1} parent=1 // pred_check
      _
    $region7: #{tpu_custom_call.1} parent=1 // pred_check_branch
      %30 = sbr.rel (0) target = $region9
    $region8: #{tpu_custom_call.1} parent=1 // pred_region
      %s31 = ssub.s32 0, 0
      %s32 = smul.u32 8, %s31
      %p33 = scmp.lt.s32.totalorder %s32, 7
      %s34 = scalar_select %p33, %s32, 7
      %s35 = smul.addr %s34, 4
      %s36 = scalar_lea.vmem %s1, %s35
      %s37 = ssub.s32 0, 0
      %s38 = smul.u32 8, %s37
    $region9: #{tpu_custom_call.1} parent=1 // pred_fallthru
      _
    // Predicated region
    $region10: #{tpu_custom_call.1} parent=1 // pred_check
      _
    $region11: #{tpu_custom_call.1} parent=1 // pred_check_branch
      %40 = sbr.rel (0) target = $region13
    $region12: #{tpu_custom_call.1} parent=1 // pred_region
      _
    $region13: #{tpu_custom_call.1} parent=1 // pred_fallthru
      _
    // Predicated region
    $region14: #{tpu_custom_call.1} parent=1 // pred_check
      _
    $region15: #{tpu_custom_call.1} parent=1 // pred_check_branch
      %42 = sbr.rel (0) target = $region17
    $region16: #{tpu_custom_call.1} parent=1 // pred_region
      _
    $region17: #{tpu_custom_call.1} parent=1 // pred_fallthru
      _
    // Predicated region
    $region18: #{tpu_custom_call.1} parent=1 // pred_check
      _
    $region19: #{tpu_custom_call.1} parent=1 // pred_check_branch
      %44 = sbr.rel (0) target = $region21
    $region20: #{tpu_custom_call.1} parent=1 // pred_region
      _
    $region21: #{tpu_custom_call.1} parent=1 // pred_fallthru
      _
    // Predicated region
    $region22: #{tpu_custom_call.1} parent=1 // pred_check
      _
    $region23: #{tpu_custom_call.1} parent=1 // pred_check_branch
      %46 = sbr.rel (0) target = $region25
    $region24: #{tpu_custom_call.1} parent=1 // pred_region
      _
    $region25: #{tpu_custom_call.1} parent=1 // pred_fallthru
      _
    // Predicated region
    $region26: #{tpu_custom_call.1} parent=1 // pred_check
      _
    $region27: #{tpu_custom_call.1} parent=1 // pred_check_branch
      %48 = sbr.rel (0) target = $region29
    $region28: #{tpu_custom_call.1} parent=1 // pred_region
      _
    $region29: #{tpu_custom_call.1} parent=1 // pred_fallthru
      _
    // Predicated region
    $region30: #{tpu_custom_call.1} parent=1 // pred_check
      _
    $region31: #{tpu_custom_call.1} parent=1 // pred_check_branch
      %50 = sbr.rel (0) target = $region33
    $region32: #{tpu_custom_call.1} parent=1 // pred_region
      _
    $region33: #{tpu_custom_call.1} parent=1 // pred_fallthru
      _
    %s51 = ssub.s32 0, 0
    %s52 = smul.u32 8, %s51
    %p53 = scmp.lt.s32.totalorder %s52, 7
    %s54 = scalar_select %p53, %s52, 7
    %s55 = smul.addr %s54, 4
    %s56 = scalar_lea.vmem %s1, %s55
    %s57 = ssub.s32 0, 0
    %s58 = smul.u32 8, %s57
    %p59 = scmp.lt.s32.totalorder %s58, 7
    %s60 = scalar_select %p59, %s58, 7
    %s61 = smul.addr %s60, 4
    %s62 = scalar_lea.vmem %s1, %s61
    %s63 = ssub.s32 0, 0
    %s64 = smul.u32 8, %s63
    %s65 = ssub.s32 0, 0
    %s66 = smul.u32 8, %s65
    %p68 = scmp.eq.s32.totalorder 0, 0
    // Predicated region
    $region34: #{tpu_custom_call.1} parent=1 // pred_check
      %p69 = pneg %p68
    $region35: #{tpu_custom_call.1} parent=1 // pred_check_branch
      %71 = sbr.rel (%p69) target = $region37
    $region36: #{tpu_custom_call.1} parent=1 // pred_region
      %p73 = scmp.lt.u32.totalorder 8, 8
      %p74 = pneg %p73
      // Predicated region
      $region38: #{tpu_custom_call.1} parent=36 // pred_check
        _
      $region39: #{tpu_custom_call.1} parent=36 // pred_check_branch
        %76 = sbr.rel (%p73) target = $region41
      $region40: #{tpu_custom_call.1} parent=36 // pred_region
        %s92 = sand.u32 8, 7
        %p93 = scmp.eq.s32.totalorder %s92, 0
        // Predicated region
        $region53: #{tpu_custom_call.1} parent=40 // pred_check
          %p94 = pneg %p93
        $region54: #{tpu_custom_call.1} parent=40 // pred_check_branch
          %96 = sbr.rel (%p94) target = $region56
        $region55: #{tpu_custom_call.1} parent=40 // pred_region
          loop: start=0, step=1, limit=1
          $region57: #{tpu_custom_call.1} parent=55 // loop_pre_header
            _
          $region58: #{tpu_custom_call.1} parent=55 // loop_header
            %s98 = sphi 0, %s102
            %p99 = scmp.ge.s32.totalorder %s98, 1
            %s103 = sphi %s2, %s2
            %s104 = sphi [#allocation8], [#allocation8]
          $region59: #{tpu_custom_call.1} parent=55 // loop_header_branch
            %101 = sbr.rel (%p99) target = $region63
          $region60: #{tpu_custom_call.1} parent=55 // loop_body
            %v105 = vld [vmem:[%s103] sm:$0xff]
            %106 = vst [vmem:[%s104] sm:$0xff] %v105
          $region61: #{tpu_custom_call.1} parent=55 // loop_footer
            %s102 = sadd.s32 1, %s98
          $region62: #{tpu_custom_call.1} parent=55 // loop_footer_branch
            %97 = sbr.rel target = $region58
          $region63: #{tpu_custom_call.1} parent=55 // loop_exit
            _
        $region56: #{tpu_custom_call.1} parent=40 // pred_fallthru
          _
        %p107 = pneg %p93
        // Predicated region
        $region64: #{tpu_custom_call.1} parent=40 // pred_check
          _
        $region65: #{tpu_custom_call.1} parent=40 // pred_check_branch
          %109 = sbr.rel (%p93) target = $region67
        $region66: #{tpu_custom_call.1} parent=40 // pred_region
          %s110 = sand.u32 8, 7
        $region67: #{tpu_custom_call.1} parent=40 // pred_fallthru
          _
      $region41: #{tpu_custom_call.1} parent=36 // pred_fallthru
        _
      // Predicated region
      $region42: #{tpu_custom_call.1} parent=36 // pred_check
        %p77 = pneg %p73
      $region43: #{tpu_custom_call.1} parent=36 // pred_check_branch
        %79 = sbr.rel (%p77) target = $region45
      $region44: #{tpu_custom_call.1} parent=36 // pred_region
        %s80 = sshll.u32 1, 8
        %s81 = ssub.s32 %s80, 1
        loop: start=0, step=1, limit=1
        $region46: #{tpu_custom_call.1} parent=44 // loop_pre_header
          _
        $region47: #{tpu_custom_call.1} parent=44 // loop_header
          %s83 = sphi 0, %s87
          %p84 = scmp.ge.s32.totalorder %s83, 1
          %s88 = sphi %s2, %s2
          %s89 = sphi [#allocation8], [#allocation8]
        $region48: #{tpu_custom_call.1} parent=44 // loop_header_branch
          %86 = sbr.rel (%p84) target = $region52
        $region49: #{tpu_custom_call.1} parent=44 // loop_body
          %v90 = vld [vmem:[%s88] sm:%s81]
          %91 = vst [vmem:[%s89] sm:%s81] %v90
        $region50: #{tpu_custom_call.1} parent=44 // loop_footer
          %s87 = sadd.s32 1, %s83
        $region51: #{tpu_custom_call.1} parent=44 // loop_footer_branch
          %82 = sbr.rel target = $region47
        $region52: #{tpu_custom_call.1} parent=44 // loop_exit
          _
      $region45: #{tpu_custom_call.1} parent=36 // pred_fallthru
        _
      // Predicated region
      $region68: #{tpu_custom_call.1} parent=36 // pred_check
        _
      $region69: #{tpu_custom_call.1} parent=36 // pred_check_branch
        %113 = sbr.rel (0) target = $region71
      $region70: #{tpu_custom_call.1} parent=36 // pred_region
        %114 = vsyncadd [#allocation12], 128
      $region71: #{tpu_custom_call.1} parent=36 // pred_fallthru
        _
      %s115 = scalar_lea.sflag [#allocation12], 1
      %p117 = scmp.lt.u32.totalorder 16, 8
      %p118 = pneg %p117
      // Predicated region
      $region72: #{tpu_custom_call.1} parent=36 // pred_check
        _
      $region73: #{tpu_custom_call.1} parent=36 // pred_check_branch
        %120 = sbr.rel (%p117) target = $region75
      $region74: #{tpu_custom_call.1} parent=36 // pred_region
        %s136 = sand.u32 16, 7
        %p137 = scmp.eq.s32.totalorder %s136, 0
        // Predicated region
        $region87: #{tpu_custom_call.1} parent=74 // pred_check
          %p138 = pneg %p137
        $region88: #{tpu_custom_call.1} parent=74 // pred_check_branch
          %140 = sbr.rel (%p138) target = $region90
        $region89: #{tpu_custom_call.1} parent=74 // pred_region
          loop: start=0, step=1, limit=1
          $region91: #{tpu_custom_call.1} parent=89 // loop_pre_header
            _
          $region92: #{tpu_custom_call.1} parent=89 // loop_header
            %s142 = sphi 0, %s146
            %p143 = scmp.ge.s32.totalorder %s142, 1
            %s147 = sphi %s3, %s3
            %s148 = sphi [#allocation9], [#allocation9]
          $region93: #{tpu_custom_call.1} parent=89 // loop_header_branch
            %145 = sbr.rel (%p143) target = $region97
          $region94: #{tpu_custom_call.1} parent=89 // loop_body
            %v149 = vld [vmem:[%s147] sm:$0xff]
            %150 = vst [vmem:[%s148] sm:$0xff] %v149
            %v151 = vld [vmem:[%s147 + $0x8] sm:$0xff]
            %152 = vst [vmem:[%s148 + $0x8] sm:$0xff] %v151
          $region95: #{tpu_custom_call.1} parent=89 // loop_footer
            %s146 = sadd.s32 1, %s142
          $region96: #{tpu_custom_call.1} parent=89 // loop_footer_branch
            %141 = sbr.rel target = $region92
          $region97: #{tpu_custom_call.1} parent=89 // loop_exit
            _
        $region90: #{tpu_custom_call.1} parent=74 // pred_fallthru
          _
        %p153 = pneg %p137
        // Predicated region
        $region98: #{tpu_custom_call.1} parent=74 // pred_check
          _
        $region99: #{tpu_custom_call.1} parent=74 // pred_check_branch
          %155 = sbr.rel (%p137) target = $region101
        $region100: #{tpu_custom_call.1} parent=74 // pred_region
          %s156 = sand.u32 16, 7
        $region101: #{tpu_custom_call.1} parent=74 // pred_fallthru
          _
      $region75: #{tpu_custom_call.1} parent=36 // pred_fallthru
        _
      // Predicated region
      $region76: #{tpu_custom_call.1} parent=36 // pred_check
        %p121 = pneg %p117
      $region77: #{tpu_custom_call.1} parent=36 // pred_check_branch
        %123 = sbr.rel (%p121) target = $region79
      $region78: #{tpu_custom_call.1} parent=36 // pred_region
        %s124 = sshll.u32 1, 16
        %s125 = ssub.s32 %s124, 1
        loop: start=0, step=1, limit=1
        $region80: #{tpu_custom_call.1} parent=78 // loop_pre_header
          _
        $region81: #{tpu_custom_call.1} parent=78 // loop_header
          %s127 = sphi 0, %s131
          %p128 = scmp.ge.s32.totalorder %s127, 1
          %s132 = sphi %s3, %s3
          %s133 = sphi [#allocation9], [#allocation9]
        $region82: #{tpu_custom_call.1} parent=78 // loop_header_branch
          %130 = sbr.rel (%p128) target = $region86
        $region83: #{tpu_custom_call.1} parent=78 // loop_body
          %v134 = vld [vmem:[%s132] sm:%s125]
          %135 = vst [vmem:[%s133] sm:%s125] %v134
        $region84: #{tpu_custom_call.1} parent=78 // loop_footer
          %s131 = sadd.s32 1, %s127
        $region85: #{tpu_custom_call.1} parent=78 // loop_footer_branch
          %126 = sbr.rel target = $region81
        $region86: #{tpu_custom_call.1} parent=78 // loop_exit
          _
      $region79: #{tpu_custom_call.1} parent=36 // pred_fallthru
        _
      // Predicated region
      $region102: #{tpu_custom_call.1} parent=36 // pred_check
        _
      $region103: #{tpu_custom_call.1} parent=36 // pred_check_branch
        %159 = sbr.rel (0) target = $region105
      $region104: #{tpu_custom_call.1} parent=36 // pred_region
        %160 = vsyncadd %s115, 256
      $region105: #{tpu_custom_call.1} parent=36 // pred_fallthru
        _
      %s161 = scalar_lea.sflag [#allocation12], 2
      %p163 = scmp.lt.u32.totalorder 8, 8
      %p164 = pneg %p163
      // Predicated region
      $region106: #{tpu_custom_call.1} parent=36 // pred_check
        _
      $region107: #{tpu_custom_call.1} parent=36 // pred_check_branch
        %166 = sbr.rel (%p163) target = $region109
      $region108: #{tpu_custom_call.1} parent=36 // pred_region
        %s182 = sand.u32 8, 7
        %p183 = scmp.eq.s32.totalorder %s182, 0
        // Predicated region
        $region121: #{tpu_custom_call.1} parent=108 // pred_check
          %p184 = pneg %p183
        $region122: #{tpu_custom_call.1} parent=108 // pred_check_branch
          %186 = sbr.rel (%p184) target = $region124
        $region123: #{tpu_custom_call.1} parent=108 // pred_region
          loop: start=0, step=1, limit=1
          $region125: #{tpu_custom_call.1} parent=123 // loop_pre_header
            _
          $region126: #{tpu_custom_call.1} parent=123 // loop_header
            %s188 = sphi 0, %s192
            %p189 = scmp.ge.s32.totalorder %s188, 1
            %s193 = sphi %s5, %s5
            %s194 = sphi [#allocation10], [#allocation10]
          $region127: #{tpu_custom_call.1} parent=123 // loop_header_branch
            %191 = sbr.rel (%p189) target = $region131
          $region128: #{tpu_custom_call.1} parent=123 // loop_body
            %v195 = vld [vmem:[%s193] sm:$0xff]
            %196 = vst [vmem:[%s194] sm:$0xff] %v195
          $region129: #{tpu_custom_call.1} parent=123 // loop_footer
            %s192 = sadd.s32 1, %s188
          $region130: #{tpu_custom_call.1} parent=123 // loop_footer_branch
            %187 = sbr.rel target = $region126
          $region131: #{tpu_custom_call.1} parent=123 // loop_exit
            _
        $region124: #{tpu_custom_call.1} parent=108 // pred_fallthru
          _
        %p197 = pneg %p183
        // Predicated region
        $region132: #{tpu_custom_call.1} parent=108 // pred_check
          _
        $region133: #{tpu_custom_call.1} parent=108 // pred_check_branch
          %199 = sbr.rel (%p183) target = $region135
        $region134: #{tpu_custom_call.1} parent=108 // pred_region
          %s200 = sand.u32 8, 7
        $region135: #{tpu_custom_call.1} parent=108 // pred_fallthru
          _
      $region109: #{tpu_custom_call.1} parent=36 // pred_fallthru
        _
      // Predicated region
      $region110: #{tpu_custom_call.1} parent=36 // pred_check
        %p167 = pneg %p163
      $region111: #{tpu_custom_call.1} parent=36 // pred_check_branch
        %169 = sbr.rel (%p167) target = $region113
      $region112: #{tpu_custom_call.1} parent=36 // pred_region
        %s170 = sshll.u32 1, 8
        %s171 = ssub.s32 %s170, 1
        loop: start=0, step=1, limit=1
        $region114: #{tpu_custom_call.1} parent=112 // loop_pre_header
          _
        $region115: #{tpu_custom_call.1} parent=112 // loop_header
          %s173 = sphi 0, %s177
          %p174 = scmp.ge.s32.totalorder %s173, 1
          %s178 = sphi %s5, %s5
          %s179 = sphi [#allocation10], [#allocation10]
        $region116: #{tpu_custom_call.1} parent=112 // loop_header_branch
          %176 = sbr.rel (%p174) target = $region120
        $region117: #{tpu_custom_call.1} parent=112 // loop_body
          %v180 = vld [vmem:[%s178] sm:%s171]
          %181 = vst [vmem:[%s179] sm:%s171] %v180
        $region118: #{tpu_custom_call.1} parent=112 // loop_footer
          %s177 = sadd.s32 1, %s173
        $region119: #{tpu_custom_call.1} parent=112 // loop_footer_branch
          %172 = sbr.rel target = $region115
        $region120: #{tpu_custom_call.1} parent=112 // loop_exit
          _
      $region113: #{tpu_custom_call.1} parent=36 // pred_fallthru
        _
      // Predicated region
      $region136: #{tpu_custom_call.1} parent=36 // pred_check
        _
      $region137: #{tpu_custom_call.1} parent=36 // pred_check_branch
        %203 = sbr.rel (0) target = $region139
      $region138: #{tpu_custom_call.1} parent=36 // pred_region
        %204 = vsyncadd %s161, 128
      $region139: #{tpu_custom_call.1} parent=36 // pred_fallthru
        _
      %s205 = scalar_lea.sflag [#allocation12], 3
      %p207 = scmp.lt.u32.totalorder 16, 8
      %p208 = pneg %p207
      // Predicated region
      $region140: #{tpu_custom_call.1} parent=36 // pred_check
        _
      $region141: #{tpu_custom_call.1} parent=36 // pred_check_branch
        %210 = sbr.rel (%p207) target = $region143
      $region142: #{tpu_custom_call.1} parent=36 // pred_region
        %s226 = sand.u32 16, 7
        %p227 = scmp.eq.s32.totalorder %s226, 0
        // Predicated region
        $region155: #{tpu_custom_call.1} parent=142 // pred_check
          %p228 = pneg %p227
        $region156: #{tpu_custom_call.1} parent=142 // pred_check_branch
          %230 = sbr.rel (%p228) target = $region158
        $region157: #{tpu_custom_call.1} parent=142 // pred_region
          loop: start=0, step=1, limit=1
          $region159: #{tpu_custom_call.1} parent=157 // loop_pre_header
            _
          $region160: #{tpu_custom_call.1} parent=157 // loop_header
            %s232 = sphi 0, %s236
            %p233 = scmp.ge.s32.totalorder %s232, 1
            %s237 = sphi %s6, %s6
            %s238 = sphi [#allocation11], [#allocation11]
          $region161: #{tpu_custom_call.1} parent=157 // loop_header_branch
            %235 = sbr.rel (%p233) target = $region165
          $region162: #{tpu_custom_call.1} parent=157 // loop_body
            %v239 = vld [vmem:[%s237] sm:$0xff]
            %240 = vst [vmem:[%s238] sm:$0xff] %v239
            %v241 = vld [vmem:[%s237 + $0x8] sm:$0xff]
            %242 = vst [vmem:[%s238 + $0x8] sm:$0xff] %v241
          $region163: #{tpu_custom_call.1} parent=157 // loop_footer
            %s236 = sadd.s32 1, %s232
          $region164: #{tpu_custom_call.1} parent=157 // loop_footer_branch
            %231 = sbr.rel target = $region160
          $region165: #{tpu_custom_call.1} parent=157 // loop_exit
            _
        $region158: #{tpu_custom_call.1} parent=142 // pred_fallthru
          _
        %p243 = pneg %p227
        // Predicated region
        $region166: #{tpu_custom_call.1} parent=142 // pred_check
          _
        $region167: #{tpu_custom_call.1} parent=142 // pred_check_branch
          %245 = sbr.rel (%p227) target = $region169
        $region168: #{tpu_custom_call.1} parent=142 // pred_region
          %s246 = sand.u32 16, 7
        $region169: #{tpu_custom_call.1} parent=142 // pred_fallthru
          _
      $region143: #{tpu_custom_call.1} parent=36 // pred_fallthru
        _
      // Predicated region
      $region144: #{tpu_custom_call.1} parent=36 // pred_check
        %p211 = pneg %p207
      $region145: #{tpu_custom_call.1} parent=36 // pred_check_branch
        %213 = sbr.rel (%p211) target = $region147
      $region146: #{tpu_custom_call.1} parent=36 // pred_region
        %s214 = sshll.u32 1, 16
        %s215 = ssub.s32 %s214, 1
        loop: start=0, step=1, limit=1
        $region148: #{tpu_custom_call.1} parent=146 // loop_pre_header
          _
        $region149: #{tpu_custom_call.1} parent=146 // loop_header
          %s217 = sphi 0, %s221
          %p218 = scmp.ge.s32.totalorder %s217, 1
          %s222 = sphi %s6, %s6
          %s223 = sphi [#allocation11], [#allocation11]
        $region150: #{tpu_custom_call.1} parent=146 // loop_header_branch
          %220 = sbr.rel (%p218) target = $region154
        $region151: #{tpu_custom_call.1} parent=146 // loop_body
          %v224 = vld [vmem:[%s222] sm:%s215]
          %225 = vst [vmem:[%s223] sm:%s215] %v224
        $region152: #{tpu_custom_call.1} parent=146 // loop_footer
          %s221 = sadd.s32 1, %s217
        $region153: #{tpu_custom_call.1} parent=146 // loop_footer_branch
          %216 = sbr.rel target = $region149
        $region154: #{tpu_custom_call.1} parent=146 // loop_exit
          _
      $region147: #{tpu_custom_call.1} parent=36 // pred_fallthru
        _
      // Predicated region
      $region170: #{tpu_custom_call.1} parent=36 // pred_check
        _
      $region171: #{tpu_custom_call.1} parent=36 // pred_check_branch
        %249 = sbr.rel (0) target = $region173
      $region172: #{tpu_custom_call.1} parent=36 // pred_region
        %250 = vsyncadd %s205, 256
      $region173: #{tpu_custom_call.1} parent=36 // pred_fallthru
        _
      %v251 = vld [vmem:[%s8] sm:$0xff]
      %vm252 = vcmask 261120
      %253 = vst.msk [vmem:[#allocation2] sm:$0xff] %vm252, %v251
      %v254 = vld [vmem:[%s9] sm:$0xff]
      %255 = vst.msk [vmem:[#allocation3] sm:$0xff] %vm252, %v254
      %v256 = vld [vmem:[%s10] sm:$0xff]
      %257 = vst.msk [vmem:[#allocation4] sm:$0xff] %vm252, %v256
      %v258 = vld [vmem:[%s11] sm:$0xff]
      %259 = vst.msk [vmem:[#allocation5] sm:$0xff] %vm252, %v258
      %s260 = smul.u32 4, 2
      %s261 = smul.u32 %s260, 1
      %s262 = sshll.u32 %s261, 4
      %263 = dma.done [#allocation12], %s262
      %s264 = smul.u32 4, 4
      %s265 = smul.u32 %s264, 1
      %s266 = sshll.u32 %s265, 4
      %267 = dma.done %s115, %s266
      %s268 = sshll.u32 %s261, 4
      %269 = dma.done %s161, %s268
      %s270 = sshll.u32 %s265, 4
      %271 = dma.done %s205, %s270
    $region37: #{tpu_custom_call.1} parent=1 // pred_fallthru
      _
    %v272 = vld [vmem:[%s0] sm:$0xf]
    %v273 = vld [vmem:[%s0 + $0x4] sm:$0xf]
    %v274 = vld [vmem:[%s0 + $0x8] sm:$0xf]
    %v275 = vld [vmem:[%s0 + $0xc] sm:$0xf]
    %v276 = vld [vmem:[%s0 + $0x10] sm:$0xf]
    %v277 = vld [vmem:[%s0 + $0x14] sm:$0xf]
    %v278 = vld [vmem:[%s0 + $0x18] sm:$0xf]
    %v279 = vld [vmem:[%s0 + $0x1c] sm:$0xf]
    %v280 = vld [vmem:[#allocation8] sm:$0xf]
    %v281 = vld [vmem:[#allocation8 + $0x4] sm:$0xf]
    %v282 = vld [vmem:[%s62] sm:$0xf]
    %v283 = vld [vmem:[%s62 + $0x4] sm:$0xf]
    %v284 = vld [vmem:[%s62 + $0x8] sm:$0xf]
    %v285 = vld [vmem:[%s62 + $0xc] sm:$0xf]
    %v286 = vld [vmem:[%s62 + $0x10] sm:$0xf]
    %v287 = vld [vmem:[%s62 + $0x14] sm:$0xf]
    %v288 = vld [vmem:[%s62 + $0x18] sm:$0xf]
    %v289 = vld [vmem:[%s62 + $0x1c] sm:$0xf]
    %v290 = vld [vmem:[#allocation10] sm:$0xf]
    %v291 = vld [vmem:[#allocation10 + $0x4] sm:$0xf]
    %v292 = vld [vmem:[%s4] sm:$0x1]
    %v294 = vlaneseq
    %v295 = vshrl.u32 %v294, 7
    %v296 = vsub.s32 0, %v295
    %v297 = vrot.slane %v292, %v296
    %v307 = vunpack.c.l.b16 %v272
    %v308 = vunpack.c.l.b16 %v273
    %v309 = vunpack.c.l.b16 %v274
    %v310 = vunpack.c.l.b16 %v275
    %v311 = vunpack.c.l.b16 %v276
    %v312 = vunpack.c.l.b16 %v277
    %v313 = vunpack.c.l.b16 %v278
    %v314 = vunpack.c.l.b16 %v279
    %v315 = vpack.c.b16 %v308, %v307
    %v316 = vpack.c.b16 %v310, %v309
    %v317 = vpack.c.b16 %v312, %v311
    %v318 = vpack.c.b16 %v314, %v313
    %v321 = vunpack.c.l.b16 %v280
    %v322 = vunpack.c.l.b16 %v281
    %v323 = vpack.c.b16 %v322, %v321
    %vm325 = vcmask 130048
    %v327 = vsel %vm325, %v315, 0
    %v330 = vsel %vm325, %v316, 0
    %v333 = vsel %vm325, %v317, 0
    %v336 = vsel %vm325, %v318, 0
    %338 = vmatprep.subr.bf16.mxu0 0
    %339 = vmatpush1.bf16.msra.mxu0 0
    %340 = vmatprep.subr.bf16.mxu0 0
    %341 = vmatpush1.bf16.msra.mxu0 0
    %342 = vmatprep.subr.bf16.mxu0 0
    %343 = vmatpush1.bf16.msra.mxu0 0
    %344 = vmatprep.subr.bf16.mxu0 0
    %345 = vmatpush1.bf16.msra.mxu0 0
    %346 = vmatprep.subr.bf16.mxu0 0
    %347 = vmatpush1.bf16.msra.mxu0 0
    %348 = vmatprep.subr.bf16.mxu0 0
    %349 = vmatpush1.bf16.msra.mxu0 0
    %350 = vmatprep.subr.bf16.mxu0 0
    %351 = vmatpush1.bf16.msra.mxu0 0
    %352 = vmatprep.subr.bf16.mxu0 0
    %353 = vmatpush1.bf16.msra.mxu0 %v323
    %354 = vmatprep.subr.bf16.mxu0 0
    %355 = vmatpush2.bf16.msra.mxu0 0
    %356 = vmatprep.subr.bf16.mxu0 0
    %357 = vmatpush2.bf16.msra.mxu0 0
    %358 = vmatprep.subr.bf16.mxu0 0
    %359 = vmatpush2.bf16.msra.mxu0 0
    %360 = vmatprep.subr.bf16.mxu0 0
    %361 = vmatpush2.bf16.msra.mxu0 0
    %362 = vmatprep.subr.bf16.mxu0 0
    %363 = vmatpush2.bf16.msra.mxu0 0
    %364 = vmatprep.subr.bf16.mxu0 0
    %365 = vmatpush2.bf16.msra.mxu0 0
    %366 = vmatprep.subr.bf16.mxu0 0
    %367 = vmatpush2.bf16.msra.mxu0 0
    %368 = vmatprep.subr.bf16.mxu0 0
    %369 = vmatpush2.bf16.msra.mxu0 0
    %370 = vmatprep.mubr.bf16.mxu0 0
    %371 = vmatmul.mubr.bf16.gmra.mxu0 %v327
    %v372 = vpop.f32.mrf.mxu0
    %v373 = vadd.f32 %v297, %v372
    %v374 = vpop.f32.mrf.mxu0
    %v375 = vpop.f32.mrf.mxu0
    %v376 = vadd.f32 %v297, %v375
    %v377 = vpop.f32.mrf.mxu0
    %378 = vmatprep.mubr.bf16.mxu0 0
    %379 = vmatmul.mubr.bf16.gmra.mxu0 %v330
    %v380 = vpop.f32.mrf.mxu0
    %v381 = vadd.f32 %v297, %v380
    %v382 = vpop.f32.mrf.mxu0
    %v383 = vpop.f32.mrf.mxu0
    %v384 = vadd.f32 %v297, %v383
    %v385 = vpop.f32.mrf.mxu0
    %386 = vmatprep.mubr.bf16.mxu0 0
    %387 = vmatmul.mubr.bf16.gmra.mxu0 %v333
    %v388 = vpop.f32.mrf.mxu0
    %v389 = vadd.f32 %v297, %v388
    %v390 = vpop.f32.mrf.mxu0
    %v391 = vpop.f32.mrf.mxu0
    %v392 = vadd.f32 %v297, %v391
    %v393 = vpop.f32.mrf.mxu0
    %394 = vmatprep.mubr.bf16.mxu0 0
    %395 = vmatmul.mubr.bf16.gmra.mxu0 %v336
    %v396 = vpop.f32.mrf.mxu0
    %v397 = vadd.f32 %v297, %v396
    %v398 = vpop.f32.mrf.mxu0
    %v399 = vpop.f32.mrf.mxu0
    %v400 = vadd.f32 %v297, %v399
    %v401 = vpop.f32.mrf.mxu0
    %402 = vdwg.mxu0
    %403 = vst [vmem:[#allocation6] sm:$0xff] %v373
    %404 = vst [vmem:[#allocation6 + $0x8] sm:$0xff] %v376
    %405 = vst [vmem:[#allocation6 + $0x10] sm:$0xff] %v381
    %406 = vst [vmem:[#allocation6 + $0x18] sm:$0xff] %v384
    %407 = vst [vmem:[#allocation6 + $0x20] sm:$0xff] %v389
    %408 = vst [vmem:[#allocation6 + $0x28] sm:$0xff] %v392
    %409 = vst [vmem:[#allocation6 + $0x30] sm:$0xff] %v397
    %410 = vst [vmem:[#allocation6 + $0x38] sm:$0xff] %v400
    %v411 = vld [vmem:[%s7] sm:$0x1]
    %v413 = vlaneseq
    %v414 = vshrl.u32 %v413, 7
    %v415 = vsub.s32 0, %v414
    %v416 = vrot.slane %v411, %v415
    %v426 = vunpack.c.l.b16 %v282
    %v427 = vunpack.c.l.b16 %v283
    %v428 = vunpack.c.l.b16 %v284
    %v429 = vunpack.c.l.b16 %v285
    %v430 = vunpack.c.l.b16 %v286
    %v431 = vunpack.c.l.b16 %v287
    %v432 = vunpack.c.l.b16 %v288
    %v433 = vunpack.c.l.b16 %v289
    %v434 = vpack.c.b16 %v427, %v426
    %v435 = vpack.c.b16 %v429, %v428
    %v436 = vpack.c.b16 %v431, %v430
    %v437 = vpack.c.b16 %v433, %v432
    %v440 = vunpack.c.l.b16 %v290
    %v441 = vunpack.c.l.b16 %v291
    %v442 = vpack.c.b16 %v441, %v440
    %v445 = vsel %vm325, %v434, 0
    %v448 = vsel %vm325, %v435, 0
    %v451 = vsel %vm325, %v436, 0
    %v454 = vsel %vm325, %v437, 0
    %456 = vmatprep.subr.bf16.mxu0 0
    %457 = vmatpush1.bf16.msra.mxu0 0
    %458 = vmatprep.subr.bf16.mxu0 0
    %459 = vmatpush1.bf16.msra.mxu0 0
    %460 = vmatprep.subr.bf16.mxu0 0
    %461 = vmatpush1.bf16.msra.mxu0 0
    %462 = vmatprep.subr.bf16.mxu0 0
    %463 = vmatpush1.bf16.msra.mxu0 0
    %464 = vmatprep.subr.bf16.mxu0 0
    %465 = vmatpush1.bf16.msra.mxu0 0
    %466 = vmatprep.subr.bf16.mxu0 0
    %467 = vmatpush1.bf16.msra.mxu0 0
    %468 = vmatprep.subr.bf16.mxu0 0
    %469 = vmatpush1.bf16.msra.mxu0 0
    %470 = vmatprep.subr.bf16.mxu0 0
    %471 = vmatpush1.bf16.msra.mxu0 %v442
    %472 = vmatprep.subr.bf16.mxu0 0
    %473 = vmatpush2.bf16.msra.mxu0 0
    %474 = vmatprep.subr.bf16.mxu0 0
    %475 = vmatpush2.bf16.msra.mxu0 0
    %476 = vmatprep.subr.bf16.mxu0 0
    %477 = vmatpush2.bf16.msra.mxu0 0
    %478 = vmatprep.subr.bf16.mxu0 0
    %479 = vmatpush2.bf16.msra.mxu0 0
    %480 = vmatprep.subr.bf16.mxu0 0
    %481 = vmatpush2.bf16.msra.mxu0 0
    %482 = vmatprep.subr.bf16.mxu0 0
    %483 = vmatpush2.bf16.msra.mxu0 0
    %484 = vmatprep.subr.bf16.mxu0 0
    %485 = vmatpush2.bf16.msra.mxu0 0
    %486 = vmatprep.subr.bf16.mxu0 0
    %487 = vmatpush2.bf16.msra.mxu0 0
    %488 = vmatprep.mubr.bf16.mxu0 0
    %489 = vmatmul.mubr.bf16.gmra.mxu0 %v445
    %v490 = vpop.f32.mrf.mxu0
    %v491 = vadd.f32 %v416, %v490
    %v492 = vpop.f32.mrf.mxu0
    %v493 = vpop.f32.mrf.mxu0
    %v494 = vadd.f32 %v416, %v493
    %v495 = vpop.f32.mrf.mxu0
    %496 = vmatprep.mubr.bf16.mxu0 0
    %497 = vmatmul.mubr.bf16.gmra.mxu0 %v448
    %v498 = vpop.f32.mrf.mxu0
    %v499 = vadd.f32 %v416, %v498
    %v500 = vpop.f32.mrf.mxu0
    %v501 = vpop.f32.mrf.mxu0
    %v502 = vadd.f32 %v416, %v501
    %v503 = vpop.f32.mrf.mxu0
    %504 = vmatprep.mubr.bf16.mxu0 0
    %505 = vmatmul.mubr.bf16.gmra.mxu0 %v451
    %v506 = vpop.f32.mrf.mxu0
    %v507 = vadd.f32 %v416, %v506
    %v508 = vpop.f32.mrf.mxu0
    %v509 = vpop.f32.mrf.mxu0
    %v510 = vadd.f32 %v416, %v509
    %v511 = vpop.f32.mrf.mxu0
    %512 = vmatprep.mubr.bf16.mxu0 0
    %513 = vmatmul.mubr.bf16.gmra.mxu0 %v454
    %v514 = vpop.f32.mrf.mxu0
    %v515 = vadd.f32 %v416, %v514
    %v516 = vpop.f32.mrf.mxu0
    %v517 = vpop.f32.mrf.mxu0
    %v518 = vadd.f32 %v416, %v517
    %v519 = vpop.f32.mrf.mxu0
    %520 = vdwg.mxu0
    %521 = vst [vmem:[#allocation7] sm:$0xff] %v491
    %522 = vst [vmem:[#allocation7 + $0x8] sm:$0xff] %v494
    %523 = vst [vmem:[#allocation7 + $0x10] sm:$0xff] %v499
    %524 = vst [vmem:[#allocation7 + $0x18] sm:$0xff] %v502
    %525 = vst [vmem:[#allocation7 + $0x20] sm:$0xff] %v507
    %526 = vst [vmem:[#allocation7 + $0x28] sm:$0xff] %v510
    %527 = vst [vmem:[#allocation7 + $0x30] sm:$0xff] %v515
    %528 = vst [vmem:[#allocation7 + $0x38] sm:$0xff] %v518
    %v529 = vld [vmem:[#allocation2] sm:$0xff]
    %v530 = vld [vmem:[#allocation3] sm:$0xff]
    %v531 = vld [vmem:[#allocation4] sm:$0xff]
    %v532 = vld [vmem:[#allocation5] sm:$0xff]
    %v533 = vld [vmem:[#allocation6] sm:$0xff]
    %v534 = vpack.c.bf16 %v529, %v529
    %v535 = vld [vmem:[#allocation9] sm:$0xf]
    %v536 = vld [vmem:[#allocation9 + $0x4] sm:$0xf]
    %v537 = vld [vmem:[#allocation9 + $0x8] sm:$0xf]
    %v538 = vld [vmem:[#allocation9 + $0xc] sm:$0xf]
    %v543 = vunpack.c.l.b16 %v535
    %v544 = vunpack.c.l.b16 %v536
    %v545 = vunpack.c.l.b16 %v537
    %v546 = vunpack.c.l.b16 %v538
    %v547 = vpack.c.b16 %v544, %v543
    %v548 = vpack.c.b16 %v546, %v545
    %vm551 = vcmask 261120
    %v553 = vsel %vm551, %v534, 0
    %555 = vmatprep.subr.bf16.mxu0 0
    %556 = vmatpush1.bf16.msra.mxu0 0
    %557 = vmatprep.subr.bf16.mxu0 0
    %558 = vmatpush1.bf16.msra.mxu0 0
    %559 = vmatprep.subr.bf16.mxu0 0
    %560 = vmatpush1.bf16.msra.mxu0 0
    %561 = vmatprep.subr.bf16.mxu0 0
    %562 = vmatpush1.bf16.msra.mxu0 0
    %563 = vmatprep.subr.bf16.mxu0 0
    %564 = vmatpush1.bf16.msra.mxu0 0
    %565 = vmatprep.subr.bf16.mxu0 0
    %566 = vmatpush1.bf16.msra.mxu0 0
    %567 = vmatprep.subr.bf16.mxu0 0
    %568 = vmatpush1.bf16.msra.mxu0 %v548
    %569 = vmatprep.subr.bf16.mxu0 0
    %570 = vmatpush1.bf16.msra.mxu0 %v547
    %571 = vmatprep.subr.bf16.mxu0 0
    %572 = vmatpush2.bf16.msra.mxu0 0
    %573 = vmatprep.subr.bf16.mxu0 0
    %574 = vmatpush2.bf16.msra.mxu0 0
    %575 = vmatprep.subr.bf16.mxu0 0
    %576 = vmatpush2.bf16.msra.mxu0 0
    %577 = vmatprep.subr.bf16.mxu0 0
    %578 = vmatpush2.bf16.msra.mxu0 0
    %579 = vmatprep.subr.bf16.mxu0 0
    %580 = vmatpush2.bf16.msra.mxu0 0
    %581 = vmatprep.subr.bf16.mxu0 0
    %582 = vmatpush2.bf16.msra.mxu0 0
    %583 = vmatprep.subr.bf16.mxu0 0
    %584 = vmatpush2.bf16.msra.mxu0 0
    %585 = vmatprep.subr.bf16.mxu0 0
    %586 = vmatpush2.bf16.msra.mxu0 0
    %587 = vmatprep.mubr.bf16.mxu0 0
    %588 = vmatmul.mubr.bf16.gmra.mxu0 %v553
    %v589 = vpop.f32.mrf.mxu0
    %v590 = vadd.f32 0.0, %v589
    %v591 = vpop.f32.mrf.mxu0
    %v592 = vpop.f32.mrf.mxu0
    %v593 = vpop.f32.mrf.mxu0
    %594 = vdwg.mxu0
    %v595 = vadd.f32 %v533, %v590
    %v596 = vxor.u32 %v595, 2147483648
    %v597 = vmul.f32 %v596, 1.442695
    %v598 = vpow.pop %v597
    %v599 = vadd.f32 %v598, 1.0
    %v600 = vrcp.pop %v599
    %v601 = vmul.f32 1.0, %v600
    %v602 = vtanh.pop %v595
    %604 = vrot.lane.b32.xlu0 %v530, 32
    %v605 = vpop.permute.xlu0 %604
    %v607 = vmul.f32 %v601, %v605
    %609 = vrot.lane.b32.xlu0 %v602, 64
    %v610 = vpop.permute.xlu0 %609
    %v612 = vmul.f32 %v601, %v610
    %614 = vrot.lane.b32.xlu0 %v612, 32
    %v615 = vpop.permute.xlu0 %614
    %v617 = vadd.f32 %v607, %v615
    %v618 = vtanh.pop %v617
    %620 = vrot.lane.b32.xlu0 %v618, 64
    %v621 = vpop.permute.xlu0 %620
    %v623 = vmul.f32 %v601, %v621
    %v624 = vpack.c.bf16 %v623, %v623
    %v626 = vunpack.c.l.b16 %v624
    %v627 = vpack.c.b16 %v626, %v626
    %628 = vrot.lane.b32.xlu0 %v627, 32
    %v629 = vpop.permute.xlu0 %628
    %vm631 = vcmask 257024
    %632 = vst.msk [vmem:[#allocation13] sm:$0xf] %vm631, %v629
    %v633 = vld [vmem:[#allocation7 + $0x38] sm:$0xff]
    %v634 = vpack.c.bf16 %v531, %v531
    %v635 = vld [vmem:[#allocation11] sm:$0xf]
    %v636 = vld [vmem:[#allocation11 + $0x4] sm:$0xf]
    %v637 = vld [vmem:[#allocation11 + $0x8] sm:$0xf]
    %v638 = vld [vmem:[#allocation11 + $0xc] sm:$0xf]
    %v643 = vunpack.c.l.b16 %v635
    %v644 = vunpack.c.l.b16 %v636
    %v645 = vunpack.c.l.b16 %v637
    %v646 = vunpack.c.l.b16 %v638
    %v647 = vpack.c.b16 %v644, %v643
    %v648 = vpack.c.b16 %v646, %v645
    %v652 = vsel %vm551, %v634, 0
    %654 = vmatprep.subr.bf16.mxu0 0
    %655 = vmatpush1.bf16.msra.mxu0 0
    %656 = vmatprep.subr.bf16.mxu0 0
    %657 = vmatpush1.bf16.msra.mxu0 0
    %658 = vmatprep.subr.bf16.mxu0 0
    %659 = vmatpush1.bf16.msra.mxu0 0
    %660 = vmatprep.subr.bf16.mxu0 0
    %661 = vmatpush1.bf16.msra.mxu0 0
    %662 = vmatprep.subr.bf16.mxu0 0
    %663 = vmatpush1.bf16.msra.mxu0 0
    %664 = vmatprep.subr.bf16.mxu0 0
    %665 = vmatpush1.bf16.msra.mxu0 0
    %666 = vmatprep.subr.bf16.mxu0 0
    %667 = vmatpush1.bf16.msra.mxu0 %v648
    %668 = vmatprep.subr.bf16.mxu0 0
    %669 = vmatpush1.bf16.msra.mxu0 %v647
    %670 = vmatprep.subr.bf16.mxu0 0
    %671 = vmatpush2.bf16.msra.mxu0 0
    %672 = vmatprep.subr.bf16.mxu0 0
    %673 = vmatpush2.bf16.msra.mxu0 0
    %674 = vmatprep.subr.bf16.mxu0 0
    %675 = vmatpush2.bf16.msra.mxu0 0
    %676 = vmatprep.subr.bf16.mxu0 0
    %677 = vmatpush2.bf16.msra.mxu0 0
    %678 = vmatprep.subr.bf16.mxu0 0
    %679 = vmatpush2.bf16.msra.mxu0 0
    %680 = vmatprep.subr.bf16.mxu0 0
    %681 = vmatpush2.bf16.msra.mxu0 0
    %682 = vmatprep.subr.bf16.mxu0 0
    %683 = vmatpush2.bf16.msra.mxu0 0
    %684 = vmatprep.subr.bf16.mxu0 0
    %685 = vmatpush2.bf16.msra.mxu0 0
    %686 = vmatprep.mubr.bf16.mxu0 0
    %687 = vmatmul.mubr.bf16.gmra.mxu0 %v652
    %v688 = vpop.f32.mrf.mxu0
    %v689 = vadd.f32 0.0, %v688
    %v690 = vpop.f32.mrf.mxu0
    %v691 = vpop.f32.mrf.mxu0
    %v692 = vpop.f32.mrf.mxu0
    %693 = vdwg.mxu0
    %v694 = vadd.f32 %v633, %v689
    %v695 = vxor.u32 %v694, 2147483648
    %v696 = vmul.f32 %v695, 1.442695
    %v697 = vpow.pop %v696
    %v698 = vadd.f32 %v697, 1.0
    %v699 = vrcp.pop %v698
    %v700 = vmul.f32 1.0, %v699
    %v701 = vtanh.pop %v694
    %703 = vrot.lane.b32.xlu0 %v532, 32
    %v704 = vpop.permute.xlu0 %703
    %v706 = vmul.f32 %v700, %v704
    %708 = vrot.lane.b32.xlu0 %v701, 64
    %v709 = vpop.permute.xlu0 %708
    %v711 = vmul.f32 %v700, %v709
    %713 = vrot.lane.b32.xlu0 %v711, 32
    %v714 = vpop.permute.xlu0 %713
    %v716 = vadd.f32 %v706, %v714
    %v717 = vtanh.pop %v716
    %719 = vrot.lane.b32.xlu0 %v717, 64
    %v720 = vpop.permute.xlu0 %719
    %v722 = vmul.f32 %v700, %v720
    %v723 = vpack.c.bf16 %v722, %v722
    %v725 = vunpack.c.l.b16 %v723
    %v726 = vpack.c.b16 %v725, %v725
    %727 = vrot.lane.b32.xlu0 %v726, 32
    %v728 = vpop.permute.xlu0 %727
    %s730 = scalar_lea.vmem [#allocation15], 28
    %731 = vst.msk [vmem:[%s730] sm:$0xf] %vm631, %v728
    %v732 = vld [vmem:[#allocation6 + $0x8] sm:$0xff]
    %v733 = vld [vmem:[#allocation9] sm:$0xf]
    %v734 = vld [vmem:[#allocation9 + $0x4] sm:$0xf]
    %v735 = vld [vmem:[#allocation9 + $0x8] sm:$0xf]
    %v736 = vld [vmem:[#allocation9 + $0xc] sm:$0xf]
    %737 = vrot.lane.b32.xlu0 %v624, 32
    %v738 = vpop.permute.xlu0 %737
    %v743 = vunpack.c.l.b16 %v733
    %v744 = vunpack.c.l.b16 %v734
    %v745 = vunpack.c.l.b16 %v735
    %v746 = vunpack.c.l.b16 %v736
    %v747 = vpack.c.b16 %v744, %v743
    %v748 = vpack.c.b16 %v746, %v745
    %v752 = vsel %vm551, %v738, 0
    %754 = vmatprep.subr.bf16.mxu0 0
    %755 = vmatpush1.bf16.msra.mxu0 0
    %756 = vmatprep.subr.bf16.mxu0 0
    %757 = vmatpush1.bf16.msra.mxu0 0
    %758 = vmatprep.subr.bf16.mxu0 0
    %759 = vmatpush1.bf16.msra.mxu0 0
    %760 = vmatprep.subr.bf16.mxu0 0
    %761 = vmatpush1.bf16.msra.mxu0 0
    %762 = vmatprep.subr.bf16.mxu0 0
    %763 = vmatpush1.bf16.msra.mxu0 0
    %764 = vmatprep.subr.bf16.mxu0 0
    %765 = vmatpush1.bf16.msra.mxu0 0
    %766 = vmatprep.subr.bf16.mxu0 0
    %767 = vmatpush1.bf16.msra.mxu0 %v748
    %768 = vmatprep.subr.bf16.mxu0 0
    %769 = vmatpush1.bf16.msra.mxu0 %v747
    %770 = vmatprep.subr.bf16.mxu0 0
    %771 = vmatpush2.bf16.msra.mxu0 0
    %772 = vmatprep.subr.bf16.mxu0 0
    %773 = vmatpush2.bf16.msra.mxu0 0
    %774 = vmatprep.subr.bf16.mxu0 0
    %775 = vmatpush2.bf16.msra.mxu0 0
    %776 = vmatprep.subr.bf16.mxu0 0
    %777 = vmatpush2.bf16.msra.mxu0 0
    %778 = vmatprep.subr.bf16.mxu0 0
    %779 = vmatpush2.bf16.msra.mxu0 0
    %780 = vmatprep.subr.bf16.mxu0 0
    %781 = vmatpush2.bf16.msra.mxu0 0
    %782 = vmatprep.subr.bf16.mxu0 0
    %783 = vmatpush2.bf16.msra.mxu0 0
    %784 = vmatprep.subr.bf16.mxu0 0
    %785 = vmatpush2.bf16.msra.mxu0 0
    %786 = vmatprep.mubr.bf16.mxu0 0
    %787 = vmatmul.mubr.bf16.gmra.mxu0 %v752
    %v788 = vpop.f32.mrf.mxu0
    %v789 = vadd.f32 0.0, %v788
    %v790 = vpop.f32.mrf.mxu0
    %v791 = vpop.f32.mrf.mxu0
    %v792 = vpop.f32.mrf.mxu0
    %793 = vdwg.mxu0
    %v794 = vadd.f32 %v732, %v789
    %v795 = vxor.u32 %v794, 2147483648
    %v796 = vmul.f32 %v795, 1.442695
    %v797 = vpow.pop %v796
    %v798 = vadd.f32 %v797, 1.0
    %v799 = vrcp.pop %v798
    %v800 = vmul.f32 1.0, %v799
    %v801 = vtanh.pop %v794
    %v802 = vmul.f32 %v800, %v617
    %804 = vrot.lane.b32.xlu0 %v801, 64
    %v805 = vpop.permute.xlu0 %804
    %v807 = vmul.f32 %v800, %v805
    %809 = vrot.lane.b32.xlu0 %v807, 32
    %v810 = vpop.permute.xlu0 %809
    %v812 = vadd.f32 %v802, %v810
    %v813 = vtanh.pop %v812
    %815 = vrot.lane.b32.xlu0 %v813, 64
    %v816 = vpop.permute.xlu0 %815
    %v818 = vmul.f32 %v800, %v816
    %v819 = vpack.c.bf16 %v818, %v818
    %v821 = vunpack.c.l.b16 %v819
    %v822 = vpack.c.b16 %v821, %v821
    %823 = vrot.lane.b32.xlu0 %v822, 32
    %v824 = vpop.permute.xlu0 %823
    %s826 = scalar_lea.vmem [#allocation13], 4
    %827 = vst.msk [vmem:[%s826] sm:$0xf] %vm631, %v824
    %v828 = vld [vmem:[#allocation7 + $0x30] sm:$0xff]
    %v829 = vld [vmem:[#allocation11] sm:$0xf]
    %v830 = vld [vmem:[#allocation11 + $0x4] sm:$0xf]
    %v831 = vld [vmem:[#allocation11 + $0x8] sm:$0xf]
    %v832 = vld [vmem:[#allocation11 + $0xc] sm:$0xf]
    %833 = vrot.lane.b32.xlu0 %v723, 32
    %v834 = vpop.permute.xlu0 %833
    %v839 = vunpack.c.l.b16 %v829
    %v840 = vunpack.c.l.b16 %v830
    %v841 = vunpack.c.l.b16 %v831
    %v842 = vunpack.c.l.b16 %v832
    %v843 = vpack.c.b16 %v840, %v839
    %v844 = vpack.c.b16 %v842, %v841
    %v848 = vsel %vm551, %v834, 0
    %850 = vmatprep.subr.bf16.mxu0 0
    %851 = vmatpush1.bf16.msra.mxu0 0
    %852 = vmatprep.subr.bf16.mxu0 0
    %853 = vmatpush1.bf16.msra.mxu0 0
    %854 = vmatprep.subr.bf16.mxu0 0
    %855 = vmatpush1.bf16.msra.mxu0 0
    %856 = vmatprep.subr.bf16.mxu0 0
    %857 = vmatpush1.bf16.msra.mxu0 0
    %858 = vmatprep.subr.bf16.mxu0 0
    %859 = vmatpush1.bf16.msra.mxu0 0
    %860 = vmatprep.subr.bf16.mxu0 0
    %861 = vmatpush1.bf16.msra.mxu0 0
    %862 = vmatprep.subr.bf16.mxu0 0
    %863 = vmatpush1.bf16.msra.mxu0 %v844
    %864 = vmatprep.subr.bf16.mxu0 0
    %865 = vmatpush1.bf16.msra.mxu0 %v843
    %866 = vmatprep.subr.bf16.mxu0 0
    %867 = vmatpush2.bf16.msra.mxu0 0
    %868 = vmatprep.subr.bf16.mxu0 0
    %869 = vmatpush2.bf16.msra.mxu0 0
    %870 = vmatprep.subr.bf16.mxu0 0
    %871 = vmatpush2.bf16.msra.mxu0 0
    %872 = vmatprep.subr.bf16.mxu0 0
    %873 = vmatpush2.bf16.msra.mxu0 0
    %874 = vmatprep.subr.bf16.mxu0 0
    %875 = vmatpush2.bf16.msra.mxu0 0
    %876 = vmatprep.subr.bf16.mxu0 0
    %877 = vmatpush2.bf16.msra.mxu0 0
    %878 = vmatprep.subr.bf16.mxu0 0
    %879 = vmatpush2.bf16.msra.mxu0 0
    %880 = vmatprep.subr.bf16.mxu0 0
    %881 = vmatpush2.bf16.msra.mxu0 0
    %882 = vmatprep.mubr.bf16.mxu0 0
    %883 = vmatmul.mubr.bf16.gmra.mxu0 %v848
    %v884 = vpop.f32.mrf.mxu0
    %v885 = vadd.f32 0.0, %v884
    %v886 = vpop.f32.mrf.mxu0
    %v887 = vpop.f32.mrf.mxu0
    %v888 = vpop.f32.mrf.mxu0
    %889 = vdwg.mxu0
    %v890 = vadd.f32 %v828, %v885
    %v891 = vxor.u32 %v890, 2147483648
    %v892 = vmul.f32 %v891, 1.442695
    %v893 = vpow.pop %v892
    %v894 = vadd.f32 %v893, 1.0
    %v895 = vrcp.pop %v894
    %v896 = vmul.f32 1.0, %v895
    %v897 = vtanh.pop %v890
    %v898 = vmul.f32 %v896, %v716
    %900 = vrot.lane.b32.xlu0 %v897, 64
    %v901 = vpop.permute.xlu0 %900
    %v903 = vmul.f32 %v896, %v901
    %905 = vrot.lane.b32.xlu0 %v903, 32
    %v906 = vpop.permute.xlu0 %905
    %v908 = vadd.f32 %v898, %v906
    %v909 = vtanh.pop %v908
    %911 = vrot.lane.b32.xlu0 %v909, 64
    %v912 = vpop.permute.xlu0 %911
    %v914 = vmul.f32 %v896, %v912
    %v915 = vpack.c.bf16 %v914, %v914
    %v917 = vunpack.c.l.b16 %v915
    %v918 = vpack.c.b16 %v917, %v917
    %919 = vrot.lane.b32.xlu0 %v918, 32
    %v920 = vpop.permute.xlu0 %919
    %s922 = scalar_lea.vmem [#allocation15], 24
    %923 = vst.msk [vmem:[%s922] sm:$0xf] %vm631, %v920
    %v924 = vld [vmem:[#allocation6 + $0x10] sm:$0xff]
    %v925 = vld [vmem:[#allocation9] sm:$0xf]
    %v926 = vld [vmem:[#allocation9 + $0x4] sm:$0xf]
    %v927 = vld [vmem:[#allocation9 + $0x8] sm:$0xf]
    %v928 = vld [vmem:[#allocation9 + $0xc] sm:$0xf]
    %929 = vrot.lane.b32.xlu0 %v819, 32
    %v930 = vpop.permute.xlu0 %929
    %v935 = vunpack.c.l.b16 %v925
    %v936 = vunpack.c.l.b16 %v926
    %v937 = vunpack.c.l.b16 %v927
    %v938 = vunpack.c.l.b16 %v928
    %v939 = vpack.c.b16 %v936, %v935
    %v940 = vpack.c.b16 %v938, %v937
    %v944 = vsel %vm551, %v930, 0
    %946 = vmatprep.subr.bf16.mxu0 0
    %947 = vmatpush1.bf16.msra.mxu0 0
    %948 = vmatprep.subr.bf16.mxu0 0
    %949 = vmatpush1.bf16.msra.mxu0 0
    %950 = vmatprep.subr.bf16.mxu0 0
    %951 = vmatpush1.bf16.msra.mxu0 0
    %952 = vmatprep.subr.bf16.mxu0 0
    %953 = vmatpush1.bf16.msra.mxu0 0
    %954 = vmatprep.subr.bf16.mxu0 0
    %955 = vmatpush1.bf16.msra.mxu0 0
    %956 = vmatprep.subr.bf16.mxu0 0
    %957 = vmatpush1.bf16.msra.mxu0 0
    %958 = vmatprep.subr.bf16.mxu0 0
    %959 = vmatpush1.bf16.msra.mxu0 %v940
    %960 = vmatprep.subr.bf16.mxu0 0
    %961 = vmatpush1.bf16.msra.mxu0 %v939
    %962 = vmatprep.subr.bf16.mxu0 0
    %963 = vmatpush2.bf16.msra.mxu0 0
    %964 = vmatprep.subr.bf16.mxu0 0
    %965 = vmatpush2.bf16.msra.mxu0 0
    %966 = vmatprep.subr.bf16.mxu0 0
    %967 = vmatpush2.bf16.msra.mxu0 0
    %968 = vmatprep.subr.bf16.mxu0 0
    %969 = vmatpush2.bf16.msra.mxu0 0
    %970 = vmatprep.subr.bf16.mxu0 0
    %971 = vmatpush2.bf16.msra.mxu0 0
    %972 = vmatprep.subr.bf16.mxu0 0
    %973 = vmatpush2.bf16.msra.mxu0 0
    %974 = vmatprep.subr.bf16.mxu0 0
    %975 = vmatpush2.bf16.msra.mxu0 0
    %976 = vmatprep.subr.bf16.mxu0 0
    %977 = vmatpush2.bf16.msra.mxu0 0
    %978 = vmatprep.mubr.bf16.mxu0 0
    %979 = vmatmul.mubr.bf16.gmra.mxu0 %v944
    %v980 = vpop.f32.mrf.mxu0
    %v981 = vadd.f32 0.0, %v980
    %v982 = vpop.f32.mrf.mxu0
    %v983 = vpop.f32.mrf.mxu0
    %v984 = vpop.f32.mrf.mxu0
    %985 = vdwg.mxu0
    %v986 = vadd.f32 %v924, %v981
    %v987 = vxor.u32 %v986, 2147483648
    %v988 = vmul.f32 %v987, 1.442695
    %v989 = vpow.pop %v988
    %v990 = vadd.f32 %v989, 1.0
    %v991 = vrcp.pop %v990
    %v992 = vmul.f32 1.0, %v991
    %v993 = vtanh.pop %v986
    %v994 = vmul.f32 %v992, %v812
    %996 = vrot.lane.b32.xlu0 %v993, 64
    %v997 = vpop.permute.xlu0 %996
    %v999 = vmul.f32 %v992, %v997
    %1001 = vrot.lane.b32.xlu0 %v999, 32
    %v1002 = vpop.permute.xlu0 %1001
    %v1004 = vadd.f32 %v994, %v1002
    %v1005 = vtanh.pop %v1004
    %1007 = vrot.lane.b32.xlu0 %v1005, 64
    %v1008 = vpop.permute.xlu0 %1007
    %v1010 = vmul.f32 %v992, %v1008
    %v1011 = vpack.c.bf16 %v1010, %v1010
    %v1013 = vunpack.c.l.b16 %v1011
    %v1014 = vpack.c.b16 %v1013, %v1013
    %1015 = vrot.lane.b32.xlu0 %v1014, 32
    %v1016 = vpop.permute.xlu0 %1015
    %s1018 = scalar_lea.vmem [#allocation13], 8
    %1019 = vst.msk [vmem:[%s1018] sm:$0xf] %vm631, %v1016
    %v1020 = vld [vmem:[#allocation7 + $0x28] sm:$0xff]
    %v1021 = vld [vmem:[#allocation11] sm:$0xf]
    %v1022 = vld [vmem:[#allocation11 + $0x4] sm:$0xf]
    %v1023 = vld [vmem:[#allocation11 + $0x8] sm:$0xf]
    %v1024 = vld [vmem:[#allocation11 + $0xc] sm:$0xf]
    %1025 = vrot.lane.b32.xlu0 %v915, 32
    %v1026 = vpop.permute.xlu0 %1025
    %v1031 = vunpack.c.l.b16 %v1021
    %v1032 = vunpack.c.l.b16 %v1022
    %v1033 = vunpack.c.l.b16 %v1023
    %v1034 = vunpack.c.l.b16 %v1024
    %v1035 = vpack.c.b16 %v1032, %v1031
    %v1036 = vpack.c.b16 %v1034, %v1033
    %v1040 = vsel %vm551, %v1026, 0
    %1042 = vmatprep.subr.bf16.mxu0 0
    %1043 = vmatpush1.bf16.msra.mxu0 0
    %1044 = vmatprep.subr.bf16.mxu0 0
    %1045 = vmatpush1.bf16.msra.mxu0 0
    %1046 = vmatprep.subr.bf16.mxu0 0
    %1047 = vmatpush1.bf16.msra.mxu0 0
    %1048 = vmatprep.subr.bf16.mxu0 0
    %1049 = vmatpush1.bf16.msra.mxu0 0
    %1050 = vmatprep.subr.bf16.mxu0 0
    %1051 = vmatpush1.bf16.msra.mxu0 0
    %1052 = vmatprep.subr.bf16.mxu0 0
    %1053 = vmatpush1.bf16.msra.mxu0 0
    %1054 = vmatprep.subr.bf16.mxu0 0
    %1055 = vmatpush1.bf16.msra.mxu0 %v1036
    %1056 = vmatprep.subr.bf16.mxu0 0
    %1057 = vmatpush1.bf16.msra.mxu0 %v1035
    %1058 = vmatprep.subr.bf16.mxu0 0
    %1059 = vmatpush2.bf16.msra.mxu0 0
    %1060 = vmatprep.subr.bf16.mxu0 0
    %1061 = vmatpush2.bf16.msra.mxu0 0
    %1062 = vmatprep.subr.bf16.mxu0 0
    %1063 = vmatpush2.bf16.msra.mxu0 0
    %1064 = vmatprep.subr.bf16.mxu0 0
    %1065 = vmatpush2.bf16.msra.mxu0 0
    %1066 = vmatprep.subr.bf16.mxu0 0
    %1067 = vmatpush2.bf16.msra.mxu0 0
    %1068 = vmatprep.subr.bf16.mxu0 0
    %1069 = vmatpush2.bf16.msra.mxu0 0
    %1070 = vmatprep.subr.bf16.mxu0 0
    %1071 = vmatpush2.bf16.msra.mxu0 0
    %1072 = vmatprep.subr.bf16.mxu0 0
    %1073 = vmatpush2.bf16.msra.mxu0 0
    %1074 = vmatprep.mubr.bf16.mxu0 0
    %1075 = vmatmul.mubr.bf16.gmra.mxu0 %v1040
    %v1076 = vpop.f32.mrf.mxu0
    %v1077 = vadd.f32 0.0, %v1076
    %v1078 = vpop.f32.mrf.mxu0
    %v1079 = vpop.f32.mrf.mxu0
    %v1080 = vpop.f32.mrf.mxu0
    %1081 = vdwg.mxu0
    %v1082 = vadd.f32 %v1020, %v1077
    %v1083 = vxor.u32 %v1082, 2147483648
    %v1084 = vmul.f32 %v1083, 1.442695
    %v1085 = vpow.pop %v1084
    %v1086 = vadd.f32 %v1085, 1.0
    %v1087 = vrcp.pop %v1086
    %v1088 = vmul.f32 1.0, %v1087
    %v1089 = vtanh.pop %v1082
    %v1090 = vmul.f32 %v1088, %v908
    %1092 = vrot.lane.b32.xlu0 %v1089, 64
    %v1093 = vpop.permute.xlu0 %1092
    %v1095 = vmul.f32 %v1088, %v1093
    %1097 = vrot.lane.b32.xlu0 %v1095, 32
    %v1098 = vpop.permute.xlu0 %1097
    %v1100 = vadd.f32 %v1090, %v1098
    %v1101 = vtanh.pop %v1100
    %1103 = vrot.lane.b32.xlu0 %v1101, 64
    %v1104 = vpop.permute.xlu0 %1103
    %v1106 = vmul.f32 %v1088, %v1104
    %v1107 = vpack.c.bf16 %v1106, %v1106
    %v1109 = vunpack.c.l.b16 %v1107
    %v1110 = vpack.c.b16 %v1109, %v1109
    %1111 = vrot.lane.b32.xlu0 %v1110, 32
    %v1112 = vpop.permute.xlu0 %1111
    %s1114 = scalar_lea.vmem [#allocation15], 20
    %1115 = vst.msk [vmem:[%s1114] sm:$0xf] %vm631, %v1112
    %v1116 = vld [vmem:[#allocation6 + $0x18] sm:$0xff]
    %v1117 = vld [vmem:[#allocation9] sm:$0xf]
    %v1118 = vld [vmem:[#allocation9 + $0x4] sm:$0xf]
    %v1119 = vld [vmem:[#allocation9 + $0x8] sm:$0xf]
    %v1120 = vld [vmem:[#allocation9 + $0xc] sm:$0xf]
    %1121 = vrot.lane.b32.xlu0 %v1011, 32
    %v1122 = vpop.permute.xlu0 %1121
    %v1127 = vunpack.c.l.b16 %v1117
    %v1128 = vunpack.c.l.b16 %v1118
    %v1129 = vunpack.c.l.b16 %v1119
    %v1130 = vunpack.c.l.b16 %v1120
    %v1131 = vpack.c.b16 %v1128, %v1127
    %v1132 = vpack.c.b16 %v1130, %v1129
    %v1136 = vsel %vm551, %v1122, 0
    %1138 = vmatprep.subr.bf16.mxu0 0
    %1139 = vmatpush1.bf16.msra.mxu0 0
    %1140 = vmatprep.subr.bf16.mxu0 0
    %1141 = vmatpush1.bf16.msra.mxu0 0
    %1142 = vmatprep.subr.bf16.mxu0 0
    %1143 = vmatpush1.bf16.msra.mxu0 0
    %1144 = vmatprep.subr.bf16.mxu0 0
    %1145 = vmatpush1.bf16.msra.mxu0 0
    %1146 = vmatprep.subr.bf16.mxu0 0
    %1147 = vmatpush1.bf16.msra.mxu0 0
    %1148 = vmatprep.subr.bf16.mxu0 0
    %1149 = vmatpush1.bf16.msra.mxu0 0
    %1150 = vmatprep.subr.bf16.mxu0 0
    %1151 = vmatpush1.bf16.msra.mxu0 %v1132
    %1152 = vmatprep.subr.bf16.mxu0 0
    %1153 = vmatpush1.bf16.msra.mxu0 %v1131
    %1154 = vmatprep.subr.bf16.mxu0 0
    %1155 = vmatpush2.bf16.msra.mxu0 0
    %1156 = vmatprep.subr.bf16.mxu0 0
    %1157 = vmatpush2.bf16.msra.mxu0 0
    %1158 = vmatprep.subr.bf16.mxu0 0
    %1159 = vmatpush2.bf16.msra.mxu0 0
    %1160 = vmatprep.subr.bf16.mxu0 0
    %1161 = vmatpush2.bf16.msra.mxu0 0
    %1162 = vmatprep.subr.bf16.mxu0 0
    %1163 = vmatpush2.bf16.msra.mxu0 0
    %1164 = vmatprep.subr.bf16.mxu0 0
    %1165 = vmatpush2.bf16.msra.mxu0 0
    %1166 = vmatprep.subr.bf16.mxu0 0
    %1167 = vmatpush2.bf16.msra.mxu0 0
    %1168 = vmatprep.subr.bf16.mxu0 0
    %1169 = vmatpush2.bf16.msra.mxu0 0
    %1170 = vmatprep.mubr.bf16.mxu0 0
    %1171 = vmatmul.mubr.bf16.gmra.mxu0 %v1136
    %v1172 = vpop.f32.mrf.mxu0
    %v1173 = vadd.f32 0.0, %v1172
    %v1174 = vpop.f32.mrf.mxu0
    %v1175 = vpop.f32.mrf.mxu0
    %v1176 = vpop.f32.mrf.mxu0
    %1177 = vdwg.mxu0
    %v1178 = vadd.f32 %v1116, %v1173
    %v1179 = vxor.u32 %v1178, 2147483648
    %v1180 = vmul.f32 %v1179, 1.442695
    %v1181 = vpow.pop %v1180
    %v1182 = vadd.f32 %v1181, 1.0
    %v1183 = vrcp.pop %v1182
    %v1184 = vmul.f32 1.0, %v1183
    %v1185 = vtanh.pop %v1178
    %v1186 = vmul.f32 %v1184, %v1004
    %1188 = vrot.lane.b32.xlu0 %v1185, 64
    %v1189 = vpop.permute.xlu0 %1188
    %v1191 = vmul.f32 %v1184, %v1189
    %1193 = vrot.lane.b32.xlu0 %v1191, 32
    %v1194 = vpop.permute.xlu0 %1193
    %v1196 = vadd.f32 %v1186, %v1194
    %v1197 = vtanh.pop %v1196
    %1199 = vrot.lane.b32.xlu0 %v1197, 64
    %v1200 = vpop.permute.xlu0 %1199
    %v1202 = vmul.f32 %v1184, %v1200
    %v1203 = vpack.c.bf16 %v1202, %v1202
    %v1205 = vunpack.c.l.b16 %v1203
    %v1206 = vpack.c.b16 %v1205, %v1205
    %1207 = vrot.lane.b32.xlu0 %v1206, 32
    %v1208 = vpop.permute.xlu0 %1207
    %s1210 = scalar_lea.vmem [#allocation13], 12
    %1211 = vst.msk [vmem:[%s1210] sm:$0xf] %vm631, %v1208
    %v1212 = vld [vmem:[#allocation7 + $0x20] sm:$0xff]
    %v1213 = vld [vmem:[#allocation11] sm:$0xf]
    %v1214 = vld [vmem:[#allocation11 + $0x4] sm:$0xf]
    %v1215 = vld [vmem:[#allocation11 + $0x8] sm:$0xf]
    %v1216 = vld [vmem:[#allocation11 + $0xc] sm:$0xf]
    %1217 = vrot.lane.b32.xlu0 %v1107, 32
    %v1218 = vpop.permute.xlu0 %1217
    %v1223 = vunpack.c.l.b16 %v1213
    %v1224 = vunpack.c.l.b16 %v1214
    %v1225 = vunpack.c.l.b16 %v1215
    %v1226 = vunpack.c.l.b16 %v1216
    %v1227 = vpack.c.b16 %v1224, %v1223
    %v1228 = vpack.c.b16 %v1226, %v1225
    %v1232 = vsel %vm551, %v1218, 0
    %1234 = vmatprep.subr.bf16.mxu0 0
    %1235 = vmatpush1.bf16.msra.mxu0 0
    %1236 = vmatprep.subr.bf16.mxu0 0
    %1237 = vmatpush1.bf16.msra.mxu0 0
    %1238 = vmatprep.subr.bf16.mxu0 0
    %1239 = vmatpush1.bf16.msra.mxu0 0
    %1240 = vmatprep.subr.bf16.mxu0 0
    %1241 = vmatpush1.bf16.msra.mxu0 0
    %1242 = vmatprep.subr.bf16.mxu0 0
    %1243 = vmatpush1.bf16.msra.mxu0 0
    %1244 = vmatprep.subr.bf16.mxu0 0
    %1245 = vmatpush1.bf16.msra.mxu0 0
    %1246 = vmatprep.subr.bf16.mxu0 0
    %1247 = vmatpush1.bf16.msra.mxu0 %v1228
    %1248 = vmatprep.subr.bf16.mxu0 0
    %1249 = vmatpush1.bf16.msra.mxu0 %v1227
    %1250 = vmatprep.subr.bf16.mxu0 0
    %1251 = vmatpush2.bf16.msra.mxu0 0
    %1252 = vmatprep.subr.bf16.mxu0 0
    %1253 = vmatpush2.bf16.msra.mxu0 0
    %1254 = vmatprep.subr.bf16.mxu0 0
    %1255 = vmatpush2.bf16.msra.mxu0 0
    %1256 = vmatprep.subr.bf16.mxu0 0
    %1257 = vmatpush2.bf16.msra.mxu0 0
    %1258 = vmatprep.subr.bf16.mxu0 0
    %1259 = vmatpush2.bf16.msra.mxu0 0
    %1260 = vmatprep.subr.bf16.mxu0 0
    %1261 = vmatpush2.bf16.msra.mxu0 0
    %1262 = vmatprep.subr.bf16.mxu0 0
    %1263 = vmatpush2.bf16.msra.mxu0 0
    %1264 = vmatprep.subr.bf16.mxu0 0
    %1265 = vmatpush2.bf16.msra.mxu0 0
    %1266 = vmatprep.mubr.bf16.mxu0 0
    %1267 = vmatmul.mubr.bf16.gmra.mxu0 %v1232
    %v1268 = vpop.f32.mrf.mxu0
    %v1269 = vadd.f32 0.0, %v1268
    %v1270 = vpop.f32.mrf.mxu0
    %v1271 = vpop.f32.mrf.mxu0
    %v1272 = vpop.f32.mrf.mxu0
    %1273 = vdwg.mxu0
    %v1274 = vadd.f32 %v1212, %v1269
    %v1275 = vxor.u32 %v1274, 2147483648
    %v1276 = vmul.f32 %v1275, 1.442695
    %v1277 = vpow.pop %v1276
    %v1278 = vadd.f32 %v1277, 1.0
    %v1279 = vrcp.pop %v1278
    %v1280 = vmul.f32 1.0, %v1279
    %v1281 = vtanh.pop %v1274
    %v1282 = vmul.f32 %v1280, %v1100
    %1284 = vrot.lane.b32.xlu0 %v1281, 64
    %v1285 = vpop.permute.xlu0 %1284
    %v1287 = vmul.f32 %v1280, %v1285
    %1289 = vrot.lane.b32.xlu0 %v1287, 32
    %v1290 = vpop.permute.xlu0 %1289
    %v1292 = vadd.f32 %v1282, %v1290
    %v1293 = vtanh.pop %v1292
    %1295 = vrot.lane.b32.xlu0 %v1293, 64
    %v1296 = vpop.permute.xlu0 %1295
    %v1298 = vmul.f32 %v1280, %v1296
    %v1299 = vpack.c.bf16 %v1298, %v1298
    %v1301 = vunpack.c.l.b16 %v1299
    %v1302 = vpack.c.b16 %v1301, %v1301
    %1303 = vrot.lane.b32.xlu0 %v1302, 32
    %v1304 = vpop.permute.xlu0 %1303
    %s1306 = scalar_lea.vmem [#allocation15], 16
    %1307 = vst.msk [vmem:[%s1306] sm:$0xf] %vm631, %v1304
    %v1308 = vld [vmem:[#allocation6 + $0x20] sm:$0xff]
    %v1309 = vld [vmem:[#allocation9] sm:$0xf]
    %v1310 = vld [vmem:[#allocation9 + $0x4] sm:$0xf]
    %v1311 = vld [vmem:[#allocation9 + $0x8] sm:$0xf]
    %v1312 = vld [vmem:[#allocation9 + $0xc] sm:$0xf]
    %1313 = vrot.lane.b32.xlu0 %v1203, 32
    %v1314 = vpop.permute.xlu0 %1313
    %v1319 = vunpack.c.l.b16 %v1309
    %v1320 = vunpack.c.l.b16 %v1310
    %v1321 = vunpack.c.l.b16 %v1311
    %v1322 = vunpack.c.l.b16 %v1312
    %v1323 = vpack.c.b16 %v1320, %v1319
    %v1324 = vpack.c.b16 %v1322, %v1321
    %v1328 = vsel %vm551, %v1314, 0
    %1330 = vmatprep.subr.bf16.mxu0 0
    %1331 = vmatpush1.bf16.msra.mxu0 0
    %1332 = vmatprep.subr.bf16.mxu0 0
    %1333 = vmatpush1.bf16.msra.mxu0 0
    %1334 = vmatprep.subr.bf16.mxu0 0
    %1335 = vmatpush1.bf16.msra.mxu0 0
    %1336 = vmatprep.subr.bf16.mxu0 0
    %1337 = vmatpush1.bf16.msra.mxu0 0
    %1338 = vmatprep.subr.bf16.mxu0 0
    %1339 = vmatpush1.bf16.msra.mxu0 0
    %1340 = vmatprep.subr.bf16.mxu0 0
    %1341 = vmatpush1.bf16.msra.mxu0 0
    %1342 = vmatprep.subr.bf16.mxu0 0
    %1343 = vmatpush1.bf16.msra.mxu0 %v1324
    %1344 = vmatprep.subr.bf16.mxu0 0
    %1345 = vmatpush1.bf16.msra.mxu0 %v1323
    %1346 = vmatprep.subr.bf16.mxu0 0
    %1347 = vmatpush2.bf16.msra.mxu0 0
    %1348 = vmatprep.subr.bf16.mxu0 0
    %1349 = vmatpush2.bf16.msra.mxu0 0
    %1350 = vmatprep.subr.bf16.mxu0 0
    %1351 = vmatpush2.bf16.msra.mxu0 0
    %1352 = vmatprep.subr.bf16.mxu0 0
    %1353 = vmatpush2.bf16.msra.mxu0 0
    %1354 = vmatprep.subr.bf16.mxu0 0
    %1355 = vmatpush2.bf16.msra.mxu0 0
    %1356 = vmatprep.subr.bf16.mxu0 0
    %1357 = vmatpush2.bf16.msra.mxu0 0
    %1358 = vmatprep.subr.bf16.mxu0 0
    %1359 = vmatpush2.bf16.msra.mxu0 0
    %1360 = vmatprep.subr.bf16.mxu0 0
    %1361 = vmatpush2.bf16.msra.mxu0 0
    %1362 = vmatprep.mubr.bf16.mxu0 0
    %1363 = vmatmul.mubr.bf16.gmra.mxu0 %v1328
    %v1364 = vpop.f32.mrf.mxu0
    %v1365 = vadd.f32 0.0, %v1364
    %v1366 = vpop.f32.mrf.mxu0
    %v1367 = vpop.f32.mrf.mxu0
    %v1368 = vpop.f32.mrf.mxu0
    %1369 = vdwg.mxu0
    %v1370 = vadd.f32 %v1308, %v1365
    %v1371 = vxor.u32 %v1370, 2147483648
    %v1372 = vmul.f32 %v1371, 1.442695
    %v1373 = vpow.pop %v1372
    %v1374 = vadd.f32 %v1373, 1.0
    %v1375 = vrcp.pop %v1374
    %v1376 = vmul.f32 1.0, %v1375
    %v1377 = vtanh.pop %v1370
    %v1378 = vmul.f32 %v1376, %v1196
    %1380 = vrot.lane.b32.xlu0 %v1377, 64
    %v1381 = vpop.permute.xlu0 %1380
    %v1383 = vmul.f32 %v1376, %v1381
    %1385 = vrot.lane.b32.xlu0 %v1383, 32
    %v1386 = vpop.permute.xlu0 %1385
    %v1388 = vadd.f32 %v1378, %v1386
    %v1389 = vtanh.pop %v1388
    %1391 = vrot.lane.b32.xlu0 %v1389, 64
    %v1392 = vpop.permute.xlu0 %1391
    %v1394 = vmul.f32 %v1376, %v1392
    %v1395 = vpack.c.bf16 %v1394, %v1394
    %v1397 = vunpack.c.l.b16 %v1395
    %v1398 = vpack.c.b16 %v1397, %v1397
    %1399 = vrot.lane.b32.xlu0 %v1398, 32
    %v1400 = vpop.permute.xlu0 %1399
    %s1402 = scalar_lea.vmem [#allocation13], 16
    %1403 = vst.msk [vmem:[%s1402] sm:$0xf] %vm631, %v1400
    %v1404 = vld [vmem:[#allocation7 + $0x18] sm:$0xff]
    %v1405 = vld [vmem:[#allocation11] sm:$0xf]
    %v1406 = vld [vmem:[#allocation11 + $0x4] sm:$0xf]
    %v1407 = vld [vmem:[#allocation11 + $0x8] sm:$0xf]
    %v1408 = vld [vmem:[#allocation11 + $0xc] sm:$0xf]
    %1409 = vrot.lane.b32.xlu0 %v1299, 32
    %v1410 = vpop.permute.xlu0 %1409
    %v1415 = vunpack.c.l.b16 %v1405
    %v1416 = vunpack.c.l.b16 %v1406
    %v1417 = vunpack.c.l.b16 %v1407
    %v1418 = vunpack.c.l.b16 %v1408
    %v1419 = vpack.c.b16 %v1416, %v1415
    %v1420 = vpack.c.b16 %v1418, %v1417
    %v1424 = vsel %vm551, %v1410, 0
    %1426 = vmatprep.subr.bf16.mxu0 0
    %1427 = vmatpush1.bf16.msra.mxu0 0
    %1428 = vmatprep.subr.bf16.mxu0 0
    %1429 = vmatpush1.bf16.msra.mxu0 0
    %1430 = vmatprep.subr.bf16.mxu0 0
    %1431 = vmatpush1.bf16.msra.mxu0 0
    %1432 = vmatprep.subr.bf16.mxu0 0
    %1433 = vmatpush1.bf16.msra.mxu0 0
    %1434 = vmatprep.subr.bf16.mxu0 0
    %1435 = vmatpush1.bf16.msra.mxu0 0
    %1436 = vmatprep.subr.bf16.mxu0 0
    %1437 = vmatpush1.bf16.msra.mxu0 0
    %1438 = vmatprep.subr.bf16.mxu0 0
    %1439 = vmatpush1.bf16.msra.mxu0 %v1420
    %1440 = vmatprep.subr.bf16.mxu0 0
    %1441 = vmatpush1.bf16.msra.mxu0 %v1419
    %1442 = vmatprep.subr.bf16.mxu0 0
    %1443 = vmatpush2.bf16.msra.mxu0 0
    %1444 = vmatprep.subr.bf16.mxu0 0
    %1445 = vmatpush2.bf16.msra.mxu0 0
    %1446 = vmatprep.subr.bf16.mxu0 0
    %1447 = vmatpush2.bf16.msra.mxu0 0
    %1448 = vmatprep.subr.bf16.mxu0 0
    %1449 = vmatpush2.bf16.msra.mxu0 0
    %1450 = vmatprep.subr.bf16.mxu0 0
    %1451 = vmatpush2.bf16.msra.mxu0 0
    %1452 = vmatprep.subr.bf16.mxu0 0
    %1453 = vmatpush2.bf16.msra.mxu0 0
    %1454 = vmatprep.subr.bf16.mxu0 0
    %1455 = vmatpush2.bf16.msra.mxu0 0
    %1456 = vmatprep.subr.bf16.mxu0 0
    %1457 = vmatpush2.bf16.msra.mxu0 0
    %1458 = vmatprep.mubr.bf16.mxu0 0
    %1459 = vmatmul.mubr.bf16.gmra.mxu0 %v1424
    %v1460 = vpop.f32.mrf.mxu0
    %v1461 = vadd.f32 0.0, %v1460
    %v1462 = vpop.f32.mrf.mxu0
    %v1463 = vpop.f32.mrf.mxu0
    %v1464 = vpop.f32.mrf.mxu0
    %1465 = vdwg.mxu0
    %v1466 = vadd.f32 %v1404, %v1461
    %v1467 = vxor.u32 %v1466, 2147483648
    %v1468 = vmul.f32 %v1467, 1.442695
    %v1469 = vpow.pop %v1468
    %v1470 = vadd.f32 %v1469, 1.0
    %v1471 = vrcp.pop %v1470
    %v1472 = vmul.f32 1.0, %v1471
    %v1473 = vtanh.pop %v1466
    %v1474 = vmul.f32 %v1472, %v1292
    %1476 = vrot.lane.b32.xlu0 %v1473, 64
    %v1477 = vpop.permute.xlu0 %1476
    %v1479 = vmul.f32 %v1472, %v1477
    %1481 = vrot.lane.b32.xlu0 %v1479, 32
    %v1482 = vpop.permute.xlu0 %1481
    %v1484 = vadd.f32 %v1474, %v1482
    %v1485 = vtanh.pop %v1484
    %1487 = vrot.lane.b32.xlu0 %v1485, 64
    %v1488 = vpop.permute.xlu0 %1487
    %v1490 = vmul.f32 %v1472, %v1488
    %v1491 = vpack.c.bf16 %v1490, %v1490
    %v1493 = vunpack.c.l.b16 %v1491
    %v1494 = vpack.c.b16 %v1493, %v1493
    %1495 = vrot.lane.b32.xlu0 %v1494, 32
    %v1496 = vpop.permute.xlu0 %1495
    %s1498 = scalar_lea.vmem [#allocation15], 12
    %1499 = vst.msk [vmem:[%s1498] sm:$0xf] %vm631, %v1496
    %v1500 = vld [vmem:[#allocation6 + $0x28] sm:$0xff]
    %v1501 = vld [vmem:[#allocation9] sm:$0xf]
    %v1502 = vld [vmem:[#allocation9 + $0x4] sm:$0xf]
    %v1503 = vld [vmem:[#allocation9 + $0x8] sm:$0xf]
    %v1504 = vld [vmem:[#allocation9 + $0xc] sm:$0xf]
    %1505 = vrot.lane.b32.xlu0 %v1395, 32
    %v1506 = vpop.permute.xlu0 %1505
    %v1511 = vunpack.c.l.b16 %v1501
    %v1512 = vunpack.c.l.b16 %v1502
    %v1513 = vunpack.c.l.b16 %v1503
    %v1514 = vunpack.c.l.b16 %v1504
    %v1515 = vpack.c.b16 %v1512, %v1511
    %v1516 = vpack.c.b16 %v1514, %v1513
    %v1520 = vsel %vm551, %v1506, 0
    %1522 = vmatprep.subr.bf16.mxu0 0
    %1523 = vmatpush1.bf16.msra.mxu0 0
    %1524 = vmatprep.subr.bf16.mxu0 0
    %1525 = vmatpush1.bf16.msra.mxu0 0
    %1526 = vmatprep.subr.bf16.mxu0 0
    %1527 = vmatpush1.bf16.msra.mxu0 0
    %1528 = vmatprep.subr.bf16.mxu0 0
    %1529 = vmatpush1.bf16.msra.mxu0 0
    %1530 = vmatprep.subr.bf16.mxu0 0
    %1531 = vmatpush1.bf16.msra.mxu0 0
    %1532 = vmatprep.subr.bf16.mxu0 0
    %1533 = vmatpush1.bf16.msra.mxu0 0
    %1534 = vmatprep.subr.bf16.mxu0 0
    %1535 = vmatpush1.bf16.msra.mxu0 %v1516
    %1536 = vmatprep.subr.bf16.mxu0 0
    %1537 = vmatpush1.bf16.msra.mxu0 %v1515
    %1538 = vmatprep.subr.bf16.mxu0 0
    %1539 = vmatpush2.bf16.msra.mxu0 0
    %1540 = vmatprep.subr.bf16.mxu0 0
    %1541 = vmatpush2.bf16.msra.mxu0 0
    %1542 = vmatprep.subr.bf16.mxu0 0
    %1543 = vmatpush2.bf16.msra.mxu0 0
    %1544 = vmatprep.subr.bf16.mxu0 0
    %1545 = vmatpush2.bf16.msra.mxu0 0
    %1546 = vmatprep.subr.bf16.mxu0 0
    %1547 = vmatpush2.bf16.msra.mxu0 0
    %1548 = vmatprep.subr.bf16.mxu0 0
    %1549 = vmatpush2.bf16.msra.mxu0 0
    %1550 = vmatprep.subr.bf16.mxu0 0
    %1551 = vmatpush2.bf16.msra.mxu0 0
    %1552 = vmatprep.subr.bf16.mxu0 0
    %1553 = vmatpush2.bf16.msra.mxu0 0
    %1554 = vmatprep.mubr.bf16.mxu0 0
    %1555 = vmatmul.mubr.bf16.gmra.mxu0 %v1520
    %v1556 = vpop.f32.mrf.mxu0
    %v1557 = vadd.f32 0.0, %v1556
    %v1558 = vpop.f32.mrf.mxu0
    %v1559 = vpop.f32.mrf.mxu0
    %v1560 = vpop.f32.mrf.mxu0
    %1561 = vdwg.mxu0
    %v1562 = vadd.f32 %v1500, %v1557
    %v1563 = vxor.u32 %v1562, 2147483648
    %v1564 = vmul.f32 %v1563, 1.442695
    %v1565 = vpow.pop %v1564
    %v1566 = vadd.f32 %v1565, 1.0
    %v1567 = vrcp.pop %v1566
    %v1568 = vmul.f32 1.0, %v1567
    %v1569 = vtanh.pop %v1562
    %v1570 = vmul.f32 %v1568, %v1388
    %1572 = vrot.lane.b32.xlu0 %v1569, 64
    %v1573 = vpop.permute.xlu0 %1572
    %v1575 = vmul.f32 %v1568, %v1573
    %1577 = vrot.lane.b32.xlu0 %v1575, 32
    %v1578 = vpop.permute.xlu0 %1577
    %v1580 = vadd.f32 %v1570, %v1578
    %v1581 = vtanh.pop %v1580
    %1583 = vrot.lane.b32.xlu0 %v1581, 64
    %v1584 = vpop.permute.xlu0 %1583
    %v1586 = vmul.f32 %v1568, %v1584
    %v1587 = vpack.c.bf16 %v1586, %v1586
    %v1589 = vunpack.c.l.b16 %v1587
    %v1590 = vpack.c.b16 %v1589, %v1589
    %1591 = vrot.lane.b32.xlu0 %v1590, 32
    %v1592 = vpop.permute.xlu0 %1591
    %s1594 = scalar_lea.vmem [#allocation13], 20
    %1595 = vst.msk [vmem:[%s1594] sm:$0xf] %vm631, %v1592
    %v1596 = vld [vmem:[#allocation7 + $0x10] sm:$0xff]
    %v1597 = vld [vmem:[#allocation11] sm:$0xf]
    %v1598 = vld [vmem:[#allocation11 + $0x4] sm:$0xf]
    %v1599 = vld [vmem:[#allocation11 + $0x8] sm:$0xf]
    %v1600 = vld [vmem:[#allocation11 + $0xc] sm:$0xf]
    %1601 = vrot.lane.b32.xlu0 %v1491, 32
    %v1602 = vpop.permute.xlu0 %1601
    %v1607 = vunpack.c.l.b16 %v1597
    %v1608 = vunpack.c.l.b16 %v1598
    %v1609 = vunpack.c.l.b16 %v1599
    %v1610 = vunpack.c.l.b16 %v1600
    %v1611 = vpack.c.b16 %v1608, %v1607
    %v1612 = vpack.c.b16 %v1610, %v1609
    %v1616 = vsel %vm551, %v1602, 0
    %1618 = vmatprep.subr.bf16.mxu0 0
    %1619 = vmatpush1.bf16.msra.mxu0 0
    %1620 = vmatprep.subr.bf16.mxu0 0
    %1621 = vmatpush1.bf16.msra.mxu0 0
    %1622 = vmatprep.subr.bf16.mxu0 0
    %1623 = vmatpush1.bf16.msra.mxu0 0
    %1624 = vmatprep.subr.bf16.mxu0 0
    %1625 = vmatpush1.bf16.msra.mxu0 0
    %1626 = vmatprep.subr.bf16.mxu0 0
    %1627 = vmatpush1.bf16.msra.mxu0 0
    %1628 = vmatprep.subr.bf16.mxu0 0
    %1629 = vmatpush1.bf16.msra.mxu0 0
    %1630 = vmatprep.subr.bf16.mxu0 0
    %1631 = vmatpush1.bf16.msra.mxu0 %v1612
    %1632 = vmatprep.subr.bf16.mxu0 0
    %1633 = vmatpush1.bf16.msra.mxu0 %v1611
    %1634 = vmatprep.subr.bf16.mxu0 0
    %1635 = vmatpush2.bf16.msra.mxu0 0
    %1636 = vmatprep.subr.bf16.mxu0 0
    %1637 = vmatpush2.bf16.msra.mxu0 0
    %1638 = vmatprep.subr.bf16.mxu0 0
    %1639 = vmatpush2.bf16.msra.mxu0 0
    %1640 = vmatprep.subr.bf16.mxu0 0
    %1641 = vmatpush2.bf16.msra.mxu0 0
    %1642 = vmatprep.subr.bf16.mxu0 0
    %1643 = vmatpush2.bf16.msra.mxu0 0
    %1644 = vmatprep.subr.bf16.mxu0 0
    %1645 = vmatpush2.bf16.msra.mxu0 0
    %1646 = vmatprep.subr.bf16.mxu0 0
    %1647 = vmatpush2.bf16.msra.mxu0 0
    %1648 = vmatprep.subr.bf16.mxu0 0
    %1649 = vmatpush2.bf16.msra.mxu0 0
    %1650 = vmatprep.mubr.bf16.mxu0 0
    %1651 = vmatmul.mubr.bf16.gmra.mxu0 %v1616
    %v1652 = vpop.f32.mrf.mxu0
    %v1653 = vadd.f32 0.0, %v1652
    %v1654 = vpop.f32.mrf.mxu0
    %v1655 = vpop.f32.mrf.mxu0
    %v1656 = vpop.f32.mrf.mxu0
    %1657 = vdwg.mxu0
    %v1658 = vadd.f32 %v1596, %v1653
    %v1659 = vxor.u32 %v1658, 2147483648
    %v1660 = vmul.f32 %v1659, 1.442695
    %v1661 = vpow.pop %v1660
    %v1662 = vadd.f32 %v1661, 1.0
    %v1663 = vrcp.pop %v1662
    %v1664 = vmul.f32 1.0, %v1663
    %v1665 = vtanh.pop %v1658
    %v1666 = vmul.f32 %v1664, %v1484
    %1668 = vrot.lane.b32.xlu0 %v1665, 64
    %v1669 = vpop.permute.xlu0 %1668
    %v1671 = vmul.f32 %v1664, %v1669
    %1673 = vrot.lane.b32.xlu0 %v1671, 32
    %v1674 = vpop.permute.xlu0 %1673
    %v1676 = vadd.f32 %v1666, %v1674
    %v1677 = vtanh.pop %v1676
    %1679 = vrot.lane.b32.xlu0 %v1677, 64
    %v1680 = vpop.permute.xlu0 %1679
    %v1682 = vmul.f32 %v1664, %v1680
    %v1683 = vpack.c.bf16 %v1682, %v1682
    %v1685 = vunpack.c.l.b16 %v1683
    %v1686 = vpack.c.b16 %v1685, %v1685
    %1687 = vrot.lane.b32.xlu0 %v1686, 32
    %v1688 = vpop.permute.xlu0 %1687
    %s1690 = scalar_lea.vmem [#allocation15], 8
    %1691 = vst.msk [vmem:[%s1690] sm:$0xf] %vm631, %v1688
    %v1692 = vld [vmem:[#allocation6 + $0x30] sm:$0xff]
    %v1693 = vld [vmem:[#allocation9] sm:$0xf]
    %v1694 = vld [vmem:[#allocation9 + $0x4] sm:$0xf]
    %v1695 = vld [vmem:[#allocation9 + $0x8] sm:$0xf]
    %v1696 = vld [vmem:[#allocation9 + $0xc] sm:$0xf]
    %1697 = vrot.lane.b32.xlu0 %v1587, 32
    %v1698 = vpop.permute.xlu0 %1697
    %v1703 = vunpack.c.l.b16 %v1693
    %v1704 = vunpack.c.l.b16 %v1694
    %v1705 = vunpack.c.l.b16 %v1695
    %v1706 = vunpack.c.l.b16 %v1696
    %v1707 = vpack.c.b16 %v1704, %v1703
    %v1708 = vpack.c.b16 %v1706, %v1705
    %v1712 = vsel %vm551, %v1698, 0
    %1714 = vmatprep.subr.bf16.mxu0 0
    %1715 = vmatpush1.bf16.msra.mxu0 0
    %1716 = vmatprep.subr.bf16.mxu0 0
    %1717 = vmatpush1.bf16.msra.mxu0 0
    %1718 = vmatprep.subr.bf16.mxu0 0
    %1719 = vmatpush1.bf16.msra.mxu0 0
    %1720 = vmatprep.subr.bf16.mxu0 0
    %1721 = vmatpush1.bf16.msra.mxu0 0
    %1722 = vmatprep.subr.bf16.mxu0 0
    %1723 = vmatpush1.bf16.msra.mxu0 0
    %1724 = vmatprep.subr.bf16.mxu0 0
    %1725 = vmatpush1.bf16.msra.mxu0 0
    %1726 = vmatprep.subr.bf16.mxu0 0
    %1727 = vmatpush1.bf16.msra.mxu0 %v1708
    %1728 = vmatprep.subr.bf16.mxu0 0
    %1729 = vmatpush1.bf16.msra.mxu0 %v1707
    %1730 = vmatprep.subr.bf16.mxu0 0
    %1731 = vmatpush2.bf16.msra.mxu0 0
    %1732 = vmatprep.subr.bf16.mxu0 0
    %1733 = vmatpush2.bf16.msra.mxu0 0
    %1734 = vmatprep.subr.bf16.mxu0 0
    %1735 = vmatpush2.bf16.msra.mxu0 0
    %1736 = vmatprep.subr.bf16.mxu0 0
    %1737 = vmatpush2.bf16.msra.mxu0 0
    %1738 = vmatprep.subr.bf16.mxu0 0
    %1739 = vmatpush2.bf16.msra.mxu0 0
    %1740 = vmatprep.subr.bf16.mxu0 0
    %1741 = vmatpush2.bf16.msra.mxu0 0
    %1742 = vmatprep.subr.bf16.mxu0 0
    %1743 = vmatpush2.bf16.msra.mxu0 0
    %1744 = vmatprep.subr.bf16.mxu0 0
    %1745 = vmatpush2.bf16.msra.mxu0 0
    %1746 = vmatprep.mubr.bf16.mxu0 0
    %1747 = vmatmul.mubr.bf16.gmra.mxu0 %v1712
    %v1748 = vpop.f32.mrf.mxu0
    %v1749 = vadd.f32 0.0, %v1748
    %v1750 = vpop.f32.mrf.mxu0
    %v1751 = vpop.f32.mrf.mxu0
    %v1752 = vpop.f32.mrf.mxu0
    %1753 = vdwg.mxu0
    %v1754 = vadd.f32 %v1692, %v1749
    %v1755 = vxor.u32 %v1754, 2147483648
    %v1756 = vmul.f32 %v1755, 1.442695
    %v1757 = vpow.pop %v1756
    %v1758 = vadd.f32 %v1757, 1.0
    %v1759 = vrcp.pop %v1758
    %v1760 = vmul.f32 1.0, %v1759
    %v1761 = vtanh.pop %v1754
    %v1762 = vmul.f32 %v1760, %v1580
    %1764 = vrot.lane.b32.xlu0 %v1761, 64
    %v1765 = vpop.permute.xlu0 %1764
    %v1767 = vmul.f32 %v1760, %v1765
    %1769 = vrot.lane.b32.xlu0 %v1767, 32
    %v1770 = vpop.permute.xlu0 %1769
    %v1772 = vadd.f32 %v1762, %v1770
    %v1773 = vtanh.pop %v1772
    %1775 = vrot.lane.b32.xlu0 %v1773, 64
    %v1776 = vpop.permute.xlu0 %1775
    %v1778 = vmul.f32 %v1760, %v1776
    %v1779 = vpack.c.bf16 %v1778, %v1778
    %v1781 = vunpack.c.l.b16 %v1779
    %v1782 = vpack.c.b16 %v1781, %v1781
    %1783 = vrot.lane.b32.xlu0 %v1782, 32
    %v1784 = vpop.permute.xlu0 %1783
    %s1786 = scalar_lea.vmem [#allocation13], 24
    %1787 = vst.msk [vmem:[%s1786] sm:$0xf] %vm631, %v1784
    %v1788 = vld [vmem:[#allocation7 + $0x8] sm:$0xff]
    %v1789 = vld [vmem:[#allocation11] sm:$0xf]
    %v1790 = vld [vmem:[#allocation11 + $0x4] sm:$0xf]
    %v1791 = vld [vmem:[#allocation11 + $0x8] sm:$0xf]
    %v1792 = vld [vmem:[#allocation11 + $0xc] sm:$0xf]
    %1793 = vrot.lane.b32.xlu0 %v1683, 32
    %v1794 = vpop.permute.xlu0 %1793
    %v1799 = vunpack.c.l.b16 %v1789
    %v1800 = vunpack.c.l.b16 %v1790
    %v1801 = vunpack.c.l.b16 %v1791
    %v1802 = vunpack.c.l.b16 %v1792
    %v1803 = vpack.c.b16 %v1800, %v1799
    %v1804 = vpack.c.b16 %v1802, %v1801
    %v1808 = vsel %vm551, %v1794, 0
    %1810 = vmatprep.subr.bf16.mxu0 0
    %1811 = vmatpush1.bf16.msra.mxu0 0
    %1812 = vmatprep.subr.bf16.mxu0 0
    %1813 = vmatpush1.bf16.msra.mxu0 0
    %1814 = vmatprep.subr.bf16.mxu0 0
    %1815 = vmatpush1.bf16.msra.mxu0 0
    %1816 = vmatprep.subr.bf16.mxu0 0
    %1817 = vmatpush1.bf16.msra.mxu0 0
    %1818 = vmatprep.subr.bf16.mxu0 0
    %1819 = vmatpush1.bf16.msra.mxu0 0
    %1820 = vmatprep.subr.bf16.mxu0 0
    %1821 = vmatpush1.bf16.msra.mxu0 0
    %1822 = vmatprep.subr.bf16.mxu0 0
    %1823 = vmatpush1.bf16.msra.mxu0 %v1804
    %1824 = vmatprep.subr.bf16.mxu0 0
    %1825 = vmatpush1.bf16.msra.mxu0 %v1803
    %1826 = vmatprep.subr.bf16.mxu0 0
    %1827 = vmatpush2.bf16.msra.mxu0 0
    %1828 = vmatprep.subr.bf16.mxu0 0
    %1829 = vmatpush2.bf16.msra.mxu0 0
    %1830 = vmatprep.subr.bf16.mxu0 0
    %1831 = vmatpush2.bf16.msra.mxu0 0
    %1832 = vmatprep.subr.bf16.mxu0 0
    %1833 = vmatpush2.bf16.msra.mxu0 0
    %1834 = vmatprep.subr.bf16.mxu0 0
    %1835 = vmatpush2.bf16.msra.mxu0 0
    %1836 = vmatprep.subr.bf16.mxu0 0
    %1837 = vmatpush2.bf16.msra.mxu0 0
    %1838 = vmatprep.subr.bf16.mxu0 0
    %1839 = vmatpush2.bf16.msra.mxu0 0
    %1840 = vmatprep.subr.bf16.mxu0 0
    %1841 = vmatpush2.bf16.msra.mxu0 0
    %1842 = vmatprep.mubr.bf16.mxu0 0
    %1843 = vmatmul.mubr.bf16.gmra.mxu0 %v1808
    %v1844 = vpop.f32.mrf.mxu0
    %v1845 = vadd.f32 0.0, %v1844
    %v1846 = vpop.f32.mrf.mxu0
    %v1847 = vpop.f32.mrf.mxu0
    %v1848 = vpop.f32.mrf.mxu0
    %1849 = vdwg.mxu0
    %v1850 = vadd.f32 %v1788, %v1845
    %v1851 = vxor.u32 %v1850, 2147483648
    %v1852 = vmul.f32 %v1851, 1.442695
    %v1853 = vpow.pop %v1852
    %v1854 = vadd.f32 %v1853, 1.0
    %v1855 = vrcp.pop %v1854
    %v1856 = vmul.f32 1.0, %v1855
    %v1857 = vtanh.pop %v1850
    %v1858 = vmul.f32 %v1856, %v1676
    %1860 = vrot.lane.b32.xlu0 %v1857, 64
    %v1861 = vpop.permute.xlu0 %1860
    %v1863 = vmul.f32 %v1856, %v1861
    %1865 = vrot.lane.b32.xlu0 %v1863, 32
    %v1866 = vpop.permute.xlu0 %1865
    %v1868 = vadd.f32 %v1858, %v1866
    %v1869 = vtanh.pop %v1868
    %1871 = vrot.lane.b32.xlu0 %v1869, 64
    %v1872 = vpop.permute.xlu0 %1871
    %v1874 = vmul.f32 %v1856, %v1872
    %v1875 = vpack.c.bf16 %v1874, %v1874
    %v1877 = vunpack.c.l.b16 %v1875
    %v1878 = vpack.c.b16 %v1877, %v1877
    %1879 = vrot.lane.b32.xlu0 %v1878, 32
    %v1880 = vpop.permute.xlu0 %1879
    %s1882 = scalar_lea.vmem [#allocation15], 4
    %1883 = vst.msk [vmem:[%s1882] sm:$0xf] %vm631, %v1880
    %v1884 = vld [vmem:[#allocation6 + $0x38] sm:$0xff]
    %v1885 = vld [vmem:[#allocation9] sm:$0xf]
    %v1886 = vld [vmem:[#allocation9 + $0x4] sm:$0xf]
    %v1887 = vld [vmem:[#allocation9 + $0x8] sm:$0xf]
    %v1888 = vld [vmem:[#allocation9 + $0xc] sm:$0xf]
    %1889 = vrot.lane.b32.xlu0 %v1779, 32
    %v1890 = vpop.permute.xlu0 %1889
    %v1895 = vunpack.c.l.b16 %v1885
    %v1896 = vunpack.c.l.b16 %v1886
    %v1897 = vunpack.c.l.b16 %v1887
    %v1898 = vunpack.c.l.b16 %v1888
    %v1899 = vpack.c.b16 %v1896, %v1895
    %v1900 = vpack.c.b16 %v1898, %v1897
    %v1904 = vsel %vm551, %v1890, 0
    %1906 = vmatprep.subr.bf16.mxu0 0
    %1907 = vmatpush1.bf16.msra.mxu0 0
    %1908 = vmatprep.subr.bf16.mxu0 0
    %1909 = vmatpush1.bf16.msra.mxu0 0
    %1910 = vmatprep.subr.bf16.mxu0 0
    %1911 = vmatpush1.bf16.msra.mxu0 0
    %1912 = vmatprep.subr.bf16.mxu0 0
    %1913 = vmatpush1.bf16.msra.mxu0 0
    %1914 = vmatprep.subr.bf16.mxu0 0
    %1915 = vmatpush1.bf16.msra.mxu0 0
    %1916 = vmatprep.subr.bf16.mxu0 0
    %1917 = vmatpush1.bf16.msra.mxu0 0
    %1918 = vmatprep.subr.bf16.mxu0 0
    %1919 = vmatpush1.bf16.msra.mxu0 %v1900
    %1920 = vmatprep.subr.bf16.mxu0 0
    %1921 = vmatpush1.bf16.msra.mxu0 %v1899
    %1922 = vmatprep.subr.bf16.mxu0 0
    %1923 = vmatpush2.bf16.msra.mxu0 0
    %1924 = vmatprep.subr.bf16.mxu0 0
    %1925 = vmatpush2.bf16.msra.mxu0 0
    %1926 = vmatprep.subr.bf16.mxu0 0
    %1927 = vmatpush2.bf16.msra.mxu0 0
    %1928 = vmatprep.subr.bf16.mxu0 0
    %1929 = vmatpush2.bf16.msra.mxu0 0
    %1930 = vmatprep.subr.bf16.mxu0 0
    %1931 = vmatpush2.bf16.msra.mxu0 0
    %1932 = vmatprep.subr.bf16.mxu0 0
    %1933 = vmatpush2.bf16.msra.mxu0 0
    %1934 = vmatprep.subr.bf16.mxu0 0
    %1935 = vmatpush2.bf16.msra.mxu0 0
    %1936 = vmatprep.subr.bf16.mxu0 0
    %1937 = vmatpush2.bf16.msra.mxu0 0
    %1938 = vmatprep.mubr.bf16.mxu0 0
    %1939 = vmatmul.mubr.bf16.gmra.mxu0 %v1904
    %v1940 = vpop.f32.mrf.mxu0
    %v1941 = vadd.f32 0.0, %v1940
    %v1942 = vpop.f32.mrf.mxu0
    %v1943 = vpop.f32.mrf.mxu0
    %v1944 = vpop.f32.mrf.mxu0
    %1945 = vdwg.mxu0
    %v1946 = vadd.f32 %v1884, %v1941
    %v1947 = vxor.u32 %v1946, 2147483648
    %v1948 = vmul.f32 %v1947, 1.442695
    %v1949 = vpow.pop %v1948
    %v1950 = vadd.f32 %v1949, 1.0
    %v1951 = vrcp.pop %v1950
    %v1952 = vmul.f32 1.0, %v1951
    %v1953 = vtanh.pop %v1946
    %v1954 = vmul.f32 %v1952, %v1772
    %1956 = vrot.lane.b32.xlu0 %v1953, 64
    %v1957 = vpop.permute.xlu0 %1956
    %v1959 = vmul.f32 %v1952, %v1957
    %1961 = vrot.lane.b32.xlu0 %v1959, 32
    %v1962 = vpop.permute.xlu0 %1961
    %v1964 = vadd.f32 %v1954, %v1962
    %v1965 = vtanh.pop %v1964
    %1967 = vrot.lane.b32.xlu0 %v1965, 64
    %v1968 = vpop.permute.xlu0 %1967
    %v1970 = vmul.f32 %v1952, %v1968
    %v1971 = vpack.c.bf16 %v1970, %v1970
    %v1973 = vunpack.c.l.b16 %v1971
    %v1974 = vpack.c.b16 %v1973, %v1973
    %1975 = vrot.lane.b32.xlu0 %v1974, 32
    %v1976 = vpop.permute.xlu0 %1975
    %s1978 = scalar_lea.vmem [#allocation13], 28
    %1979 = vst.msk [vmem:[%s1978] sm:$0xf] %vm631, %v1976
    %v1980 = vld [vmem:[#allocation7] sm:$0xff]
    %v1981 = vld [vmem:[#allocation11] sm:$0xf]
    %v1982 = vld [vmem:[#allocation11 + $0x4] sm:$0xf]
    %v1983 = vld [vmem:[#allocation11 + $0x8] sm:$0xf]
    %v1984 = vld [vmem:[#allocation11 + $0xc] sm:$0xf]
    %1985 = vrot.lane.b32.xlu0 %v1875, 32
    %v1986 = vpop.permute.xlu0 %1985
    %v1991 = vunpack.c.l.b16 %v1981
    %v1992 = vunpack.c.l.b16 %v1982
    %v1993 = vunpack.c.l.b16 %v1983
    %v1994 = vunpack.c.l.b16 %v1984
    %v1995 = vpack.c.b16 %v1992, %v1991
    %v1996 = vpack.c.b16 %v1994, %v1993
    %v2000 = vsel %vm551, %v1986, 0
    %2002 = vmatprep.subr.bf16.mxu0 0
    %2003 = vmatpush1.bf16.msra.mxu0 0
    %2004 = vmatprep.subr.bf16.mxu0 0
    %2005 = vmatpush1.bf16.msra.mxu0 0
    %2006 = vmatprep.subr.bf16.mxu0 0
    %2007 = vmatpush1.bf16.msra.mxu0 0
    %2008 = vmatprep.subr.bf16.mxu0 0
    %2009 = vmatpush1.bf16.msra.mxu0 0
    %2010 = vmatprep.subr.bf16.mxu0 0
    %2011 = vmatpush1.bf16.msra.mxu0 0
    %2012 = vmatprep.subr.bf16.mxu0 0
    %2013 = vmatpush1.bf16.msra.mxu0 0
    %2014 = vmatprep.subr.bf16.mxu0 0
    %2015 = vmatpush1.bf16.msra.mxu0 %v1996
    %2016 = vmatprep.subr.bf16.mxu0 0
    %2017 = vmatpush1.bf16.msra.mxu0 %v1995
    %2018 = vmatprep.subr.bf16.mxu0 0
    %2019 = vmatpush2.bf16.msra.mxu0 0
    %2020 = vmatprep.subr.bf16.mxu0 0
    %2021 = vmatpush2.bf16.msra.mxu0 0
    %2022 = vmatprep.subr.bf16.mxu0 0
    %2023 = vmatpush2.bf16.msra.mxu0 0
    %2024 = vmatprep.subr.bf16.mxu0 0
    %2025 = vmatpush2.bf16.msra.mxu0 0
    %2026 = vmatprep.subr.bf16.mxu0 0
    %2027 = vmatpush2.bf16.msra.mxu0 0
    %2028 = vmatprep.subr.bf16.mxu0 0
    %2029 = vmatpush2.bf16.msra.mxu0 0
    %2030 = vmatprep.subr.bf16.mxu0 0
    %2031 = vmatpush2.bf16.msra.mxu0 0
    %2032 = vmatprep.subr.bf16.mxu0 0
    %2033 = vmatpush2.bf16.msra.mxu0 0
    %2034 = vmatprep.mubr.bf16.mxu0 0
    %2035 = vmatmul.mubr.bf16.gmra.mxu0 %v2000
    %v2036 = vpop.f32.mrf.mxu0
    %v2037 = vadd.f32 0.0, %v2036
    %v2038 = vpop.f32.mrf.mxu0
    %v2039 = vpop.f32.mrf.mxu0
    %v2040 = vpop.f32.mrf.mxu0
    %2041 = vdwg.mxu0
    %v2042 = vadd.f32 %v1980, %v2037
    %v2043 = vxor.u32 %v2042, 2147483648
    %v2044 = vmul.f32 %v2043, 1.442695
    %v2045 = vpow.pop %v2044
    %v2046 = vadd.f32 %v2045, 1.0
    %v2047 = vrcp.pop %v2046
    %v2048 = vmul.f32 1.0, %v2047
    %v2049 = vtanh.pop %v2042
    %v2050 = vmul.f32 %v2048, %v1868
    %2052 = vrot.lane.b32.xlu0 %v2049, 64
    %v2053 = vpop.permute.xlu0 %2052
    %v2055 = vmul.f32 %v2048, %v2053
    %2057 = vrot.lane.b32.xlu0 %v2055, 32
    %v2058 = vpop.permute.xlu0 %2057
    %v2060 = vadd.f32 %v2050, %v2058
    %v2061 = vtanh.pop %v2060
    %2063 = vrot.lane.b32.xlu0 %v2061, 64
    %v2064 = vpop.permute.xlu0 %2063
    %v2066 = vmul.f32 %v2048, %v2064
    %v2067 = vpack.c.bf16 %v2066, %v2066
    %v2069 = vunpack.c.l.b16 %v2067
    %v2070 = vpack.c.b16 %v2069, %v2069
    %2071 = vrot.lane.b32.xlu0 %v2070, 32
    %v2072 = vpop.permute.xlu0 %2071
    %2074 = vst.msk [vmem:[#allocation15] sm:$0xf] %vm631, %v2072
    %2076 = vrot.lane.b32.xlu0 %v1970, 32
    %v2077 = vpop.permute.xlu0 %2076
    %2079 = vst.msk [vmem:[#allocation2] sm:$0xff] %vm551, %v2077
    %2081 = vrot.lane.b32.xlu0 %v1964, 96
    %v2082 = vpop.permute.xlu0 %2081
    %2084 = vst.msk [vmem:[#allocation3] sm:$0xff] %vm551, %v2082
    %2086 = vrot.lane.b32.xlu0 %v2066, 32
    %v2087 = vpop.permute.xlu0 %2086
    %2089 = vst.msk [vmem:[#allocation4] sm:$0xff] %vm551, %v2087
    %2091 = vrot.lane.b32.xlu0 %v2060, 96
    %v2092 = vpop.permute.xlu0 %2091
    %2094 = vst.msk [vmem:[#allocation5] sm:$0xff] %vm551, %v2092
    // Predicated region
    $region174: #{tpu_custom_call.1} parent=1 // pred_check
      %p2095 = pneg %p68
    $region175: #{tpu_custom_call.1} parent=1 // pred_check_branch
      %2097 = sbr.rel (%p2095) target = $region177
    $region176: #{tpu_custom_call.1} parent=1 // pred_region
      %2098 = vst.msk [vmem:[#allocation17] sm:$0xff] %vm551, %v2077
      %2099 = vst.msk [vmem:[#allocation18] sm:$0xff] %vm551, %v2087
      %2100 = vst.msk [vmem:[#allocation20] sm:$0xff] %vm551, %v2082
      %2101 = vst.msk [vmem:[#allocation21] sm:$0xff] %vm551, %v2092
    $region177: #{tpu_custom_call.1} parent=1 // pred_fallthru
      _
    // Predicated region
    $region178: #{tpu_custom_call.1} parent=1 // pred_check
      _
    $region179: #{tpu_custom_call.1} parent=1 // pred_check_branch
      %2103 = sbr.rel (0) target = $region181
    $region180: #{tpu_custom_call.1} parent=1 // pred_region
      %s2105 = ssub.s32 512, 512
      %2106 = vsyncadd [#allocation14], %s2105
      %s2107 = sshll.u32 [#allocation13], 4
      %s2108 = int_to_ptr.vmem [resolvable:$true] %s2107
      %2113 = dma.vmem_to_hbm [thread:$0]  %s2108, 512, %s12, [#allocation14], 64, 64, 4
    $region181: #{tpu_custom_call.1} parent=1 // pred_fallthru
      _
    // Predicated region
    $region182: #{tpu_custom_call.1} parent=1 // pred_check
      _
    $region183: #{tpu_custom_call.1} parent=1 // pred_check_branch
      %2115 = sbr.rel (0) target = $region185
    $region184: #{tpu_custom_call.1} parent=1 // pred_region
      %s2116 = ssub.s32 0, 0
      %s2117 = smul.u32 8, %s2116
      %s2119 = ssub.s32 512, 512
      %2120 = vsyncadd [#allocation16], %s2119
      %s2121 = smul.addr %s2117, 64
      %s2122 = scalar_lea.hbm %s13, %s2121
      %s2123 = sshll.u32 [#allocation15], 4
      %s2124 = int_to_ptr.vmem [resolvable:$true] %s2123
      %2129 = dma.vmem_to_hbm [thread:$0]  %s2124, 512, %s2122, [#allocation16], 64, 64, 4
    $region185: #{tpu_custom_call.1} parent=1 // pred_fallthru
      _
    // Predicated region
    $region186: #{tpu_custom_call.1} parent=1 // pred_check
      _
    $region187: #{tpu_custom_call.1} parent=1 // pred_check_branch
      %2131 = sbr.rel (0) target = $region189
    $region188: #{tpu_custom_call.1} parent=1 // pred_region
      %s2133 = ssub.s32 128, 128
      %2134 = vsyncadd [#allocation16], %s2133
      %s2136 = sshll.u32 [#allocation17], 4
      %s2137 = int_to_ptr.vmem [resolvable:$true] %s2136
      %2139 = dma.vmem_to_hbm [thread:$0]  %s2137, 128, %s14, [#allocation16]
    $region189: #{tpu_custom_call.1} parent=1 // pred_fallthru
      _
    // Predicated region
    $region190: #{tpu_custom_call.1} parent=1 // pred_check
      _
    $region191: #{tpu_custom_call.1} parent=1 // pred_check_branch
      %2141 = sbr.rel (0) target = $region193
    $region192: #{tpu_custom_call.1} parent=1 // pred_region
      %s2143 = ssub.s32 128, 128
      %2144 = vsyncadd [#allocation19], %s2143
      %s2146 = sshll.u32 [#allocation18], 4
      %s2147 = int_to_ptr.vmem [resolvable:$true] %s2146
      %2149 = dma.vmem_to_hbm [thread:$0]  %s2147, 128, %s15, [#allocation19]
    $region193: #{tpu_custom_call.1} parent=1 // pred_fallthru
      _
    // Predicated region
    $region194: #{tpu_custom_call.1} parent=1 // pred_check
      _
    $region195: #{tpu_custom_call.1} parent=1 // pred_check_branch
      %2151 = sbr.rel (0) target = $region197
    $region196: #{tpu_custom_call.1} parent=1 // pred_region
      %s2153 = ssub.s32 128, 128
      %2154 = vsyncadd [#allocation19], %s2153
      %s2156 = sshll.u32 [#allocation20], 4
      %s2157 = int_to_ptr.vmem [resolvable:$true] %s2156
      %2159 = dma.vmem_to_hbm [thread:$0]  %s2157, 128, %s16, [#allocation19]
    $region197: #{tpu_custom_call.1} parent=1 // pred_fallthru
      _
    // Predicated region
    $region198: #{tpu_custom_call.1} parent=1 // pred_check
      _
    $region199: #{tpu_custom_call.1} parent=1 // pred_check_branch
      %2161 = sbr.rel (0) target = $region201
    $region200: #{tpu_custom_call.1} parent=1 // pred_region
      %s2163 = ssub.s32 128, 128
      %2164 = vsyncadd [#allocation22], %s2163
      %s2166 = sshll.u32 [#allocation21], 4
      %s2167 = int_to_ptr.vmem [resolvable:$true] %s2166
      %2169 = dma.vmem_to_hbm [thread:$0]  %s2167, 128, %s17, [#allocation22]
    $region201: #{tpu_custom_call.1} parent=1 // pred_fallthru
      _
    // Predicated region
    $region202: #{tpu_custom_call.1} parent=1 // pred_check
      _
    $region203: #{tpu_custom_call.1} parent=1 // pred_check_branch
      %2171 = sbr.rel (0) target = $region205
    $region204: #{tpu_custom_call.1} parent=1 // pred_region
      %2172 = dma.done [#allocation14], 512
    $region205: #{tpu_custom_call.1} parent=1 // pred_fallthru
      _
    // Predicated region
    $region206: #{tpu_custom_call.1} parent=1 // pred_check
      _
    $region207: #{tpu_custom_call.1} parent=1 // pred_check_branch
      %2174 = sbr.rel (0) target = $region209
    $region208: #{tpu_custom_call.1} parent=1 // pred_region
      %2175 = dma.done [#allocation16], 512
    $region209: #{tpu_custom_call.1} parent=1 // pred_fallthru
      _
    // Predicated region
    $region210: #{tpu_custom_call.1} parent=1 // pred_check
      _
    $region211: #{tpu_custom_call.1} parent=1 // pred_check_branch
      %2177 = sbr.rel (0) target = $region213
    $region212: #{tpu_custom_call.1} parent=1 // pred_region
      %2178 = dma.done [#allocation16], 128
    $region213: #{tpu_custom_call.1} parent=1 // pred_fallthru
      _
    // Predicated region
    $region214: #{tpu_custom_call.1} parent=1 // pred_check
      _
    $region215: #{tpu_custom_call.1} parent=1 // pred_check_branch
      %2180 = sbr.rel (0) target = $region217
    $region216: #{tpu_custom_call.1} parent=1 // pred_region
      %2181 = dma.done [#allocation19], 128
    $region217: #{tpu_custom_call.1} parent=1 // pred_fallthru
      _
    // Predicated region
    $region218: #{tpu_custom_call.1} parent=1 // pred_check
      _
    $region219: #{tpu_custom_call.1} parent=1 // pred_check_branch
      %2183 = sbr.rel (0) target = $region221
    $region220: #{tpu_custom_call.1} parent=1 // pred_region
      %2184 = dma.done [#allocation19], 128
    $region221: #{tpu_custom_call.1} parent=1 // pred_fallthru
      _
    // Predicated region
    $region222: #{tpu_custom_call.1} parent=1 // pred_check
      _
    $region223: #{tpu_custom_call.1} parent=1 // pred_check_branch
      %2186 = sbr.rel (0) target = $region225
    $region224: #{tpu_custom_call.1} parent=1 // pred_region
      %2187 = dma.done [#allocation22], 128
    $region225: #{tpu_custom_call.1} parent=1 // pred_fallthru
      _
    %2188 = vsyncpa [#allocation14], 1
    %2189 = vsyncpa [#allocation16], 1
    %2190 = vsyncpa [#allocation19], 1
    %2191 = vsyncpa [#allocation22], 1
  %2192 = vsyncmov [#allocation12]
  %s2193 = vpop.sfrf %2192
  %p2194 = scmp.eq.s32.totalorder %s2193, 0
  %p2195 = pneg %p2194
  %2197 = shalt.err (%p2195)
  %s2198 = scalar_lea.sflag [#allocation12], 1
  %2199 = vsyncmov %s2198
  %s2200 = vpop.sfrf %2199
  %p2201 = scmp.eq.s32.totalorder %s2200, 0
  %p2202 = pneg %p2201
  %2204 = shalt.err (%p2202)
  %s2205 = scalar_lea.sflag [#allocation12], 2
  %2206 = vsyncmov %s2205
  %s2207 = vpop.sfrf %2206
  %p2208 = scmp.eq.s32.totalorder %s2207, 0
  %p2209 = pneg %p2208
  %2211 = shalt.err (%p2209)
  %s2212 = scalar_lea.sflag [#allocation12], 3
  %2213 = vsyncmov %s2212
  %s2214 = vpop.sfrf %2213
  %p2215 = scmp.eq.s32.totalorder %s2214, 0
  %p2216 = pneg %p2215
  %2218 = shalt.err (%p2216)

</llo_original>
